<compile_context>
chip_gen: v6e
topology: v6e:2x2x1
jax: 0.10.0
libtpu: 0.0.40
codegen_flags: <defaults>
</compile_context>

<pallas_src>
import jax
import jax.numpy as jnp
from jax.experimental import pallas as pl
from jax.experimental.pallas import tpu as pltpu

# ---- model hyper-parameters ----
B, S = 2, 8                  # batch, sequence length
D_IN = 35                    # input_size
D_IN_PAD = 128               # lane-aligned padded input width
D = 64                       # hidden_size (d_model)
H, HD = 4, D // 4            # num_heads, head_dim
L = 3                        # num_layers
FF = 64                      # dim_feedforward
D_OUT = 2                    # output_size
OUT_PAD = 128                # lane-dense output slab width
EPS = 1e-5                   # PyTorch layer_norm_eps default
SCALE = 1.0 / (HD ** 0.5)
BS = B * S                   # 16
HBS = H * BS                 # 64 rows once heads are folded onto the sublane axis
NEG = -1e9                   # additive mask for cross-batch / cross-head attention entries
QKV_W = 3 * D                # 192
QKV_PAD = 256                # padded fused-QKV width (zero columns are free)

# per-layer weight-slab row offsets (every block is 64 lanes wide)
R_WO, R_F1W, R_F2W = 0, 64, 128
R_BO, R_LN1W, R_LN1B, R_F1B, R_F2B, R_LN2W, R_LN2B = 192, 193, 194, 195, 196, 197, 198
LAYER_ROWS = 199


def _layer_norm(x, w, b):
    mu = jnp.mean(x, axis=-1, keepdims=True)
    var = jnp.mean(jnp.square(x - mu), axis=-1, keepdims=True)
    return (x - mu) * jax.lax.rsqrt(var + EPS) * w + b


def transformer_kernel(x_ref, mask_ref, pool_ref, emb_ref, qkv_ref, layer_ref, fc_ref,
                       out_ref):
    # ---- embedding: (BS, 128) @ (128, D); zero-padded input columns contribute nothing ----
    h = jnp.dot(x_ref[...], emb_ref[0:D_IN_PAD, :],
                preferred_element_type=jnp.float32) + emb_ref[D_IN_PAD:D_IN_PAD + 1, :]
    mask = mask_ref[...]                      # (HBS, HBS) block-diag over (head, batch)

    # ---- encoder layers (post-LN, ReLU FFN; dropout is identity at inference) ----
    for l in range(L):                        # L = 3, statically unrolled
        qw = qkv_ref[l]                       # (D+1, QKV_PAD)
        lw = layer_ref[l]                     # (LAYER_ROWS, D)

        # fused QKV projection: one MXU push
        qkv = jnp.dot(h, qw[0:D, :], preferred_element_type=jnp.float32) + qw[D:D + 1, :]

        # fold heads onto the sublane (row) axis: (H*BS, HD) = (64, 16)
        def stack_heads(off):
            return jnp.concatenate(
                [qkv[:, off + hh * HD: off + (hh + 1) * HD] for hh in range(H)], axis=0)
        qs = stack_heads(0)
        ks = stack_heads(D)
        vs = stack_heads(2 * D)

        # one scores matmul across all heads; mask keeps (head, batch) blocks separate
        s = jax.lax.dot_general(qs, ks, (((1,), (1,)), ((), ())),
                                preferred_element_type=jnp.float32) * SCALE + mask
        s = s - jnp.max(s, axis=-1, keepdims=True)   # masked entries underflow to 0 after exp
        p = jnp.exp(s)
        p = p * pl.reciprocal(jnp.sum(p, axis=-1, keepdims=True), approx=True)
        ctx = jnp.dot(p, vs, preferred_element_type=jnp.float32)          # (HBS, HD)

        # heads back onto the lane axis, then a single output-projection matmul
        ctx2 = jnp.concatenate(
            [ctx[hh * BS:(hh + 1) * BS, :] for hh in range(H)], axis=1)   # (BS, D)
        attn = jnp.dot(ctx2, lw[R_WO:R_WO + D, :],
                       preferred_element_type=jnp.float32) + lw[R_BO:R_BO + 1, :]
        h = _layer_norm(h + attn, lw[R_LN1W:R_LN1W + 1, :], lw[R_LN1B:R_LN1B + 1, :])

        # FFN (ReLU)
        ff = jnp.dot(h, lw[R_F1W:R_F1W + D, :],
                     preferred_element_type=jnp.float32) + lw[R_F1B:R_F1B + 1, :]
        ff = jnp.maximum(ff, 0.0)
        ff = jnp.dot(ff, lw[R_F2W:R_F2W + FF, :],
                     preferred_element_type=jnp.float32) + lw[R_F2B:R_F2B + 1, :]
        h = _layer_norm(h + ff, lw[R_LN2W:R_LN2W + 1, :], lw[R_LN2B:R_LN2B + 1, :])

    # ---- mean over seq folded into a matmul, then final linear into a lane-dense slab ----
    pooled = jnp.dot(pool_ref[...], h, preferred_element_type=jnp.float32)   # (B, D)
    out_ref[...] = jnp.dot(pooled, fc_ref[0:D, :],
                           preferred_element_type=jnp.float32) + fc_ref[D:D + 1, :]


def init_params(key):
    # NOTE: if loading real PyTorch weights, nn.Linear / in_proj weights are stored (out,in)
    # and must be transposed; the fused in_proj splits into Wq/Wk/Wv with head-major output
    # columns (column h*HD+d == head h, dim d), which is exactly the layout used here.
    ks = jax.random.split(key, 16)
    n = lambda k, shape, s=0.05: jax.random.normal(k, shape, jnp.float32) * s
    return dict(
        emb_w=n(ks[0], (D_IN, D)), emb_b=n(ks[1], (1, D)),
        wq=n(ks[2], (L, D, D)), bq=n(ks[3], (L, 1, D)),
        wk=n(ks[4], (L, D, D)), bk=n(ks[5], (L, 1, D)),
        wv=n(ks[6], (L, D, D)), bv=n(ks[7], (L, 1, D)),
        wo=n(ks[8], (L, D, D)), bo=n(ks[9], (L, 1, D)),
        ln1w=jnp.ones((L, 1, D), jnp.float32), ln1b=jnp.zeros((L, 1, D), jnp.float32),
        f1w=n(ks[10], (L, D, FF)), f1b=n(ks[11], (L, 1, FF)),
        f2w=n(ks[12], (L, FF, D)), f2b=n(ks[13], (L, 1, D)),
        ln2w=jnp.ones((L, 1, D), jnp.float32), ln2b=jnp.zeros((L, 1, D), jnp.float32),
        fcw=n(ks[14], (D, D_OUT)), fcb=n(ks[15], (1, D_OUT)),
    )


def pack_params(p):
    """Pack the 23 parameter arrays into 4 slabs (run ONCE, outside the per-call path)."""
    # embedding slab: rows 0:128 padded weight, row 128 bias -> (129, 64)
    emb_w_pad = jnp.pad(p["emb_w"], ((0, D_IN_PAD - D_IN), (0, 0)))
    emb_slab = jnp.concatenate([emb_w_pad, p["emb_b"]], axis=0)

    # fused QKV slab: rows 0:64 weights, row 64 bias; lanes 192:256 are zero -> (L, 65, 256)
    wqkv = jnp.concatenate([p["wq"], p["wk"], p["wv"]], axis=2)       # (L, D, 192)
    bqkv = jnp.concatenate([p["bq"], p["bk"], p["bv"]], axis=2)       # (L, 1, 192)
    qkv_slab = jnp.concatenate([wqkv, bqkv], axis=1)                  # (L, 65, 192)
    qkv_slab = jnp.pad(qkv_slab, ((0, 0), (0, 0), (0, QKV_PAD - QKV_W)))

    # per-layer 64-wide slab: Wo | W_ff1 | W_ff2 | 7 bias/LN rows -> (L, 199, 64)
    layer_slab = jnp.concatenate(
        [p["wo"], p["f1w"], p["f2w"],
         p["bo"], p["ln1w"], p["ln1b"], p["f1b"], p["f2b"], p["ln2w"], p["ln2b"]],
        axis=1)

    # final linear slab, zero-padded to 128 lanes -> (65, 128)
    fcw_pad = jnp.pad(p["fcw"], ((0, 0), (0, OUT_PAD - D_OUT)))
    fcb_pad = jnp.pad(p["fcb"], ((0, 0), (0, OUT_PAD - D_OUT)))
    fc_slab = jnp.concatenate([fcw_pad, fcb_pad], axis=0)
    return emb_slab, qkv_slab, layer_slab, fc_slab


def build_constants():
    """Attention mask (block-diag over head AND batch) and mean-pool matrix. Built once."""
    idx = jnp.arange(HBS)
    hid = idx // BS
    bid = (idx % BS) // S
    allowed = (hid[:, None] == hid[None, :]) & (bid[:, None] == bid[None, :])
    mask = jnp.where(allowed, 0.0, NEG).astype(jnp.float32)            # (HBS, HBS)
    seq_to_batch = jnp.arange(BS) // S
    pool = (jnp.arange(B)[:, None] == seq_to_batch[None, :]).astype(jnp.float32) / S  # (B, BS)
    return mask, pool


@jax.jit
def transformer_forward(x, mask, pool, emb_slab, qkv_slab, layer_slab, fc_slab):
    # only per-call wrapper work: flatten + lane-align the input
    x_pad = jnp.pad(x.reshape(BS, D_IN), ((0, 0), (0, D_IN_PAD - D_IN)))
    vmem = pl.BlockSpec(memory_space=pltpu.MemorySpace.VMEM)
    out = pl.pallas_call(
        transformer_kernel,
        out_shape=jax.ShapeDtypeStruct((B, OUT_PAD), jnp.float32),
        in_specs=[vmem] * 7,
        out_specs=vmem,
    )(x_pad, mask, pool, emb_slab, qkv_slab, layer_slab, fc_slab)
    # torch .squeeze() is a no-op at (B=2, D_OUT=2)
    return out[:, :D_OUT]


if __name__ == "__main__":
    key = jax.random.PRNGKey(0)
    kx, kp = jax.random.split(key)
    x = jax.random.normal(kx, (B, S, D_IN), jnp.float32)

    params = init_params(kp)
    emb_slab, qkv_slab, layer_slab, fc_slab = pack_params(params)   # once, outside jit path
    mask, pool = build_constants()                                  # once, outside jit path

    out = transformer_forward(x, mask, pool, emb_slab, qkv_slab, layer_slab, fc_slab)
    jax.block_until_ready(out)
    assert out.shape == (B, D_OUT), out.shape
    # TODO(synk): dropout(p=0.2) from training mode is not modeled (inference semantics: identity).
    print("KERNEL_OK")
</pallas_src>

<mosaic_0001>
module attributes {stable_mosaic.version = 11 : i64} {
  func.func @transformer_kernel(%arg0: memref<16x128xf32, #tpu.memory_space<vmem>>, %arg1: memref<64x64xf32, #tpu.memory_space<vmem>>, %arg2: memref<2x16xf32, #tpu.memory_space<vmem>>, %arg3: memref<129x64xf32, #tpu.memory_space<vmem>>, %arg4: memref<3x65x256xf32, #tpu.memory_space<vmem>>, %arg5: memref<3x199x64xf32, #tpu.memory_space<vmem>>, %arg6: memref<65x128xf32, #tpu.memory_space<vmem>>, %arg7: memref<2x128xf32, #tpu.memory_space<vmem>>) attributes {dimension_semantics = [], scalar_prefetch = 0 : i64, scratch_operands = 0 : i64, tpu.core_type = #tpu.core_type<tc>} {
    %c0 = arith.constant 0 : index
    %c0_0 = arith.constant 0 : index
    %0 = vector.load %arg0[%c0, %c0_0] : memref<16x128xf32, #tpu.memory_space<vmem>>, vector<16x128xf32>
    %c0_1 = arith.constant 0 : index
    %c0_2 = arith.constant 0 : index
    %1 = vector.load %arg3[%c0_1, %c0_2] : memref<129x64xf32, #tpu.memory_space<vmem>>, vector<128x64xf32>
    %cst = arith.constant dense<0.000000e+00> : vector<16x64xf32>
    %2 = tpu.matmul %0, %1, %cst {dimension_numbers = #tpu.dot_dimension_numbers<[1], [0], [0], [1], [0, 0, 1, 1], [], []>} : vector<16x128xf32>, vector<128x64xf32>, vector<16x64xf32> -> vector<16x64xf32>
    %c128 = arith.constant 128 : index
    %c0_3 = arith.constant 0 : index
    %3 = vector.load %arg3[%c128, %c0_3] : memref<129x64xf32, #tpu.memory_space<vmem>>, vector<1x64xf32>
    %4 = vector.broadcast %3 : vector<1x64xf32> to vector<16x64xf32>
    %5 = arith.addf %2, %4 : vector<16x64xf32>
    %c0_4 = arith.constant 0 : index
    %c0_5 = arith.constant 0 : index
    %6 = vector.load %arg1[%c0_4, %c0_5] : memref<64x64xf32, #tpu.memory_space<vmem>>, vector<64x64xf32>
    %c0_6 = arith.constant 0 : index
    %c0_7 = arith.constant 0 : index
    %c0_8 = arith.constant 0 : index
    %7 = vector.load %arg4[%c0_6, %c0_7, %c0_8] : memref<3x65x256xf32, #tpu.memory_space<vmem>>, vector<1x65x256xf32>
    %8 = vector.shape_cast %7 : vector<1x65x256xf32> to vector<65x256xf32>
    %c0_9 = arith.constant 0 : index
    %c0_10 = arith.constant 0 : index
    %c0_11 = arith.constant 0 : index
    %9 = vector.load %arg5[%c0_9, %c0_10, %c0_11] : memref<3x199x64xf32, #tpu.memory_space<vmem>>, vector<1x199x64xf32>
    %10 = vector.shape_cast %9 : vector<1x199x64xf32> to vector<199x64xf32>
    %11 = vector.extract_strided_slice %8 {offsets = [0, 0], sizes = [64, 256], strides = [1, 1]} : vector<65x256xf32> to vector<64x256xf32>
    %cst_12 = arith.constant dense<0.000000e+00> : vector<16x256xf32>
    %12 = tpu.matmul %5, %11, %cst_12 {dimension_numbers = #tpu.dot_dimension_numbers<[1], [0], [0], [1], [0, 0, 1, 1], [], []>} : vector<16x64xf32>, vector<64x256xf32>, vector<16x256xf32> -> vector<16x256xf32>
    %13 = vector.extract_strided_slice %8 {offsets = [64, 0], sizes = [1, 256], strides = [1, 1]} : vector<65x256xf32> to vector<1x256xf32>
    %14 = vector.broadcast %13 : vector<1x256xf32> to vector<16x256xf32>
    %15 = arith.addf %12, %14 : vector<16x256xf32>
    %16 = vector.extract_strided_slice %15 {offsets = [0, 0], sizes = [16, 16], strides = [1, 1]} : vector<16x256xf32> to vector<16x16xf32>
    %17 = vector.extract_strided_slice %15 {offsets = [0, 16], sizes = [16, 16], strides = [1, 1]} : vector<16x256xf32> to vector<16x16xf32>
    %18 = vector.extract_strided_slice %15 {offsets = [0, 32], sizes = [16, 16], strides = [1, 1]} : vector<16x256xf32> to vector<16x16xf32>
    %19 = vector.extract_strided_slice %15 {offsets = [0, 48], sizes = [16, 16], strides = [1, 1]} : vector<16x256xf32> to vector<16x16xf32>
    %20 = tpu.concatenate %16, %17, %18, %19 in 0 : vector<16x16xf32>, vector<16x16xf32>, vector<16x16xf32>, vector<16x16xf32> -> vector<64x16xf32>
    %21 = vector.extract_strided_slice %15 {offsets = [0, 64], sizes = [16, 16], strides = [1, 1]} : vector<16x256xf32> to vector<16x16xf32>
    %22 = vector.extract_strided_slice %15 {offsets = [0, 80], sizes = [16, 16], strides = [1, 1]} : vector<16x256xf32> to vector<16x16xf32>
    %23 = vector.extract_strided_slice %15 {offsets = [0, 96], sizes = [16, 16], strides = [1, 1]} : vector<16x256xf32> to vector<16x16xf32>
    %24 = vector.extract_strided_slice %15 {offsets = [0, 112], sizes = [16, 16], strides = [1, 1]} : vector<16x256xf32> to vector<16x16xf32>
    %25 = tpu.concatenate %21, %22, %23, %24 in 0 : vector<16x16xf32>, vector<16x16xf32>, vector<16x16xf32>, vector<16x16xf32> -> vector<64x16xf32>
    %26 = vector.extract_strided_slice %15 {offsets = [0, 128], sizes = [16, 16], strides = [1, 1]} : vector<16x256xf32> to vector<16x16xf32>
    %27 = vector.extract_strided_slice %15 {offsets = [0, 144], sizes = [16, 16], strides = [1, 1]} : vector<16x256xf32> to vector<16x16xf32>
    %28 = vector.extract_strided_slice %15 {offsets = [0, 160], sizes = [16, 16], strides = [1, 1]} : vector<16x256xf32> to vector<16x16xf32>
    %29 = vector.extract_strided_slice %15 {offsets = [0, 176], sizes = [16, 16], strides = [1, 1]} : vector<16x256xf32> to vector<16x16xf32>
    %30 = tpu.concatenate %26, %27, %28, %29 in 0 : vector<16x16xf32>, vector<16x16xf32>, vector<16x16xf32>, vector<16x16xf32> -> vector<64x16xf32>
    %cst_13 = arith.constant dense<0.000000e+00> : vector<64x64xf32>
    %31 = tpu.matmul %20, %25, %cst_13 {dimension_numbers = #tpu.dot_dimension_numbers<[1], [1], [0], [0], [0, 0, 1, 0], [], []>} : vector<64x16xf32>, vector<64x16xf32>, vector<64x64xf32> -> vector<64x64xf32>
    %cst_14 = arith.constant 2.500000e-01 : f32
    %32 = vector.broadcast %cst_14 : f32 to vector<64x64xf32>
    %33 = arith.mulf %31, %32 : vector<64x64xf32>
    %34 = arith.addf %33, %6 : vector<64x64xf32>
    %cst_15 = arith.constant dense<0xFF800000> : vector<64xf32>
    %35 = vector.multi_reduction <maximumf>, %34, %cst_15 [1] : vector<64x64xf32> to vector<64xf32>
    %36 = vector.shape_cast %35 : vector<64xf32> to vector<64x1xf32>
    %37 = vector.broadcast %36 : vector<64x1xf32> to vector<64x64xf32>
    %38 = arith.subf %34, %37 : vector<64x64xf32>
    %39 = math.exp %38 : vector<64x64xf32>
    %cst_16 = arith.constant dense<0.000000e+00> : vector<64xf32>
    %40 = vector.multi_reduction <add>, %39, %cst_16 [1] : vector<64x64xf32> to vector<64xf32>
    %41 = vector.shape_cast %40 : vector<64xf32> to vector<64x1xf32>
    %42 = tpu.reciprocal %41 {approx = true} : vector<64x1xf32> -> vector<64x1xf32>
    %43 = vector.broadcast %42 : vector<64x1xf32> to vector<64x64xf32>
    %44 = arith.mulf %39, %43 : vector<64x64xf32>
    %cst_17 = arith.constant dense<0.000000e+00> : vector<64x16xf32>
    %45 = tpu.matmul %44, %30, %cst_17 {dimension_numbers = #tpu.dot_dimension_numbers<[1], [0], [0], [1], [0, 0, 1, 1], [], []>} : vector<64x64xf32>, vector<64x16xf32>, vector<64x16xf32> -> vector<64x16xf32>
    %46 = vector.extract_strided_slice %45 {offsets = [0, 0], sizes = [16, 16], strides = [1, 1]} : vector<64x16xf32> to vector<16x16xf32>
    %47 = vector.extract_strided_slice %45 {offsets = [16, 0], sizes = [16, 16], strides = [1, 1]} : vector<64x16xf32> to vector<16x16xf32>
    %48 = vector.extract_strided_slice %45 {offsets = [32, 0], sizes = [16, 16], strides = [1, 1]} : vector<64x16xf32> to vector<16x16xf32>
    %49 = vector.extract_strided_slice %45 {offsets = [48, 0], sizes = [16, 16], strides = [1, 1]} : vector<64x16xf32> to vector<16x16xf32>
    %50 = tpu.concatenate %46, %47, %48, %49 in 1 : vector<16x16xf32>, vector<16x16xf32>, vector<16x16xf32>, vector<16x16xf32> -> vector<16x64xf32>
    %51 = vector.extract_strided_slice %10 {offsets = [0, 0], sizes = [64, 64], strides = [1, 1]} : vector<199x64xf32> to vector<64x64xf32>
    %cst_18 = arith.constant dense<0.000000e+00> : vector<16x64xf32>
    %52 = tpu.matmul %50, %51, %cst_18 {dimension_numbers = #tpu.dot_dimension_numbers<[1], [0], [0], [1], [0, 0, 1, 1], [], []>} : vector<16x64xf32>, vector<64x64xf32>, vector<16x64xf32> -> vector<16x64xf32>
    %53 = vector.extract_strided_slice %10 {offsets = [192, 0], sizes = [1, 64], strides = [1, 1]} : vector<199x64xf32> to vector<1x64xf32>
    %54 = vector.broadcast %53 : vector<1x64xf32> to vector<16x64xf32>
    %55 = arith.addf %52, %54 : vector<16x64xf32>
    %56 = arith.addf %5, %55 : vector<16x64xf32>
    %57 = vector.extract_strided_slice %10 {offsets = [193, 0], sizes = [1, 64], strides = [1, 1]} : vector<199x64xf32> to vector<1x64xf32>
    %58 = vector.extract_strided_slice %10 {offsets = [194, 0], sizes = [1, 64], strides = [1, 1]} : vector<199x64xf32> to vector<1x64xf32>
    %cst_19 = arith.constant dense<0.000000e+00> : vector<16xf32>
    %59 = vector.multi_reduction <add>, %56, %cst_19 [1] : vector<16x64xf32> to vector<16xf32>
    %60 = vector.shape_cast %59 : vector<16xf32> to vector<16x1xf32>
    %cst_20 = arith.constant 6.400000e+01 : f32
    %61 = vector.broadcast %cst_20 : f32 to vector<16x1xf32>
    %62 = arith.divf %60, %61 : vector<16x1xf32>
    %63 = vector.broadcast %62 : vector<16x1xf32> to vector<16x64xf32>
    %64 = arith.subf %56, %63 : vector<16x64xf32>
    %65 = arith.mulf %64, %64 : vector<16x64xf32>
    %cst_21 = arith.constant dense<0.000000e+00> : vector<16xf32>
    %66 = vector.multi_reduction <add>, %65, %cst_21 [1] : vector<16x64xf32> to vector<16xf32>
    %67 = vector.shape_cast %66 : vector<16xf32> to vector<16x1xf32>
    %cst_22 = arith.constant 6.400000e+01 : f32
    %68 = vector.broadcast %cst_22 : f32 to vector<16x1xf32>
    %69 = arith.divf %67, %68 : vector<16x1xf32>
    %70 = vector.broadcast %62 : vector<16x1xf32> to vector<16x64xf32>
    %71 = arith.subf %56, %70 : vector<16x64xf32>
    %cst_23 = arith.constant 9.99999974E-6 : f32
    %72 = vector.broadcast %cst_23 : f32 to vector<16x1xf32>
    %73 = arith.addf %69, %72 : vector<16x1xf32>
    %74 = math.rsqrt %73 : vector<16x1xf32>
    %75 = vector.broadcast %74 : vector<16x1xf32> to vector<16x64xf32>
    %76 = arith.mulf %71, %75 : vector<16x64xf32>
    %77 = vector.broadcast %57 : vector<1x64xf32> to vector<16x64xf32>
    %78 = arith.mulf %76, %77 : vector<16x64xf32>
    %79 = vector.broadcast %58 : vector<1x64xf32> to vector<16x64xf32>
    %80 = arith.addf %78, %79 : vector<16x64xf32>
    %81 = vector.extract_strided_slice %10 {offsets = [64, 0], sizes = [64, 64], strides = [1, 1]} : vector<199x64xf32> to vector<64x64xf32>
    %cst_24 = arith.constant dense<0.000000e+00> : vector<16x64xf32>
    %82 = tpu.matmul %80, %81, %cst_24 {dimension_numbers = #tpu.dot_dimension_numbers<[1], [0], [0], [1], [0, 0, 1, 1], [], []>} : vector<16x64xf32>, vector<64x64xf32>, vector<16x64xf32> -> vector<16x64xf32>
    %83 = vector.extract_strided_slice %10 {offsets = [195, 0], sizes = [1, 64], strides = [1, 1]} : vector<199x64xf32> to vector<1x64xf32>
    %84 = vector.broadcast %83 : vector<1x64xf32> to vector<16x64xf32>
    %85 = arith.addf %82, %84 : vector<16x64xf32>
    %cst_25 = arith.constant 0.000000e+00 : f32
    %86 = vector.broadcast %cst_25 : f32 to vector<16x64xf32>
    %87 = arith.maximumf %85, %86 : vector<16x64xf32>
    %88 = vector.extract_strided_slice %10 {offsets = [128, 0], sizes = [64, 64], strides = [1, 1]} : vector<199x64xf32> to vector<64x64xf32>
    %cst_26 = arith.constant dense<0.000000e+00> : vector<16x64xf32>
    %89 = tpu.matmul %87, %88, %cst_26 {dimension_numbers = #tpu.dot_dimension_numbers<[1], [0], [0], [1], [0, 0, 1, 1], [], []>} : vector<16x64xf32>, vector<64x64xf32>, vector<16x64xf32> -> vector<16x64xf32>
    %90 = vector.extract_strided_slice %10 {offsets = [196, 0], sizes = [1, 64], strides = [1, 1]} : vector<199x64xf32> to vector<1x64xf32>
    %91 = vector.broadcast %90 : vector<1x64xf32> to vector<16x64xf32>
    %92 = arith.addf %89, %91 : vector<16x64xf32>
    %93 = arith.addf %80, %92 : vector<16x64xf32>
    %94 = vector.extract_strided_slice %10 {offsets = [197, 0], sizes = [1, 64], strides = [1, 1]} : vector<199x64xf32> to vector<1x64xf32>
    %95 = vector.extract_strided_slice %10 {offsets = [198, 0], sizes = [1, 64], strides = [1, 1]} : vector<199x64xf32> to vector<1x64xf32>
    %cst_27 = arith.constant dense<0.000000e+00> : vector<16xf32>
    %96 = vector.multi_reduction <add>, %93, %cst_27 [1] : vector<16x64xf32> to vector<16xf32>
    %97 = vector.shape_cast %96 : vector<16xf32> to vector<16x1xf32>
    %cst_28 = arith.constant 6.400000e+01 : f32
    %98 = vector.broadcast %cst_28 : f32 to vector<16x1xf32>
    %99 = arith.divf %97, %98 : vector<16x1xf32>
    %100 = vector.broadcast %99 : vector<16x1xf32> to vector<16x64xf32>
    %101 = arith.subf %93, %100 : vector<16x64xf32>
    %102 = arith.mulf %101, %101 : vector<16x64xf32>
    %cst_29 = arith.constant dense<0.000000e+00> : vector<16xf32>
    %103 = vector.multi_reduction <add>, %102, %cst_29 [1] : vector<16x64xf32> to vector<16xf32>
    %104 = vector.shape_cast %103 : vector<16xf32> to vector<16x1xf32>
    %cst_30 = arith.constant 6.400000e+01 : f32
    %105 = vector.broadcast %cst_30 : f32 to vector<16x1xf32>
    %106 = arith.divf %104, %105 : vector<16x1xf32>
    %107 = vector.broadcast %99 : vector<16x1xf32> to vector<16x64xf32>
    %108 = arith.subf %93, %107 : vector<16x64xf32>
    %cst_31 = arith.constant 9.99999974E-6 : f32
    %109 = vector.broadcast %cst_31 : f32 to vector<16x1xf32>
    %110 = arith.addf %106, %109 : vector<16x1xf32>
    %111 = math.rsqrt %110 : vector<16x1xf32>
    %112 = vector.broadcast %111 : vector<16x1xf32> to vector<16x64xf32>
    %113 = arith.mulf %108, %112 : vector<16x64xf32>
    %114 = vector.broadcast %94 : vector<1x64xf32> to vector<16x64xf32>
    %115 = arith.mulf %113, %114 : vector<16x64xf32>
    %116 = vector.broadcast %95 : vector<1x64xf32> to vector<16x64xf32>
    %117 = arith.addf %115, %116 : vector<16x64xf32>
    %c1 = arith.constant 1 : index
    %c0_32 = arith.constant 0 : index
    %c0_33 = arith.constant 0 : index
    %118 = vector.load %arg4[%c1, %c0_32, %c0_33] : memref<3x65x256xf32, #tpu.memory_space<vmem>>, vector<1x65x256xf32>
    %119 = vector.shape_cast %118 : vector<1x65x256xf32> to vector<65x256xf32>
    %c1_34 = arith.constant 1 : index
    %c0_35 = arith.constant 0 : index
    %c0_36 = arith.constant 0 : index
    %120 = vector.load %arg5[%c1_34, %c0_35, %c0_36] : memref<3x199x64xf32, #tpu.memory_space<vmem>>, vector<1x199x64xf32>
    %121 = vector.shape_cast %120 : vector<1x199x64xf32> to vector<199x64xf32>
    %122 = vector.extract_strided_slice %119 {offsets = [0, 0], sizes = [64, 256], strides = [1, 1]} : vector<65x256xf32> to vector<64x256xf32>
    %cst_37 = arith.constant dense<0.000000e+00> : vector<16x256xf32>
    %123 = tpu.matmul %117, %122, %cst_37 {dimension_numbers = #tpu.dot_dimension_numbers<[1], [0], [0], [1], [0, 0, 1, 1], [], []>} : vector<16x64xf32>, vector<64x256xf32>, vector<16x256xf32> -> vector<16x256xf32>
    %124 = vector.extract_strided_slice %119 {offsets = [64, 0], sizes = [1, 256], strides = [1, 1]} : vector<65x256xf32> to vector<1x256xf32>
    %125 = vector.broadcast %124 : vector<1x256xf32> to vector<16x256xf32>
    %126 = arith.addf %123, %125 : vector<16x256xf32>
    %127 = vector.extract_strided_slice %126 {offsets = [0, 0], sizes = [16, 16], strides = [1, 1]} : vector<16x256xf32> to vector<16x16xf32>
    %128 = vector.extract_strided_slice %126 {offsets = [0, 16], sizes = [16, 16], strides = [1, 1]} : vector<16x256xf32> to vector<16x16xf32>
    %129 = vector.extract_strided_slice %126 {offsets = [0, 32], sizes = [16, 16], strides = [1, 1]} : vector<16x256xf32> to vector<16x16xf32>
    %130 = vector.extract_strided_slice %126 {offsets = [0, 48], sizes = [16, 16], strides = [1, 1]} : vector<16x256xf32> to vector<16x16xf32>
    %131 = tpu.concatenate %127, %128, %129, %130 in 0 : vector<16x16xf32>, vector<16x16xf32>, vector<16x16xf32>, vector<16x16xf32> -> vector<64x16xf32>
    %132 = vector.extract_strided_slice %126 {offsets = [0, 64], sizes = [16, 16], strides = [1, 1]} : vector<16x256xf32> to vector<16x16xf32>
    %133 = vector.extract_strided_slice %126 {offsets = [0, 80], sizes = [16, 16], strides = [1, 1]} : vector<16x256xf32> to vector<16x16xf32>
    %134 = vector.extract_strided_slice %126 {offsets = [0, 96], sizes = [16, 16], strides = [1, 1]} : vector<16x256xf32> to vector<16x16xf32>
    %135 = vector.extract_strided_slice %126 {offsets = [0, 112], sizes = [16, 16], strides = [1, 1]} : vector<16x256xf32> to vector<16x16xf32>
    %136 = tpu.concatenate %132, %133, %134, %135 in 0 : vector<16x16xf32>, vector<16x16xf32>, vector<16x16xf32>, vector<16x16xf32> -> vector<64x16xf32>
    %137 = vector.extract_strided_slice %126 {offsets = [0, 128], sizes = [16, 16], strides = [1, 1]} : vector<16x256xf32> to vector<16x16xf32>
    %138 = vector.extract_strided_slice %126 {offsets = [0, 144], sizes = [16, 16], strides = [1, 1]} : vector<16x256xf32> to vector<16x16xf32>
    %139 = vector.extract_strided_slice %126 {offsets = [0, 160], sizes = [16, 16], strides = [1, 1]} : vector<16x256xf32> to vector<16x16xf32>
    %140 = vector.extract_strided_slice %126 {offsets = [0, 176], sizes = [16, 16], strides = [1, 1]} : vector<16x256xf32> to vector<16x16xf32>
    %141 = tpu.concatenate %137, %138, %139, %140 in 0 : vector<16x16xf32>, vector<16x16xf32>, vector<16x16xf32>, vector<16x16xf32> -> vector<64x16xf32>
    %cst_38 = arith.constant dense<0.000000e+00> : vector<64x64xf32>
    %142 = tpu.matmul %131, %136, %cst_38 {dimension_numbers = #tpu.dot_dimension_numbers<[1], [1], [0], [0], [0, 0, 1, 0], [], []>} : vector<64x16xf32>, vector<64x16xf32>, vector<64x64xf32> -> vector<64x64xf32>
    %cst_39 = arith.constant 2.500000e-01 : f32
    %143 = vector.broadcast %cst_39 : f32 to vector<64x64xf32>
    %144 = arith.mulf %142, %143 : vector<64x64xf32>
    %145 = arith.addf %144, %6 : vector<64x64xf32>
    %cst_40 = arith.constant dense<0xFF800000> : vector<64xf32>
    %146 = vector.multi_reduction <maximumf>, %145, %cst_40 [1] : vector<64x64xf32> to vector<64xf32>
    %147 = vector.shape_cast %146 : vector<64xf32> to vector<64x1xf32>
    %148 = vector.broadcast %147 : vector<64x1xf32> to vector<64x64xf32>
    %149 = arith.subf %145, %148 : vector<64x64xf32>
    %150 = math.exp %149 : vector<64x64xf32>
    %cst_41 = arith.constant dense<0.000000e+00> : vector<64xf32>
    %151 = vector.multi_reduction <add>, %150, %cst_41 [1] : vector<64x64xf32> to vector<64xf32>
    %152 = vector.shape_cast %151 : vector<64xf32> to vector<64x1xf32>
    %153 = tpu.reciprocal %152 {approx = true} : vector<64x1xf32> -> vector<64x1xf32>
    %154 = vector.broadcast %153 : vector<64x1xf32> to vector<64x64xf32>
    %155 = arith.mulf %150, %154 : vector<64x64xf32>
    %cst_42 = arith.constant dense<0.000000e+00> : vector<64x16xf32>
    %156 = tpu.matmul %155, %141, %cst_42 {dimension_numbers = #tpu.dot_dimension_numbers<[1], [0], [0], [1], [0, 0, 1, 1], [], []>} : vector<64x64xf32>, vector<64x16xf32>, vector<64x16xf32> -> vector<64x16xf32>
    %157 = vector.extract_strided_slice %156 {offsets = [0, 0], sizes = [16, 16], strides = [1, 1]} : vector<64x16xf32> to vector<16x16xf32>
    %158 = vector.extract_strided_slice %156 {offsets = [16, 0], sizes = [16, 16], strides = [1, 1]} : vector<64x16xf32> to vector<16x16xf32>
    %159 = vector.extract_strided_slice %156 {offsets = [32, 0], sizes = [16, 16], strides = [1, 1]} : vector<64x16xf32> to vector<16x16xf32>
    %160 = vector.extract_strided_slice %156 {offsets = [48, 0], sizes = [16, 16], strides = [1, 1]} : vector<64x16xf32> to vector<16x16xf32>
    %161 = tpu.concatenate %157, %158, %159, %160 in 1 : vector<16x16xf32>, vector<16x16xf32>, vector<16x16xf32>, vector<16x16xf32> -> vector<16x64xf32>
    %162 = vector.extract_strided_slice %121 {offsets = [0, 0], sizes = [64, 64], strides = [1, 1]} : vector<199x64xf32> to vector<64x64xf32>
    %cst_43 = arith.constant dense<0.000000e+00> : vector<16x64xf32>
    %163 = tpu.matmul %161, %162, %cst_43 {dimension_numbers = #tpu.dot_dimension_numbers<[1], [0], [0], [1], [0, 0, 1, 1], [], []>} : vector<16x64xf32>, vector<64x64xf32>, vector<16x64xf32> -> vector<16x64xf32>
    %164 = vector.extract_strided_slice %121 {offsets = [192, 0], sizes = [1, 64], strides = [1, 1]} : vector<199x64xf32> to vector<1x64xf32>
    %165 = vector.broadcast %164 : vector<1x64xf32> to vector<16x64xf32>
    %166 = arith.addf %163, %165 : vector<16x64xf32>
    %167 = arith.addf %117, %166 : vector<16x64xf32>
    %168 = vector.extract_strided_slice %121 {offsets = [193, 0], sizes = [1, 64], strides = [1, 1]} : vector<199x64xf32> to vector<1x64xf32>
    %169 = vector.extract_strided_slice %121 {offsets = [194, 0], sizes = [1, 64], strides = [1, 1]} : vector<199x64xf32> to vector<1x64xf32>
    %cst_44 = arith.constant dense<0.000000e+00> : vector<16xf32>
    %170 = vector.multi_reduction <add>, %167, %cst_44 [1] : vector<16x64xf32> to vector<16xf32>
    %171 = vector.shape_cast %170 : vector<16xf32> to vector<16x1xf32>
    %cst_45 = arith.constant 6.400000e+01 : f32
    %172 = vector.broadcast %cst_45 : f32 to vector<16x1xf32>
    %173 = arith.divf %171, %172 : vector<16x1xf32>
    %174 = vector.broadcast %173 : vector<16x1xf32> to vector<16x64xf32>
    %175 = arith.subf %167, %174 : vector<16x64xf32>
    %176 = arith.mulf %175, %175 : vector<16x64xf32>
    %cst_46 = arith.constant dense<0.000000e+00> : vector<16xf32>
    %177 = vector.multi_reduction <add>, %176, %cst_46 [1] : vector<16x64xf32> to vector<16xf32>
    %178 = vector.shape_cast %177 : vector<16xf32> to vector<16x1xf32>
    %cst_47 = arith.constant 6.400000e+01 : f32
    %179 = vector.broadcast %cst_47 : f32 to vector<16x1xf32>
    %180 = arith.divf %178, %179 : vector<16x1xf32>
    %181 = vector.broadcast %173 : vector<16x1xf32> to vector<16x64xf32>
    %182 = arith.subf %167, %181 : vector<16x64xf32>
    %cst_48 = arith.constant 9.99999974E-6 : f32
    %183 = vector.broadcast %cst_48 : f32 to vector<16x1xf32>
    %184 = arith.addf %180, %183 : vector<16x1xf32>
    %185 = math.rsqrt %184 : vector<16x1xf32>
    %186 = vector.broadcast %185 : vector<16x1xf32> to vector<16x64xf32>
    %187 = arith.mulf %182, %186 : vector<16x64xf32>
    %188 = vector.broadcast %168 : vector<1x64xf32> to vector<16x64xf32>
    %189 = arith.mulf %187, %188 : vector<16x64xf32>
    %190 = vector.broadcast %169 : vector<1x64xf32> to vector<16x64xf32>
    %191 = arith.addf %189, %190 : vector<16x64xf32>
    %192 = vector.extract_strided_slice %121 {offsets = [64, 0], sizes = [64, 64], strides = [1, 1]} : vector<199x64xf32> to vector<64x64xf32>
    %cst_49 = arith.constant dense<0.000000e+00> : vector<16x64xf32>
    %193 = tpu.matmul %191, %192, %cst_49 {dimension_numbers = #tpu.dot_dimension_numbers<[1], [0], [0], [1], [0, 0, 1, 1], [], []>} : vector<16x64xf32>, vector<64x64xf32>, vector<16x64xf32> -> vector<16x64xf32>
    %194 = vector.extract_strided_slice %121 {offsets = [195, 0], sizes = [1, 64], strides = [1, 1]} : vector<199x64xf32> to vector<1x64xf32>
    %195 = vector.broadcast %194 : vector<1x64xf32> to vector<16x64xf32>
    %196 = arith.addf %193, %195 : vector<16x64xf32>
    %cst_50 = arith.constant 0.000000e+00 : f32
    %197 = vector.broadcast %cst_50 : f32 to vector<16x64xf32>
    %198 = arith.maximumf %196, %197 : vector<16x64xf32>
    %199 = vector.extract_strided_slice %121 {offsets = [128, 0], sizes = [64, 64], strides = [1, 1]} : vector<199x64xf32> to vector<64x64xf32>
    %cst_51 = arith.constant dense<0.000000e+00> : vector<16x64xf32>
    %200 = tpu.matmul %198, %199, %cst_51 {dimension_numbers = #tpu.dot_dimension_numbers<[1], [0], [0], [1], [0, 0, 1, 1], [], []>} : vector<16x64xf32>, vector<64x64xf32>, vector<16x64xf32> -> vector<16x64xf32>
    %201 = vector.extract_strided_slice %121 {offsets = [196, 0], sizes = [1, 64], strides = [1, 1]} : vector<199x64xf32> to vector<1x64xf32>
    %202 = vector.broadcast %201 : vector<1x64xf32> to vector<16x64xf32>
    %203 = arith.addf %200, %202 : vector<16x64xf32>
    %204 = arith.addf %191, %203 : vector<16x64xf32>
    %205 = vector.extract_strided_slice %121 {offsets = [197, 0], sizes = [1, 64], strides = [1, 1]} : vector<199x64xf32> to vector<1x64xf32>
    %206 = vector.extract_strided_slice %121 {offsets = [198, 0], sizes = [1, 64], strides = [1, 1]} : vector<199x64xf32> to vector<1x64xf32>
    %cst_52 = arith.constant dense<0.000000e+00> : vector<16xf32>
    %207 = vector.multi_reduction <add>, %204, %cst_52 [1] : vector<16x64xf32> to vector<16xf32>
    %208 = vector.shape_cast %207 : vector<16xf32> to vector<16x1xf32>
    %cst_53 = arith.constant 6.400000e+01 : f32
    %209 = vector.broadcast %cst_53 : f32 to vector<16x1xf32>
    %210 = arith.divf %208, %209 : vector<16x1xf32>
    %211 = vector.broadcast %210 : vector<16x1xf32> to vector<16x64xf32>
    %212 = arith.subf %204, %211 : vector<16x64xf32>
    %213 = arith.mulf %212, %212 : vector<16x64xf32>
    %cst_54 = arith.constant dense<0.000000e+00> : vector<16xf32>
    %214 = vector.multi_reduction <add>, %213, %cst_54 [1] : vector<16x64xf32> to vector<16xf32>
    %215 = vector.shape_cast %214 : vector<16xf32> to vector<16x1xf32>
    %cst_55 = arith.constant 6.400000e+01 : f32
    %216 = vector.broadcast %cst_55 : f32 to vector<16x1xf32>
    %217 = arith.divf %215, %216 : vector<16x1xf32>
    %218 = vector.broadcast %210 : vector<16x1xf32> to vector<16x64xf32>
    %219 = arith.subf %204, %218 : vector<16x64xf32>
    %cst_56 = arith.constant 9.99999974E-6 : f32
    %220 = vector.broadcast %cst_56 : f32 to vector<16x1xf32>
    %221 = arith.addf %217, %220 : vector<16x1xf32>
    %222 = math.rsqrt %221 : vector<16x1xf32>
    %223 = vector.broadcast %222 : vector<16x1xf32> to vector<16x64xf32>
    %224 = arith.mulf %219, %223 : vector<16x64xf32>
    %225 = vector.broadcast %205 : vector<1x64xf32> to vector<16x64xf32>
    %226 = arith.mulf %224, %225 : vector<16x64xf32>
    %227 = vector.broadcast %206 : vector<1x64xf32> to vector<16x64xf32>
    %228 = arith.addf %226, %227 : vector<16x64xf32>
    %c2 = arith.constant 2 : index
    %c0_57 = arith.constant 0 : index
    %c0_58 = arith.constant 0 : index
    %229 = vector.load %arg4[%c2, %c0_57, %c0_58] : memref<3x65x256xf32, #tpu.memory_space<vmem>>, vector<1x65x256xf32>
    %230 = vector.shape_cast %229 : vector<1x65x256xf32> to vector<65x256xf32>
    %c2_59 = arith.constant 2 : index
    %c0_60 = arith.constant 0 : index
    %c0_61 = arith.constant 0 : index
    %231 = vector.load %arg5[%c2_59, %c0_60, %c0_61] : memref<3x199x64xf32, #tpu.memory_space<vmem>>, vector<1x199x64xf32>
    %232 = vector.shape_cast %231 : vector<1x199x64xf32> to vector<199x64xf32>
    %233 = vector.extract_strided_slice %230 {offsets = [0, 0], sizes = [64, 256], strides = [1, 1]} : vector<65x256xf32> to vector<64x256xf32>
    %cst_62 = arith.constant dense<0.000000e+00> : vector<16x256xf32>
    %234 = tpu.matmul %228, %233, %cst_62 {dimension_numbers = #tpu.dot_dimension_numbers<[1], [0], [0], [1], [0, 0, 1, 1], [], []>} : vector<16x64xf32>, vector<64x256xf32>, vector<16x256xf32> -> vector<16x256xf32>
    %235 = vector.extract_strided_slice %230 {offsets = [64, 0], sizes = [1, 256], strides = [1, 1]} : vector<65x256xf32> to vector<1x256xf32>
    %236 = vector.broadcast %235 : vector<1x256xf32> to vector<16x256xf32>
    %237 = arith.addf %234, %236 : vector<16x256xf32>
    %238 = vector.extract_strided_slice %237 {offsets = [0, 0], sizes = [16, 16], strides = [1, 1]} : vector<16x256xf32> to vector<16x16xf32>
    %239 = vector.extract_strided_slice %237 {offsets = [0, 16], sizes = [16, 16], strides = [1, 1]} : vector<16x256xf32> to vector<16x16xf32>
    %240 = vector.extract_strided_slice %237 {offsets = [0, 32], sizes = [16, 16], strides = [1, 1]} : vector<16x256xf32> to vector<16x16xf32>
    %241 = vector.extract_strided_slice %237 {offsets = [0, 48], sizes = [16, 16], strides = [1, 1]} : vector<16x256xf32> to vector<16x16xf32>
    %242 = tpu.concatenate %238, %239, %240, %241 in 0 : vector<16x16xf32>, vector<16x16xf32>, vector<16x16xf32>, vector<16x16xf32> -> vector<64x16xf32>
    %243 = vector.extract_strided_slice %237 {offsets = [0, 64], sizes = [16, 16], strides = [1, 1]} : vector<16x256xf32> to vector<16x16xf32>
    %244 = vector.extract_strided_slice %237 {offsets = [0, 80], sizes = [16, 16], strides = [1, 1]} : vector<16x256xf32> to vector<16x16xf32>
    %245 = vector.extract_strided_slice %237 {offsets = [0, 96], sizes = [16, 16], strides = [1, 1]} : vector<16x256xf32> to vector<16x16xf32>
    %246 = vector.extract_strided_slice %237 {offsets = [0, 112], sizes = [16, 16], strides = [1, 1]} : vector<16x256xf32> to vector<16x16xf32>
    %247 = tpu.concatenate %243, %244, %245, %246 in 0 : vector<16x16xf32>, vector<16x16xf32>, vector<16x16xf32>, vector<16x16xf32> -> vector<64x16xf32>
    %248 = vector.extract_strided_slice %237 {offsets = [0, 128], sizes = [16, 16], strides = [1, 1]} : vector<16x256xf32> to vector<16x16xf32>
    %249 = vector.extract_strided_slice %237 {offsets = [0, 144], sizes = [16, 16], strides = [1, 1]} : vector<16x256xf32> to vector<16x16xf32>
    %250 = vector.extract_strided_slice %237 {offsets = [0, 160], sizes = [16, 16], strides = [1, 1]} : vector<16x256xf32> to vector<16x16xf32>
    %251 = vector.extract_strided_slice %237 {offsets = [0, 176], sizes = [16, 16], strides = [1, 1]} : vector<16x256xf32> to vector<16x16xf32>
    %252 = tpu.concatenate %248, %249, %250, %251 in 0 : vector<16x16xf32>, vector<16x16xf32>, vector<16x16xf32>, vector<16x16xf32> -> vector<64x16xf32>
    %cst_63 = arith.constant dense<0.000000e+00> : vector<64x64xf32>
    %253 = tpu.matmul %242, %247, %cst_63 {dimension_numbers = #tpu.dot_dimension_numbers<[1], [1], [0], [0], [0, 0, 1, 0], [], []>} : vector<64x16xf32>, vector<64x16xf32>, vector<64x64xf32> -> vector<64x64xf32>
    %cst_64 = arith.constant 2.500000e-01 : f32
    %254 = vector.broadcast %cst_64 : f32 to vector<64x64xf32>
    %255 = arith.mulf %253, %254 : vector<64x64xf32>
    %256 = arith.addf %255, %6 : vector<64x64xf32>
    %cst_65 = arith.constant dense<0xFF800000> : vector<64xf32>
    %257 = vector.multi_reduction <maximumf>, %256, %cst_65 [1] : vector<64x64xf32> to vector<64xf32>
    %258 = vector.shape_cast %257 : vector<64xf32> to vector<64x1xf32>
    %259 = vector.broadcast %258 : vector<64x1xf32> to vector<64x64xf32>
    %260 = arith.subf %256, %259 : vector<64x64xf32>
    %261 = math.exp %260 : vector<64x64xf32>
    %cst_66 = arith.constant dense<0.000000e+00> : vector<64xf32>
    %262 = vector.multi_reduction <add>, %261, %cst_66 [1] : vector<64x64xf32> to vector<64xf32>
    %263 = vector.shape_cast %262 : vector<64xf32> to vector<64x1xf32>
    %264 = tpu.reciprocal %263 {approx = true} : vector<64x1xf32> -> vector<64x1xf32>
    %265 = vector.broadcast %264 : vector<64x1xf32> to vector<64x64xf32>
    %266 = arith.mulf %261, %265 : vector<64x64xf32>
    %cst_67 = arith.constant dense<0.000000e+00> : vector<64x16xf32>
    %267 = tpu.matmul %266, %252, %cst_67 {dimension_numbers = #tpu.dot_dimension_numbers<[1], [0], [0], [1], [0, 0, 1, 1], [], []>} : vector<64x64xf32>, vector<64x16xf32>, vector<64x16xf32> -> vector<64x16xf32>
    %268 = vector.extract_strided_slice %267 {offsets = [0, 0], sizes = [16, 16], strides = [1, 1]} : vector<64x16xf32> to vector<16x16xf32>
    %269 = vector.extract_strided_slice %267 {offsets = [16, 0], sizes = [16, 16], strides = [1, 1]} : vector<64x16xf32> to vector<16x16xf32>
    %270 = vector.extract_strided_slice %267 {offsets = [32, 0], sizes = [16, 16], strides = [1, 1]} : vector<64x16xf32> to vector<16x16xf32>
    %271 = vector.extract_strided_slice %267 {offsets = [48, 0], sizes = [16, 16], strides = [1, 1]} : vector<64x16xf32> to vector<16x16xf32>
    %272 = tpu.concatenate %268, %269, %270, %271 in 1 : vector<16x16xf32>, vector<16x16xf32>, vector<16x16xf32>, vector<16x16xf32> -> vector<16x64xf32>
    %273 = vector.extract_strided_slice %232 {offsets = [0, 0], sizes = [64, 64], strides = [1, 1]} : vector<199x64xf32> to vector<64x64xf32>
    %cst_68 = arith.constant dense<0.000000e+00> : vector<16x64xf32>
    %274 = tpu.matmul %272, %273, %cst_68 {dimension_numbers = #tpu.dot_dimension_numbers<[1], [0], [0], [1], [0, 0, 1, 1], [], []>} : vector<16x64xf32>, vector<64x64xf32>, vector<16x64xf32> -> vector<16x64xf32>
    %275 = vector.extract_strided_slice %232 {offsets = [192, 0], sizes = [1, 64], strides = [1, 1]} : vector<199x64xf32> to vector<1x64xf32>
    %276 = vector.broadcast %275 : vector<1x64xf32> to vector<16x64xf32>
    %277 = arith.addf %274, %276 : vector<16x64xf32>
    %278 = arith.addf %228, %277 : vector<16x64xf32>
    %279 = vector.extract_strided_slice %232 {offsets = [193, 0], sizes = [1, 64], strides = [1, 1]} : vector<199x64xf32> to vector<1x64xf32>
    %280 = vector.extract_strided_slice %232 {offsets = [194, 0], sizes = [1, 64], strides = [1, 1]} : vector<199x64xf32> to vector<1x64xf32>
    %cst_69 = arith.constant dense<0.000000e+00> : vector<16xf32>
    %281 = vector.multi_reduction <add>, %278, %cst_69 [1] : vector<16x64xf32> to vector<16xf32>
    %282 = vector.shape_cast %281 : vector<16xf32> to vector<16x1xf32>
    %cst_70 = arith.constant 6.400000e+01 : f32
    %283 = vector.broadcast %cst_70 : f32 to vector<16x1xf32>
    %284 = arith.divf %282, %283 : vector<16x1xf32>
    %285 = vector.broadcast %284 : vector<16x1xf32> to vector<16x64xf32>
    %286 = arith.subf %278, %285 : vector<16x64xf32>
    %287 = arith.mulf %286, %286 : vector<16x64xf32>
    %cst_71 = arith.constant dense<0.000000e+00> : vector<16xf32>
    %288 = vector.multi_reduction <add>, %287, %cst_71 [1] : vector<16x64xf32> to vector<16xf32>
    %289 = vector.shape_cast %288 : vector<16xf32> to vector<16x1xf32>
    %cst_72 = arith.constant 6.400000e+01 : f32
    %290 = vector.broadcast %cst_72 : f32 to vector<16x1xf32>
    %291 = arith.divf %289, %290 : vector<16x1xf32>
    %292 = vector.broadcast %284 : vector<16x1xf32> to vector<16x64xf32>
    %293 = arith.subf %278, %292 : vector<16x64xf32>
    %cst_73 = arith.constant 9.99999974E-6 : f32
    %294 = vector.broadcast %cst_73 : f32 to vector<16x1xf32>
    %295 = arith.addf %291, %294 : vector<16x1xf32>
    %296 = math.rsqrt %295 : vector<16x1xf32>
    %297 = vector.broadcast %296 : vector<16x1xf32> to vector<16x64xf32>
    %298 = arith.mulf %293, %297 : vector<16x64xf32>
    %299 = vector.broadcast %279 : vector<1x64xf32> to vector<16x64xf32>
    %300 = arith.mulf %298, %299 : vector<16x64xf32>
    %301 = vector.broadcast %280 : vector<1x64xf32> to vector<16x64xf32>
    %302 = arith.addf %300, %301 : vector<16x64xf32>
    %303 = vector.extract_strided_slice %232 {offsets = [64, 0], sizes = [64, 64], strides = [1, 1]} : vector<199x64xf32> to vector<64x64xf32>
    %cst_74 = arith.constant dense<0.000000e+00> : vector<16x64xf32>
    %304 = tpu.matmul %302, %303, %cst_74 {dimension_numbers = #tpu.dot_dimension_numbers<[1], [0], [0], [1], [0, 0, 1, 1], [], []>} : vector<16x64xf32>, vector<64x64xf32>, vector<16x64xf32> -> vector<16x64xf32>
    %305 = vector.extract_strided_slice %232 {offsets = [195, 0], sizes = [1, 64], strides = [1, 1]} : vector<199x64xf32> to vector<1x64xf32>
    %306 = vector.broadcast %305 : vector<1x64xf32> to vector<16x64xf32>
    %307 = arith.addf %304, %306 : vector<16x64xf32>
    %cst_75 = arith.constant 0.000000e+00 : f32
    %308 = vector.broadcast %cst_75 : f32 to vector<16x64xf32>
    %309 = arith.maximumf %307, %308 : vector<16x64xf32>
    %310 = vector.extract_strided_slice %232 {offsets = [128, 0], sizes = [64, 64], strides = [1, 1]} : vector<199x64xf32> to vector<64x64xf32>
    %cst_76 = arith.constant dense<0.000000e+00> : vector<16x64xf32>
    %311 = tpu.matmul %309, %310, %cst_76 {dimension_numbers = #tpu.dot_dimension_numbers<[1], [0], [0], [1], [0, 0, 1, 1], [], []>} : vector<16x64xf32>, vector<64x64xf32>, vector<16x64xf32> -> vector<16x64xf32>
    %312 = vector.extract_strided_slice %232 {offsets = [196, 0], sizes = [1, 64], strides = [1, 1]} : vector<199x64xf32> to vector<1x64xf32>
    %313 = vector.broadcast %312 : vector<1x64xf32> to vector<16x64xf32>
    %314 = arith.addf %311, %313 : vector<16x64xf32>
    %315 = arith.addf %302, %314 : vector<16x64xf32>
    %316 = vector.extract_strided_slice %232 {offsets = [197, 0], sizes = [1, 64], strides = [1, 1]} : vector<199x64xf32> to vector<1x64xf32>
    %317 = vector.extract_strided_slice %232 {offsets = [198, 0], sizes = [1, 64], strides = [1, 1]} : vector<199x64xf32> to vector<1x64xf32>
    %cst_77 = arith.constant dense<0.000000e+00> : vector<16xf32>
    %318 = vector.multi_reduction <add>, %315, %cst_77 [1] : vector<16x64xf32> to vector<16xf32>
    %319 = vector.shape_cast %318 : vector<16xf32> to vector<16x1xf32>
    %cst_78 = arith.constant 6.400000e+01 : f32
    %320 = vector.broadcast %cst_78 : f32 to vector<16x1xf32>
    %321 = arith.divf %319, %320 : vector<16x1xf32>
    %322 = vector.broadcast %321 : vector<16x1xf32> to vector<16x64xf32>
    %323 = arith.subf %315, %322 : vector<16x64xf32>
    %324 = arith.mulf %323, %323 : vector<16x64xf32>
    %cst_79 = arith.constant dense<0.000000e+00> : vector<16xf32>
    %325 = vector.multi_reduction <add>, %324, %cst_79 [1] : vector<16x64xf32> to vector<16xf32>
    %326 = vector.shape_cast %325 : vector<16xf32> to vector<16x1xf32>
    %cst_80 = arith.constant 6.400000e+01 : f32
    %327 = vector.broadcast %cst_80 : f32 to vector<16x1xf32>
    %328 = arith.divf %326, %327 : vector<16x1xf32>
    %329 = vector.broadcast %321 : vector<16x1xf32> to vector<16x64xf32>
    %330 = arith.subf %315, %329 : vector<16x64xf32>
    %cst_81 = arith.constant 9.99999974E-6 : f32
    %331 = vector.broadcast %cst_81 : f32 to vector<16x1xf32>
    %332 = arith.addf %328, %331 : vector<16x1xf32>
    %333 = math.rsqrt %332 : vector<16x1xf32>
    %334 = vector.broadcast %333 : vector<16x1xf32> to vector<16x64xf32>
    %335 = arith.mulf %330, %334 : vector<16x64xf32>
    %336 = vector.broadcast %316 : vector<1x64xf32> to vector<16x64xf32>
    %337 = arith.mulf %335, %336 : vector<16x64xf32>
    %338 = vector.broadcast %317 : vector<1x64xf32> to vector<16x64xf32>
    %339 = arith.addf %337, %338 : vector<16x64xf32>
    %c0_82 = arith.constant 0 : index
    %c0_83 = arith.constant 0 : index
    %340 = vector.load %arg2[%c0_82, %c0_83] : memref<2x16xf32, #tpu.memory_space<vmem>>, vector<2x16xf32>
    %cst_84 = arith.constant dense<0.000000e+00> : vector<2x64xf32>
    %341 = tpu.matmul %340, %339, %cst_84 {dimension_numbers = #tpu.dot_dimension_numbers<[1], [0], [0], [1], [0, 0, 1, 1], [], []>} : vector<2x16xf32>, vector<16x64xf32>, vector<2x64xf32> -> vector<2x64xf32>
    %c0_85 = arith.constant 0 : index
    %c0_86 = arith.constant 0 : index
    %342 = vector.load %arg6[%c0_85, %c0_86] : memref<65x128xf32, #tpu.memory_space<vmem>>, vector<64x128xf32>
    %cst_87 = arith.constant dense<0.000000e+00> : vector<2x128xf32>
    %343 = tpu.matmul %341, %342, %cst_87 {dimension_numbers = #tpu.dot_dimension_numbers<[1], [0], [0], [1], [0, 0, 1, 1], [], []>} : vector<2x64xf32>, vector<64x128xf32>, vector<2x128xf32> -> vector<2x128xf32>
    %c64 = arith.constant 64 : index
    %c0_88 = arith.constant 0 : index
    %344 = vector.load %arg6[%c64, %c0_88] : memref<65x128xf32, #tpu.memory_space<vmem>>, vector<1x128xf32>
    %345 = vector.broadcast %344 : vector<1x128xf32> to vector<2x128xf32>
    %346 = arith.addf %343, %345 : vector<2x128xf32>
    %c0_89 = arith.constant 0 : index
    %c0_90 = arith.constant 0 : index
    %347 = vector.load %arg7[%c0_89, %c0_90] : memref<2x128xf32, #tpu.memory_space<vmem>>, vector<2x128xf32>
    tpu.vector_store %arg7[%c0_89, %c0_90], %346 {strides = array<i32>} : memref<2x128xf32, #tpu.memory_space<vmem>>, vector<2x128xf32>,
    return
  }
}

</mosaic_0001>

<llo_original>
// kernel: transformer_forward.1
$region0: #{transformer_forward.1}
  #allocation0 [shape = 'u32[]', space=smem, size = 0x4, offset = 0x4, fixed_abs, tag = 'smem constant byte address 0x4 - core index']
  #allocation1 [shape = 'u32[144,128]{1,0:T(1,128)}', space=vmem, size = 0x12000, scoped, tag = 'internal scratch']
  %s0 = inlined_call_operand.vmem [shape: f32[16,128], index: 0, kind: input, shape index: {}]
  %s1 = inlined_call_operand.vmem [shape: f32[64,64], index: 1, kind: input, shape index: {}]
  %s2 = inlined_call_operand.vmem [shape: f32[2,16], index: 2, kind: input, shape index: {}]
  %s3 = inlined_call_operand.vmem [shape: f32[129,64], index: 3, kind: input, shape index: {}]
  %s4 = inlined_call_operand.vmem [shape: f32[3,65,256], index: 4, kind: input, shape index: {}]
  %s5 = inlined_call_operand.vmem [shape: f32[3,199,64], index: 5, kind: input, shape index: {}]
  %s6 = inlined_call_operand.vmem [shape: f32[65,128], index: 6, kind: input, shape index: {}]
  %s7 = inlined_call_operand.hbm [shape: f32[2,128], index: 7, kind: output, shape index: {}]
  %s8 = sld [smem:[#allocation0]]
  $region38: #{transformer_forward.1} parent=0
    _
  %s10 = ssub.s32 1, %s8
  %s11 = scalar_select 0, %s10, %s8
  $region1: #{transformer_forward.1} parent=0
    #allocation2 [shape = 'u8[1024]{0}', space=vmem, size = 0x400, scoped, tag = 'output window, operand 0, single buffered']
    #allocation3 [shape = 's32[1]{0}', space=sflag, size = 0x4, scoped, tag = 'scoped memory for transformer_forward.1']
    %12 = vsyncpa [#allocation3], 0
    // Predicated region
    $region2: #{transformer_forward.1} parent=1 // pred_check
      _
    $region3: #{transformer_forward.1} parent=1 // pred_check_branch
      %14 = sbr.rel (0) target = $region5
    $region4: #{transformer_forward.1} parent=1 // pred_region
      _
    $region5: #{transformer_forward.1} parent=1 // pred_fallthru
      _
    // Predicated region
    $region6: #{transformer_forward.1} parent=1 // pred_check
      _
    $region7: #{transformer_forward.1} parent=1 // pred_check_branch
      %16 = sbr.rel (0) target = $region9
    $region8: #{transformer_forward.1} parent=1 // pred_region
      _
    $region9: #{transformer_forward.1} parent=1 // pred_fallthru
      _
    // Predicated region
    $region10: #{transformer_forward.1} parent=1 // pred_check
      _
    $region11: #{transformer_forward.1} parent=1 // pred_check_branch
      %18 = sbr.rel (0) target = $region13
    $region12: #{transformer_forward.1} parent=1 // pred_region
      _
    $region13: #{transformer_forward.1} parent=1 // pred_fallthru
      _
    // Predicated region
    $region14: #{transformer_forward.1} parent=1 // pred_check
      _
    $region15: #{transformer_forward.1} parent=1 // pred_check_branch
      %20 = sbr.rel (0) target = $region17
    $region16: #{transformer_forward.1} parent=1 // pred_region
      _
    $region17: #{transformer_forward.1} parent=1 // pred_fallthru
      _
    // Predicated region
    $region18: #{transformer_forward.1} parent=1 // pred_check
      _
    $region19: #{transformer_forward.1} parent=1 // pred_check_branch
      %22 = sbr.rel (0) target = $region21
    $region20: #{transformer_forward.1} parent=1 // pred_region
      _
    $region21: #{transformer_forward.1} parent=1 // pred_fallthru
      _
    // Predicated region
    $region22: #{transformer_forward.1} parent=1 // pred_check
      _
    $region23: #{transformer_forward.1} parent=1 // pred_check_branch
      %24 = sbr.rel (0) target = $region25
    $region24: #{transformer_forward.1} parent=1 // pred_region
      _
    $region25: #{transformer_forward.1} parent=1 // pred_fallthru
      _
    // Predicated region
    $region26: #{transformer_forward.1} parent=1 // pred_check
      _
    $region27: #{transformer_forward.1} parent=1 // pred_check_branch
      %26 = sbr.rel (0) target = $region29
    $region28: #{transformer_forward.1} parent=1 // pred_region
      _
    $region29: #{transformer_forward.1} parent=1 // pred_fallthru
      _
    %v27 = vld [vmem:[%s0] sm:$0xff]
    %v28 = vld [vmem:[%s0 + $0x8] sm:$0xff]
    %v29 = vld [vmem:[%s3] sm:$0xff]
    %v30 = vld [vmem:[%s3 + $0x8] sm:$0xff]
    %v31 = vld [vmem:[%s3 + $0x10] sm:$0xff]
    %v32 = vld [vmem:[%s3 + $0x18] sm:$0xff]
    %v33 = vld [vmem:[%s3 + $0x20] sm:$0xff]
    %v34 = vld [vmem:[%s3 + $0x28] sm:$0xff]
    %v35 = vld [vmem:[%s3 + $0x30] sm:$0xff]
    %v36 = vld [vmem:[%s3 + $0x38] sm:$0xff]
    %v37 = vld [vmem:[%s3 + $0x40] sm:$0xff]
    %v38 = vld [vmem:[%s3 + $0x48] sm:$0xff]
    %v39 = vld [vmem:[%s3 + $0x50] sm:$0xff]
    %v40 = vld [vmem:[%s3 + $0x58] sm:$0xff]
    %v41 = vld [vmem:[%s3 + $0x60] sm:$0xff]
    %v42 = vld [vmem:[%s3 + $0x68] sm:$0xff]
    %v43 = vld [vmem:[%s3 + $0x70] sm:$0xff]
    %v44 = vld [vmem:[%s3 + $0x78] sm:$0xff]
    %v45 = vld [vmem:[%s3 + $0x80] sm:$0x1]
    %v46 = vlaneseq
    %v47 = vshrl.u32 %v46, 7
    %v48 = vsub.s32 0, %v47
    %v49 = vrot.slane %v45, %v48
    %50 = vmatprep.subr.mxu0 0.0
    %51 = vmatpush1.msra.mxu0 %v44
    %52 = vmatprep.subr.mxu0 0.0
    %53 = vmatpush1.msra.mxu0 %v43
    %54 = vmatprep.subr.mxu0 0.0
    %55 = vmatpush1.msra.mxu0 %v42
    %56 = vmatprep.subr.mxu0 0.0
    %57 = vmatpush1.msra.mxu0 %v41
    %58 = vmatprep.subr.mxu0 0.0
    %59 = vmatpush1.msra.mxu0 %v40
    %60 = vmatprep.subr.mxu0 0.0
    %61 = vmatpush1.msra.mxu0 %v39
    %62 = vmatprep.subr.mxu0 0.0
    %63 = vmatpush1.msra.mxu0 %v38
    %64 = vmatprep.subr.mxu0 0.0
    %65 = vmatpush1.msra.mxu0 %v37
    %66 = vmatprep.subr.mxu0 0.0
    %67 = vmatpush1.msra.mxu0 %v36
    %68 = vmatprep.subr.mxu0 0.0
    %69 = vmatpush1.msra.mxu0 %v35
    %70 = vmatprep.subr.mxu0 0.0
    %71 = vmatpush1.msra.mxu0 %v34
    %72 = vmatprep.subr.mxu0 0.0
    %73 = vmatpush1.msra.mxu0 %v33
    %74 = vmatprep.subr.mxu0 0.0
    %75 = vmatpush1.msra.mxu0 %v32
    %76 = vmatprep.subr.mxu0 0.0
    %77 = vmatpush1.msra.mxu0 %v31
    %78 = vmatprep.subr.mxu0 0.0
    %79 = vmatpush1.msra.mxu0 %v30
    %80 = vmatprep.subr.mxu0 0.0
    %81 = vmatpush1.msra.mxu0 %v29
    %82 = vmatprep.subr.mxu0 0.0
    %83 = vmatpush2.msra.mxu0 0.0
    %84 = vmatprep.subr.mxu0 0.0
    %85 = vmatpush2.msra.mxu0 0.0
    %86 = vmatprep.subr.mxu0 0.0
    %87 = vmatpush2.msra.mxu0 0.0
    %88 = vmatprep.subr.mxu0 0.0
    %89 = vmatpush2.msra.mxu0 0.0
    %90 = vmatprep.subr.mxu0 0.0
    %91 = vmatpush2.msra.mxu0 0.0
    %92 = vmatprep.subr.mxu0 0.0
    %93 = vmatpush2.msra.mxu0 0.0
    %94 = vmatprep.subr.mxu0 0.0
    %95 = vmatpush2.msra.mxu0 0.0
    %96 = vmatprep.subr.mxu0 0.0
    %97 = vmatpush2.msra.mxu0 0.0
    %98 = vmatprep.subr.mxu0 0.0
    %99 = vmatpush2.msra.mxu0 0.0
    %100 = vmatprep.subr.mxu0 0.0
    %101 = vmatpush2.msra.mxu0 0.0
    %102 = vmatprep.subr.mxu0 0.0
    %103 = vmatpush2.msra.mxu0 0.0
    %104 = vmatprep.subr.mxu0 0.0
    %105 = vmatpush2.msra.mxu0 0.0
    %106 = vmatprep.subr.mxu0 0.0
    %107 = vmatpush2.msra.mxu0 0.0
    %108 = vmatprep.subr.mxu0 0.0
    %109 = vmatpush2.msra.mxu0 0.0
    %110 = vmatprep.subr.mxu0 0.0
    %111 = vmatpush2.msra.mxu0 0.0
    %112 = vmatprep.subr.mxu0 0.0
    %113 = vmatpush2.msra.mxu0 0.0
    %114 = vmatprep.mubr.f32.mxu0 0.0
    %115 = vmatmul.mubr.f32.gmra.mxu0 %v27
    %v116 = vpop.f32.mrf.mxu0
    %v117 = vadd.f32 %v49, %v116
    %v118 = vpop.f32.mrf.mxu0
    %119 = vmatprep.mubr.f32.mxu0 0.0
    %120 = vmatmul.mubr.f32.gmra.mxu0 %v28
    %v121 = vpop.f32.mrf.mxu0
    %v122 = vadd.f32 %v49, %v121
    %v123 = vpop.f32.mrf.mxu0
    %124 = vdwg.mxu0
    %v125 = vld [vmem:[%s1] sm:$0xff]
    %v126 = vld [vmem:[%s1 + $0x8] sm:$0xff]
    %v127 = vld [vmem:[%s1 + $0x10] sm:$0xff]
    %v128 = vld [vmem:[%s1 + $0x18] sm:$0xff]
    %v129 = vld [vmem:[%s1 + $0x20] sm:$0xff]
    %v130 = vld [vmem:[%s1 + $0x28] sm:$0xff]
    %v131 = vld [vmem:[%s1 + $0x30] sm:$0xff]
    %v132 = vld [vmem:[%s1 + $0x38] sm:$0xff]
    %v133 = vld [vmem:[%s4] sm:$0xff]
    %v134 = vld [vmem:[%s4 + $0x8] sm:$0xff]
    %v135 = vld [vmem:[%s4 + $0x10] sm:$0xff]
    %v136 = vld [vmem:[%s4 + $0x18] sm:$0xff]
    %v137 = vld [vmem:[%s4 + $0x20] sm:$0xff]
    %v138 = vld [vmem:[%s4 + $0x28] sm:$0xff]
    %v139 = vld [vmem:[%s4 + $0x30] sm:$0xff]
    %v140 = vld [vmem:[%s4 + $0x38] sm:$0xff]
    %v141 = vld [vmem:[%s4 + $0x40] sm:$0xff]
    %v142 = vld [vmem:[%s4 + $0x48] sm:$0xff]
    %v143 = vld [vmem:[%s4 + $0x50] sm:$0xff]
    %v144 = vld [vmem:[%s4 + $0x58] sm:$0xff]
    %v145 = vld [vmem:[%s4 + $0x60] sm:$0xff]
    %v146 = vld [vmem:[%s4 + $0x68] sm:$0xff]
    %v147 = vld [vmem:[%s4 + $0x70] sm:$0xff]
    %v148 = vld [vmem:[%s4 + $0x78] sm:$0xff]
    %v149 = vld [vmem:[%s4 + $0x80] sm:$0x1]
    %v150 = vld [vmem:[%s4 + $0x88] sm:$0x1]
    %v151 = vld [vmem:[%s5] sm:$0xff]
    %v152 = vld [vmem:[%s5 + $0x8] sm:$0xff]
    %v153 = vld [vmem:[%s5 + $0x10] sm:$0xff]
    %v154 = vld [vmem:[%s5 + $0x18] sm:$0xff]
    %v155 = vld [vmem:[%s5 + $0x20] sm:$0xff]
    %v156 = vld [vmem:[%s5 + $0x28] sm:$0xff]
    %v157 = vld [vmem:[%s5 + $0x30] sm:$0xff]
    %v158 = vld [vmem:[%s5 + $0x38] sm:$0xff]
    %v159 = vld [vmem:[%s5 + $0x40] sm:$0xff]
    %v160 = vld [vmem:[%s5 + $0x48] sm:$0xff]
    %v161 = vld [vmem:[%s5 + $0x50] sm:$0xff]
    %v162 = vld [vmem:[%s5 + $0x58] sm:$0xff]
    %v163 = vld [vmem:[%s5 + $0x60] sm:$0xff]
    %v164 = vld [vmem:[%s5 + $0x68] sm:$0xff]
    %v165 = vld [vmem:[%s5 + $0x70] sm:$0xff]
    %v166 = vld [vmem:[%s5 + $0x78] sm:$0xff]
    %v167 = vld [vmem:[%s5 + $0x80] sm:$0xff]
    %v168 = vld [vmem:[%s5 + $0x88] sm:$0xff]
    %v169 = vld [vmem:[%s5 + $0x90] sm:$0xff]
    %v170 = vld [vmem:[%s5 + $0x98] sm:$0xff]
    %v171 = vld [vmem:[%s5 + $0xa0] sm:$0xff]
    %v172 = vld [vmem:[%s5 + $0xa8] sm:$0xff]
    %v173 = vld [vmem:[%s5 + $0xb0] sm:$0xff]
    %v174 = vld [vmem:[%s5 + $0xb8] sm:$0xff]
    %v175 = vld [vmem:[%s5 + $0xc0] sm:$0x7f]
    %v176 = vlaneseq
    %v177 = vshrl.u32 %v176, 7
    %v178 = vsub.s32 0, %v177
    %v179 = vrot.slane %v149, %v178
    %v180 = vlaneseq
    %v181 = vshrl.u32 %v180, 7
    %v182 = vsub.s32 0, %v181
    %v183 = vrot.slane %v150, %v182
    %vm184 = vcmask 523264
    %v186 = vsel %vm184, %v117, 0
    %v189 = vsel %vm184, %v122, 0
    %191 = vmatprep.subr.mxu0 0.0
    %192 = vmatpush1.msra.mxu0 0.0
    %193 = vmatprep.subr.mxu0 0.0
    %194 = vmatpush1.msra.mxu0 0.0
    %195 = vmatprep.subr.mxu0 0.0
    %196 = vmatpush1.msra.mxu0 0.0
    %197 = vmatprep.subr.mxu0 0.0
    %198 = vmatpush1.msra.mxu0 0.0
    %199 = vmatprep.subr.mxu0 0.0
    %200 = vmatpush1.msra.mxu0 0.0
    %201 = vmatprep.subr.mxu0 0.0
    %202 = vmatpush1.msra.mxu0 0.0
    %203 = vmatprep.subr.mxu0 0.0
    %204 = vmatpush1.msra.mxu0 0.0
    %205 = vmatprep.subr.mxu0 0.0
    %206 = vmatpush1.msra.mxu0 0.0
    %207 = vmatprep.subr.mxu0 %v148
    %208 = vmatpush1.msra.mxu0 %v147
    %209 = vmatprep.subr.mxu0 %v146
    %210 = vmatpush1.msra.mxu0 %v145
    %211 = vmatprep.subr.mxu0 %v144
    %212 = vmatpush1.msra.mxu0 %v143
    %213 = vmatprep.subr.mxu0 %v142
    %214 = vmatpush1.msra.mxu0 %v141
    %215 = vmatprep.subr.mxu0 %v140
    %216 = vmatpush1.msra.mxu0 %v139
    %217 = vmatprep.subr.mxu0 %v138
    %218 = vmatpush1.msra.mxu0 %v137
    %219 = vmatprep.subr.mxu0 %v136
    %220 = vmatpush1.msra.mxu0 %v135
    %221 = vmatprep.subr.mxu0 %v134
    %222 = vmatpush1.msra.mxu0 %v133
    %223 = vmatprep.subr.mxu0 0.0
    %224 = vmatpush2.msra.mxu0 0.0
    %225 = vmatprep.subr.mxu0 0.0
    %226 = vmatpush2.msra.mxu0 0.0
    %227 = vmatprep.subr.mxu0 0.0
    %228 = vmatpush2.msra.mxu0 0.0
    %229 = vmatprep.subr.mxu0 0.0
    %230 = vmatpush2.msra.mxu0 0.0
    %231 = vmatprep.subr.mxu0 0.0
    %232 = vmatpush2.msra.mxu0 0.0
    %233 = vmatprep.subr.mxu0 0.0
    %234 = vmatpush2.msra.mxu0 0.0
    %235 = vmatprep.subr.mxu0 0.0
    %236 = vmatpush2.msra.mxu0 0.0
    %237 = vmatprep.subr.mxu0 0.0
    %238 = vmatpush2.msra.mxu0 0.0
    %239 = vmatprep.subr.mxu0 0.0
    %240 = vmatpush2.msra.mxu0 0.0
    %241 = vmatprep.subr.mxu0 0.0
    %242 = vmatpush2.msra.mxu0 0.0
    %243 = vmatprep.subr.mxu0 0.0
    %244 = vmatpush2.msra.mxu0 0.0
    %245 = vmatprep.subr.mxu0 0.0
    %246 = vmatpush2.msra.mxu0 0.0
    %247 = vmatprep.subr.mxu0 0.0
    %248 = vmatpush2.msra.mxu0 0.0
    %249 = vmatprep.subr.mxu0 0.0
    %250 = vmatpush2.msra.mxu0 0.0
    %251 = vmatprep.subr.mxu0 0.0
    %252 = vmatpush2.msra.mxu0 0.0
    %253 = vmatprep.subr.mxu0 0.0
    %254 = vmatpush2.msra.mxu0 0.0
    %255 = vmatprep.mubr.f32.mxu0 0.0
    %256 = vmatmul.mubr.f32.gmra.mxu0 %v186
    %v257 = vpop.f32.mrf.mxu0
    %v258 = vadd.f32 %v179, %v257
    %v259 = vpop.f32.mrf.mxu0
    %v260 = vadd.f32 %v183, %v259
    %261 = vmatprep.mubr.f32.mxu0 0.0
    %262 = vmatmul.mubr.f32.gmra.mxu0 %v189
    %v263 = vpop.f32.mrf.mxu0
    %v264 = vadd.f32 %v179, %v263
    %v265 = vpop.f32.mrf.mxu0
    %v266 = vadd.f32 %v183, %v265
    %267 = vdwg.mxu0
    %270 = vrot.lane.b32.xlu0 %v258, 112
    %v271 = vpop.permute.xlu0 %270
    %272 = vrot.lane.b32.xlu0 %v264, 112
    %v273 = vpop.permute.xlu0 %272
    %274 = vrot.lane.b32.xlu0 %v258, 96
    %v275 = vpop.permute.xlu0 %274
    %276 = vrot.lane.b32.xlu0 %v264, 96
    %v277 = vpop.permute.xlu0 %276
    %278 = vrot.lane.b32.xlu0 %v258, 80
    %v279 = vpop.permute.xlu0 %278
    %280 = vrot.lane.b32.xlu0 %v264, 80
    %v281 = vpop.permute.xlu0 %280
    %284 = vrot.lane.b32.xlu0 %v260, 112
    %v285 = vpop.permute.xlu0 %284
    %286 = vrot.lane.b32.xlu0 %v266, 112
    %v287 = vpop.permute.xlu0 %286
    %290 = vrot.lane.b32.xlu0 %v260, 96
    %v291 = vpop.permute.xlu0 %290
    %292 = vrot.lane.b32.xlu0 %v266, 96
    %v293 = vpop.permute.xlu0 %292
    %296 = vrot.lane.b32.xlu0 %v260, 80
    %v297 = vpop.permute.xlu0 %296
    %298 = vrot.lane.b32.xlu0 %v266, 80
    %v299 = vpop.permute.xlu0 %298
    %302 = vrot.lane.b32.xlu0 %v258, 64
    %v303 = vpop.permute.xlu0 %302
    %304 = vrot.lane.b32.xlu0 %v264, 64
    %v305 = vpop.permute.xlu0 %304
    %306 = vrot.lane.b32.xlu0 %v271, 64
    %v307 = vpop.permute.xlu0 %306
    %308 = vrot.lane.b32.xlu0 %v273, 64
    %v309 = vpop.permute.xlu0 %308
    %310 = vrot.lane.b32.xlu0 %v275, 64
    %v311 = vpop.permute.xlu0 %310
    %312 = vrot.lane.b32.xlu0 %v277, 64
    %v313 = vpop.permute.xlu0 %312
    %314 = vrot.lane.b32.xlu0 %v279, 64
    %v315 = vpop.permute.xlu0 %314
    %316 = vrot.lane.b32.xlu0 %v281, 64
    %v317 = vpop.permute.xlu0 %316
    %vm318 = vcmask 130048
    %v319 = vsel %vm318, %v258, 0
    %v321 = vsel %vm318, %v264, 0
    %v323 = vsel %vm318, %v271, 0
    %v325 = vsel %vm318, %v273, 0
    %v327 = vsel %vm318, %v275, 0
    %v329 = vsel %vm318, %v277, 0
    %v331 = vsel %vm318, %v279, 0
    %v333 = vsel %vm318, %v281, 0
    %v335 = vsel %vm318, %v303, 0
    %v337 = vsel %vm318, %v305, 0
    %v339 = vsel %vm318, %v307, 0
    %v341 = vsel %vm318, %v309, 0
    %v343 = vsel %vm318, %v311, 0
    %v345 = vsel %vm318, %v313, 0
    %v347 = vsel %vm318, %v315, 0
    %v349 = vsel %vm318, %v317, 0
    %351 = vmatprep.subr.mxu0 0.0
    %352 = vmatpush1.xpose.msra.mxu0 0.0
    %353 = vmatprep.subr.mxu0 0.0
    %354 = vmatpush1.xpose.msra.mxu0 0.0
    %355 = vmatprep.subr.mxu0 0.0
    %356 = vmatpush1.xpose.msra.mxu0 0.0
    %357 = vmatprep.subr.mxu0 0.0
    %358 = vmatpush1.xpose.msra.mxu0 0.0
    %359 = vmatprep.subr.mxu0 0.0
    %360 = vmatpush1.xpose.msra.mxu0 0.0
    %361 = vmatprep.subr.mxu0 0.0
    %362 = vmatpush1.xpose.msra.mxu0 0.0
    %363 = vmatprep.subr.mxu0 0.0
    %364 = vmatpush1.xpose.msra.mxu0 0.0
    %365 = vmatprep.subr.mxu0 0.0
    %366 = vmatpush1.xpose.msra.mxu0 0.0
    %367 = vmatprep.subr.mxu0 0.0
    %368 = vmatpush1.xpose.msra.mxu0 %v349
    %369 = vmatprep.subr.mxu0 0.0
    %370 = vmatpush1.xpose.msra.mxu0 %v347
    %371 = vmatprep.subr.mxu0 0.0
    %372 = vmatpush1.xpose.msra.mxu0 %v345
    %373 = vmatprep.subr.mxu0 0.0
    %374 = vmatpush1.xpose.msra.mxu0 %v343
    %375 = vmatprep.subr.mxu0 0.0
    %376 = vmatpush1.xpose.msra.mxu0 %v341
    %377 = vmatprep.subr.mxu0 0.0
    %378 = vmatpush1.xpose.msra.mxu0 %v339
    %379 = vmatprep.subr.mxu0 0.0
    %380 = vmatpush1.xpose.msra.mxu0 %v337
    %381 = vmatprep.subr.mxu0 0.0
    %382 = vmatpush1.xpose.msra.mxu0 %v335
    %383 = vmatprep.subr.mxu0 0.0
    %384 = vmatpush2.xpose.msra.mxu0 0.0
    %385 = vmatprep.subr.mxu0 0.0
    %386 = vmatpush2.xpose.msra.mxu0 0.0
    %387 = vmatprep.subr.mxu0 0.0
    %388 = vmatpush2.xpose.msra.mxu0 0.0
    %389 = vmatprep.subr.mxu0 0.0
    %390 = vmatpush2.xpose.msra.mxu0 0.0
    %391 = vmatprep.subr.mxu0 0.0
    %392 = vmatpush2.xpose.msra.mxu0 0.0
    %393 = vmatprep.subr.mxu0 0.0
    %394 = vmatpush2.xpose.msra.mxu0 0.0
    %395 = vmatprep.subr.mxu0 0.0
    %396 = vmatpush2.xpose.msra.mxu0 0.0
    %397 = vmatprep.subr.mxu0 0.0
    %398 = vmatpush2.xpose.msra.mxu0 0.0
    %399 = vmatprep.subr.mxu0 0.0
    %400 = vmatpush2.xpose.msra.mxu0 0.0
    %401 = vmatprep.subr.mxu0 0.0
    %402 = vmatpush2.xpose.msra.mxu0 0.0
    %403 = vmatprep.subr.mxu0 0.0
    %404 = vmatpush2.xpose.msra.mxu0 0.0
    %405 = vmatprep.subr.mxu0 0.0
    %406 = vmatpush2.xpose.msra.mxu0 0.0
    %407 = vmatprep.subr.mxu0 0.0
    %408 = vmatpush2.xpose.msra.mxu0 0.0
    %409 = vmatprep.subr.mxu0 0.0
    %410 = vmatpush2.xpose.msra.mxu0 0.0
    %411 = vmatprep.subr.mxu0 0.0
    %412 = vmatpush2.xpose.msra.mxu0 0.0
    %413 = vmatprep.subr.mxu0 0.0
    %414 = vmatpush2.xpose.msra.mxu0 0.0
    %415 = vmatprep.mubr.f32.mxu0 0.0
    %416 = vmatmul.mubr.f32.gmra.mxu0 %v319
    %v417 = vpop.f32.mrf.mxu0
    %v418 = vadd.f32 0.0, %v417
    %v419 = vpop.f32.mrf.mxu0
    %420 = vmatprep.mubr.f32.mxu0 0.0
    %421 = vmatmul.mubr.f32.gmra.mxu0 %v321
    %v422 = vpop.f32.mrf.mxu0
    %v423 = vadd.f32 0.0, %v422
    %v424 = vpop.f32.mrf.mxu0
    %425 = vmatprep.mubr.f32.mxu0 0.0
    %426 = vmatmul.mubr.f32.gmra.mxu0 %v323
    %v427 = vpop.f32.mrf.mxu0
    %v428 = vadd.f32 0.0, %v427
    %v429 = vpop.f32.mrf.mxu0
    %430 = vmatprep.mubr.f32.mxu0 0.0
    %431 = vmatmul.mubr.f32.gmra.mxu0 %v325
    %v432 = vpop.f32.mrf.mxu0
    %v433 = vadd.f32 0.0, %v432
    %v434 = vpop.f32.mrf.mxu0
    %435 = vmatprep.mubr.f32.mxu0 0.0
    %436 = vmatmul.mubr.f32.gmra.mxu0 %v327
    %v437 = vpop.f32.mrf.mxu0
    %v438 = vadd.f32 0.0, %v437
    %v439 = vpop.f32.mrf.mxu0
    %440 = vmatprep.mubr.f32.mxu0 0.0
    %441 = vmatmul.mubr.f32.gmra.mxu0 %v329
    %v442 = vpop.f32.mrf.mxu0
    %v443 = vadd.f32 0.0, %v442
    %v444 = vpop.f32.mrf.mxu0
    %445 = vmatprep.mubr.f32.mxu0 0.0
    %446 = vmatmul.mubr.f32.gmra.mxu0 %v331
    %v447 = vpop.f32.mrf.mxu0
    %v448 = vadd.f32 0.0, %v447
    %v449 = vpop.f32.mrf.mxu0
    %450 = vmatprep.mubr.f32.mxu0 0.0
    %451 = vmatmul.mubr.f32.gmra.mxu0 %v333
    %v452 = vpop.f32.mrf.mxu0
    %v453 = vadd.f32 0.0, %v452
    %v454 = vpop.f32.mrf.mxu0
    %455 = vdwg.mxu0
    %v456 = vmul.f32 %v418, 0.25
    %v457 = vmul.f32 %v423, 0.25
    %v458 = vmul.f32 %v428, 0.25
    %v459 = vmul.f32 %v433, 0.25
    %v460 = vmul.f32 %v438, 0.25
    %v461 = vmul.f32 %v443, 0.25
    %v462 = vmul.f32 %v448, 0.25
    %v463 = vmul.f32 %v453, 0.25
    %v464 = vadd.f32 %v456, %v125
    %v465 = vadd.f32 %v457, %v126
    %v466 = vadd.f32 %v458, %v127
    %v467 = vadd.f32 %v459, %v128
    %v468 = vadd.f32 %v460, %v129
    %v469 = vadd.f32 %v461, %v130
    %v470 = vadd.f32 %v462, %v131
    %v471 = vadd.f32 %v463, %v132
    %v472 = vsel %vm184, %v464, -inf
    %473 = vmax.xlane.f32.xlu0 %v472
    %v474 = vpop.xlane.xlu0 %473
    %v475 = vsel %vm184, %v465, -inf
    %476 = vmax.xlane.f32.xlu0 %v475
    %v477 = vpop.xlane.xlu0 %476
    %v478 = vsel %vm184, %v466, -inf
    %479 = vmax.xlane.f32.xlu0 %v478
    %v480 = vpop.xlane.xlu0 %479
    %v481 = vsel %vm184, %v467, -inf
    %482 = vmax.xlane.f32.xlu0 %v481
    %v483 = vpop.xlane.xlu0 %482
    %v484 = vsel %vm184, %v468, -inf
    %485 = vmax.xlane.f32.xlu0 %v484
    %v486 = vpop.xlane.xlu0 %485
    %v487 = vsel %vm184, %v469, -inf
    %488 = vmax.xlane.f32.xlu0 %v487
    %v489 = vpop.xlane.xlu0 %488
    %v490 = vsel %vm184, %v470, -inf
    %491 = vmax.xlane.f32.xlu0 %v490
    %v492 = vpop.xlane.xlu0 %491
    %v493 = vsel %vm184, %v471, -inf
    %494 = vmax.xlane.f32.xlu0 %v493
    %v495 = vpop.xlane.xlu0 %494
    %v496 = vsub.f32 %v464, %v474
    %v497 = vsub.f32 %v465, %v477
    %v498 = vsub.f32 %v466, %v480
    %v499 = vsub.f32 %v467, %v483
    %v500 = vsub.f32 %v468, %v486
    %v501 = vsub.f32 %v469, %v489
    %v502 = vsub.f32 %v470, %v492
    %v503 = vsub.f32 %v471, %v495
    %v504 = vmul.f32 %v496, 1.442695
    %v505 = vpow.pop %v504
    %v506 = vmul.f32 %v497, 1.442695
    %v507 = vpow.pop %v506
    %v508 = vmul.f32 %v498, 1.442695
    %v509 = vpow.pop %v508
    %v510 = vmul.f32 %v499, 1.442695
    %v511 = vpow.pop %v510
    %v512 = vmul.f32 %v500, 1.442695
    %v513 = vpow.pop %v512
    %v514 = vmul.f32 %v501, 1.442695
    %v515 = vpow.pop %v514
    %v516 = vmul.f32 %v502, 1.442695
    %v517 = vpow.pop %v516
    %v518 = vmul.f32 %v503, 1.442695
    %v519 = vpow.pop %v518
    %v520 = vsel %vm184, %v505, 0.0
    %521 = vadd.xlane.f32.xlu0 %v520
    %v522 = vpop.xlane.xlu0 %521
    %v523 = vsel %vm184, %v507, 0.0
    %524 = vadd.xlane.f32.xlu0 %v523
    %v525 = vpop.xlane.xlu0 %524
    %v526 = vsel %vm184, %v509, 0.0
    %527 = vadd.xlane.f32.xlu0 %v526
    %v528 = vpop.xlane.xlu0 %527
    %v529 = vsel %vm184, %v511, 0.0
    %530 = vadd.xlane.f32.xlu0 %v529
    %v531 = vpop.xlane.xlu0 %530
    %v532 = vsel %vm184, %v513, 0.0
    %533 = vadd.xlane.f32.xlu0 %v532
    %v534 = vpop.xlane.xlu0 %533
    %v535 = vsel %vm184, %v515, 0.0
    %536 = vadd.xlane.f32.xlu0 %v535
    %v537 = vpop.xlane.xlu0 %536
    %v538 = vsel %vm184, %v517, 0.0
    %539 = vadd.xlane.f32.xlu0 %v538
    %v540 = vpop.xlane.xlu0 %539
    %v541 = vsel %vm184, %v519, 0.0
    %542 = vadd.xlane.f32.xlu0 %v541
    %v543 = vpop.xlane.xlu0 %542
    %v544 = vrcp.pop %v522
    %v545 = vrcp.pop %v525
    %v546 = vrcp.pop %v528
    %v547 = vrcp.pop %v531
    %v548 = vrcp.pop %v534
    %v549 = vrcp.pop %v537
    %v550 = vrcp.pop %v540
    %v551 = vrcp.pop %v543
    %v552 = vmul.f32 %v505, %v544
    %v553 = vmul.f32 %v507, %v545
    %v554 = vmul.f32 %v509, %v546
    %v555 = vmul.f32 %v511, %v547
    %v556 = vmul.f32 %v513, %v548
    %v557 = vmul.f32 %v515, %v549
    %v558 = vmul.f32 %v517, %v550
    %v559 = vmul.f32 %v519, %v551
    %v561 = vsel %vm184, %v552, 0
    %v564 = vsel %vm184, %v553, 0
    %v567 = vsel %vm184, %v554, 0
    %v570 = vsel %vm184, %v555, 0
    %v573 = vsel %vm184, %v556, 0
    %v576 = vsel %vm184, %v557, 0
    %v579 = vsel %vm184, %v558, 0
    %v582 = vsel %vm184, %v559, 0
    %584 = vmatprep.subr.mxu0 0.0
    %585 = vmatpush1.msra.mxu0 0.0
    %586 = vmatprep.subr.mxu0 0.0
    %587 = vmatpush1.msra.mxu0 0.0
    %588 = vmatprep.subr.mxu0 0.0
    %589 = vmatpush1.msra.mxu0 0.0
    %590 = vmatprep.subr.mxu0 0.0
    %591 = vmatpush1.msra.mxu0 0.0
    %592 = vmatprep.subr.mxu0 0.0
    %593 = vmatpush1.msra.mxu0 0.0
    %594 = vmatprep.subr.mxu0 0.0
    %595 = vmatpush1.msra.mxu0 0.0
    %596 = vmatprep.subr.mxu0 0.0
    %597 = vmatpush1.msra.mxu0 0.0
    %598 = vmatprep.subr.mxu0 0.0
    %599 = vmatpush1.msra.mxu0 0.0
    %600 = vmatprep.subr.mxu0 0.0
    %601 = vmatpush1.msra.mxu0 %v299
    %602 = vmatprep.subr.mxu0 0.0
    %603 = vmatpush1.msra.mxu0 %v297
    %604 = vmatprep.subr.mxu0 0.0
    %605 = vmatpush1.msra.mxu0 %v293
    %606 = vmatprep.subr.mxu0 0.0
    %607 = vmatpush1.msra.mxu0 %v291
    %608 = vmatprep.subr.mxu0 0.0
    %609 = vmatpush1.msra.mxu0 %v287
    %610 = vmatprep.subr.mxu0 0.0
    %611 = vmatpush1.msra.mxu0 %v285
    %612 = vmatprep.subr.mxu0 0.0
    %613 = vmatpush1.msra.mxu0 %v266
    %614 = vmatprep.subr.mxu0 0.0
    %615 = vmatpush1.msra.mxu0 %v260
    %616 = vmatprep.subr.mxu0 0.0
    %617 = vmatpush2.msra.mxu0 0.0
    %618 = vmatprep.subr.mxu0 0.0
    %619 = vmatpush2.msra.mxu0 0.0
    %620 = vmatprep.subr.mxu0 0.0
    %621 = vmatpush2.msra.mxu0 0.0
    %622 = vmatprep.subr.mxu0 0.0
    %623 = vmatpush2.msra.mxu0 0.0
    %624 = vmatprep.subr.mxu0 0.0
    %625 = vmatpush2.msra.mxu0 0.0
    %626 = vmatprep.subr.mxu0 0.0
    %627 = vmatpush2.msra.mxu0 0.0
    %628 = vmatprep.subr.mxu0 0.0
    %629 = vmatpush2.msra.mxu0 0.0
    %630 = vmatprep.subr.mxu0 0.0
    %631 = vmatpush2.msra.mxu0 0.0
    %632 = vmatprep.subr.mxu0 0.0
    %633 = vmatpush2.msra.mxu0 0.0
    %634 = vmatprep.subr.mxu0 0.0
    %635 = vmatpush2.msra.mxu0 0.0
    %636 = vmatprep.subr.mxu0 0.0
    %637 = vmatpush2.msra.mxu0 0.0
    %638 = vmatprep.subr.mxu0 0.0
    %639 = vmatpush2.msra.mxu0 0.0
    %640 = vmatprep.subr.mxu0 0.0
    %641 = vmatpush2.msra.mxu0 0.0
    %642 = vmatprep.subr.mxu0 0.0
    %643 = vmatpush2.msra.mxu0 0.0
    %644 = vmatprep.subr.mxu0 0.0
    %645 = vmatpush2.msra.mxu0 0.0
    %646 = vmatprep.subr.mxu0 0.0
    %647 = vmatpush2.msra.mxu0 0.0
    %648 = vmatprep.mubr.f32.mxu0 0.0
    %649 = vmatmul.mubr.f32.gmra.mxu0 %v561
    %v650 = vpop.f32.mrf.mxu0
    %v651 = vadd.f32 0.0, %v650
    %v652 = vpop.f32.mrf.mxu0
    %653 = vmatprep.mubr.f32.mxu0 0.0
    %654 = vmatmul.mubr.f32.gmra.mxu0 %v564
    %v655 = vpop.f32.mrf.mxu0
    %v656 = vadd.f32 0.0, %v655
    %v657 = vpop.f32.mrf.mxu0
    %658 = vmatprep.mubr.f32.mxu0 0.0
    %659 = vmatmul.mubr.f32.gmra.mxu0 %v567
    %v660 = vpop.f32.mrf.mxu0
    %v661 = vadd.f32 0.0, %v660
    %v662 = vpop.f32.mrf.mxu0
    %663 = vmatprep.mubr.f32.mxu0 0.0
    %664 = vmatmul.mubr.f32.gmra.mxu0 %v570
    %v665 = vpop.f32.mrf.mxu0
    %v666 = vadd.f32 0.0, %v665
    %v667 = vpop.f32.mrf.mxu0
    %668 = vmatprep.mubr.f32.mxu0 0.0
    %669 = vmatmul.mubr.f32.gmra.mxu0 %v573
    %v670 = vpop.f32.mrf.mxu0
    %v671 = vadd.f32 0.0, %v670
    %v672 = vpop.f32.mrf.mxu0
    %673 = vmatprep.mubr.f32.mxu0 0.0
    %674 = vmatmul.mubr.f32.gmra.mxu0 %v576
    %v675 = vpop.f32.mrf.mxu0
    %v676 = vadd.f32 0.0, %v675
    %v677 = vpop.f32.mrf.mxu0
    %678 = vmatprep.mubr.f32.mxu0 0.0
    %679 = vmatmul.mubr.f32.gmra.mxu0 %v579
    %v680 = vpop.f32.mrf.mxu0
    %v681 = vadd.f32 0.0, %v680
    %v682 = vpop.f32.mrf.mxu0
    %683 = vmatprep.mubr.f32.mxu0 0.0
    %684 = vmatmul.mubr.f32.gmra.mxu0 %v582
    %v685 = vpop.f32.mrf.mxu0
    %v686 = vadd.f32 0.0, %v685
    %v687 = vpop.f32.mrf.mxu0
    %688 = vdwg.mxu0
    %691 = vrot.lane.b32.xlu0 %v661, 16
    %v692 = vpop.permute.xlu0 %691
    %693 = vrot.lane.b32.xlu0 %v666, 16
    %v694 = vpop.permute.xlu0 %693
    %699 = vrot.lane.b32.xlu0 %v671, 32
    %v700 = vpop.permute.xlu0 %699
    %701 = vrot.lane.b32.xlu0 %v676, 32
    %v702 = vpop.permute.xlu0 %701
    %707 = vrot.lane.b32.xlu0 %v681, 48
    %v708 = vpop.permute.xlu0 %707
    %709 = vrot.lane.b32.xlu0 %v686, 48
    %v710 = vpop.permute.xlu0 %709
    %v713 = vsel %vm318, %v651, %v692
    %v714 = vsel %vm318, %v656, %v694
    %vm715 = vcmask 261120
    %v716 = vsel %vm715, %v713, %v700
    %v717 = vsel %vm715, %v714, %v702
    %vm718 = vcmask 392192
    %v719 = vsel %vm718, %v716, %v708
    %v720 = vsel %vm718, %v717, %v710
    %v721 = vlaneseq
    %v722 = vshrl.u32 %v721, 7
    %v723 = vsub.s32 0, %v722
    %v724 = vrot.slane %v175, %v723
    %v726 = vsel %vm184, %v719, 0
    %v729 = vsel %vm184, %v720, 0
    %731 = vmatprep.subr.mxu0 0.0
    %732 = vmatpush1.msra.mxu0 0.0
    %733 = vmatprep.subr.mxu0 0.0
    %734 = vmatpush1.msra.mxu0 0.0
    %735 = vmatprep.subr.mxu0 0.0
    %736 = vmatpush1.msra.mxu0 0.0
    %737 = vmatprep.subr.mxu0 0.0
    %738 = vmatpush1.msra.mxu0 0.0
    %739 = vmatprep.subr.mxu0 0.0
    %740 = vmatpush1.msra.mxu0 0.0
    %741 = vmatprep.subr.mxu0 0.0
    %742 = vmatpush1.msra.mxu0 0.0
    %743 = vmatprep.subr.mxu0 0.0
    %744 = vmatpush1.msra.mxu0 0.0
    %745 = vmatprep.subr.mxu0 0.0
    %746 = vmatpush1.msra.mxu0 0.0
    %747 = vmatprep.subr.mxu0 0.0
    %748 = vmatpush1.msra.mxu0 %v158
    %749 = vmatprep.subr.mxu0 0.0
    %750 = vmatpush1.msra.mxu0 %v157
    %751 = vmatprep.subr.mxu0 0.0
    %752 = vmatpush1.msra.mxu0 %v156
    %753 = vmatprep.subr.mxu0 0.0
    %754 = vmatpush1.msra.mxu0 %v155
    %755 = vmatprep.subr.mxu0 0.0
    %756 = vmatpush1.msra.mxu0 %v154
    %757 = vmatprep.subr.mxu0 0.0
    %758 = vmatpush1.msra.mxu0 %v153
    %759 = vmatprep.subr.mxu0 0.0
    %760 = vmatpush1.msra.mxu0 %v152
    %761 = vmatprep.subr.mxu0 0.0
    %762 = vmatpush1.msra.mxu0 %v151
    %763 = vmatprep.subr.mxu0 0.0
    %764 = vmatpush2.msra.mxu0 0.0
    %765 = vmatprep.subr.mxu0 0.0
    %766 = vmatpush2.msra.mxu0 0.0
    %767 = vmatprep.subr.mxu0 0.0
    %768 = vmatpush2.msra.mxu0 0.0
    %769 = vmatprep.subr.mxu0 0.0
    %770 = vmatpush2.msra.mxu0 0.0
    %771 = vmatprep.subr.mxu0 0.0
    %772 = vmatpush2.msra.mxu0 0.0
    %773 = vmatprep.subr.mxu0 0.0
    %774 = vmatpush2.msra.mxu0 0.0
    %775 = vmatprep.subr.mxu0 0.0
    %776 = vmatpush2.msra.mxu0 0.0
    %777 = vmatprep.subr.mxu0 0.0
    %778 = vmatpush2.msra.mxu0 0.0
    %779 = vmatprep.subr.mxu0 0.0
    %780 = vmatpush2.msra.mxu0 0.0
    %781 = vmatprep.subr.mxu0 0.0
    %782 = vmatpush2.msra.mxu0 0.0
    %783 = vmatprep.subr.mxu0 0.0
    %784 = vmatpush2.msra.mxu0 0.0
    %785 = vmatprep.subr.mxu0 0.0
    %786 = vmatpush2.msra.mxu0 0.0
    %787 = vmatprep.subr.mxu0 0.0
    %788 = vmatpush2.msra.mxu0 0.0
    %789 = vmatprep.subr.mxu0 0.0
    %790 = vmatpush2.msra.mxu0 0.0
    %791 = vmatprep.subr.mxu0 0.0
    %792 = vmatpush2.msra.mxu0 0.0
    %793 = vmatprep.subr.mxu0 0.0
    %794 = vmatpush2.msra.mxu0 0.0
    %795 = vmatprep.mubr.f32.mxu0 0.0
    %796 = vmatmul.mubr.f32.gmra.mxu0 %v726
    %v797 = vpop.f32.mrf.mxu0
    %v798 = vadd.f32 %v724, %v797
    %v799 = vpop.f32.mrf.mxu0
    %800 = vmatprep.mubr.f32.mxu0 0.0
    %801 = vmatmul.mubr.f32.gmra.mxu0 %v729
    %v802 = vpop.f32.mrf.mxu0
    %v803 = vadd.f32 %v724, %v802
    %v804 = vpop.f32.mrf.mxu0
    %805 = vdwg.mxu0
    %v806 = vadd.f32 %v117, %v798
    %v807 = vadd.f32 %v122, %v803
    %v808 = vsel %vm184, %v806, 0.0
    %809 = vadd.xlane.f32.xlu0 %v808
    %v810 = vpop.xlane.xlu0 %809
    %v811 = vsel %vm184, %v807, 0.0
    %812 = vadd.xlane.f32.xlu0 %v811
    %v813 = vpop.xlane.xlu0 %812
    %v814 = vrcp.pop 64.0
    %v815 = vmul.f32 %v810, %v814
    %v816 = vmul.f32 %v813, %v814
    %v817 = vsub.f32 %v806, %v815
    %v818 = vsub.f32 %v807, %v816
    %v819 = vmul.f32 %v817, %v817
    %v820 = vmul.f32 %v818, %v818
    %v821 = vsel %vm184, %v819, 0.0
    %822 = vadd.xlane.f32.xlu0 %v821
    %v823 = vpop.xlane.xlu0 %822
    %v824 = vsel %vm184, %v820, 0.0
    %825 = vadd.xlane.f32.xlu0 %v824
    %v826 = vpop.xlane.xlu0 %825
    %v827 = vmul.f32 %v823, %v814
    %v828 = vmul.f32 %v826, %v814
    %v829 = vadd.f32 %v827, 1e-05
    %v830 = vadd.f32 %v828, 1e-05
    %v831 = vrsqrt.pop %v829
    %v832 = vrsqrt.pop %v830
    %v833 = vmul.f32 %v817, %v831
    %v834 = vmul.f32 %v818, %v832
    %v835 = vlaneseq
    %v836 = vshrl.u32 %v835, 7
    %v837 = vsub.s32 1, %v836
    %v838 = vrot.slane %v175, %v837
    %v839 = vmul.f32 %v833, %v838
    %v840 = vmul.f32 %v834, %v838
    %v841 = vlaneseq
    %v842 = vshrl.u32 %v841, 7
    %v843 = vsub.s32 2, %v842
    %v844 = vrot.slane %v175, %v843
    %v845 = vadd.f32 %v839, %v844
    %v846 = vadd.f32 %v840, %v844
    %v847 = vlaneseq
    %v848 = vshrl.u32 %v847, 7
    %v849 = vsub.s32 3, %v848
    %v850 = vrot.slane %v175, %v849
    %v852 = vsel %vm184, %v845, 0
    %v855 = vsel %vm184, %v846, 0
    %857 = vmatprep.subr.mxu0 0.0
    %858 = vmatpush1.msra.mxu0 0.0
    %859 = vmatprep.subr.mxu0 0.0
    %860 = vmatpush1.msra.mxu0 0.0
    %861 = vmatprep.subr.mxu0 0.0
    %862 = vmatpush1.msra.mxu0 0.0
    %863 = vmatprep.subr.mxu0 0.0
    %864 = vmatpush1.msra.mxu0 0.0
    %865 = vmatprep.subr.mxu0 0.0
    %866 = vmatpush1.msra.mxu0 0.0
    %867 = vmatprep.subr.mxu0 0.0
    %868 = vmatpush1.msra.mxu0 0.0
    %869 = vmatprep.subr.mxu0 0.0
    %870 = vmatpush1.msra.mxu0 0.0
    %871 = vmatprep.subr.mxu0 0.0
    %872 = vmatpush1.msra.mxu0 0.0
    %873 = vmatprep.subr.mxu0 0.0
    %874 = vmatpush1.msra.mxu0 %v166
    %875 = vmatprep.subr.mxu0 0.0
    %876 = vmatpush1.msra.mxu0 %v165
    %877 = vmatprep.subr.mxu0 0.0
    %878 = vmatpush1.msra.mxu0 %v164
    %879 = vmatprep.subr.mxu0 0.0
    %880 = vmatpush1.msra.mxu0 %v163
    %881 = vmatprep.subr.mxu0 0.0
    %882 = vmatpush1.msra.mxu0 %v162
    %883 = vmatprep.subr.mxu0 0.0
    %884 = vmatpush1.msra.mxu0 %v161
    %885 = vmatprep.subr.mxu0 0.0
    %886 = vmatpush1.msra.mxu0 %v160
    %887 = vmatprep.subr.mxu0 0.0
    %888 = vmatpush1.msra.mxu0 %v159
    %889 = vmatprep.subr.mxu0 0.0
    %890 = vmatpush2.msra.mxu0 0.0
    %891 = vmatprep.subr.mxu0 0.0
    %892 = vmatpush2.msra.mxu0 0.0
    %893 = vmatprep.subr.mxu0 0.0
    %894 = vmatpush2.msra.mxu0 0.0
    %895 = vmatprep.subr.mxu0 0.0
    %896 = vmatpush2.msra.mxu0 0.0
    %897 = vmatprep.subr.mxu0 0.0
    %898 = vmatpush2.msra.mxu0 0.0
    %899 = vmatprep.subr.mxu0 0.0
    %900 = vmatpush2.msra.mxu0 0.0
    %901 = vmatprep.subr.mxu0 0.0
    %902 = vmatpush2.msra.mxu0 0.0
    %903 = vmatprep.subr.mxu0 0.0
    %904 = vmatpush2.msra.mxu0 0.0
    %905 = vmatprep.subr.mxu0 0.0
    %906 = vmatpush2.msra.mxu0 0.0
    %907 = vmatprep.subr.mxu0 0.0
    %908 = vmatpush2.msra.mxu0 0.0
    %909 = vmatprep.subr.mxu0 0.0
    %910 = vmatpush2.msra.mxu0 0.0
    %911 = vmatprep.subr.mxu0 0.0
    %912 = vmatpush2.msra.mxu0 0.0
    %913 = vmatprep.subr.mxu0 0.0
    %914 = vmatpush2.msra.mxu0 0.0
    %915 = vmatprep.subr.mxu0 0.0
    %916 = vmatpush2.msra.mxu0 0.0
    %917 = vmatprep.subr.mxu0 0.0
    %918 = vmatpush2.msra.mxu0 0.0
    %919 = vmatprep.subr.mxu0 0.0
    %920 = vmatpush2.msra.mxu0 0.0
    %921 = vmatprep.mubr.f32.mxu0 0.0
    %922 = vmatmul.mubr.f32.gmra.mxu0 %v852
    %v923 = vpop.f32.mrf.mxu0
    %v924 = vadd.f32 %v850, %v923
    %v925 = vpop.f32.mrf.mxu0
    %926 = vmatprep.mubr.f32.mxu0 0.0
    %927 = vmatmul.mubr.f32.gmra.mxu0 %v855
    %v928 = vpop.f32.mrf.mxu0
    %v929 = vadd.f32 %v850, %v928
    %v930 = vpop.f32.mrf.mxu0
    %931 = vdwg.mxu0
    %v932 = vmax.f32 %v924, 0.0
    %v933 = vmax.f32 %v929, 0.0
    %v934 = vlaneseq
    %v935 = vshrl.u32 %v934, 7
    %v936 = vsub.s32 4, %v935
    %v937 = vrot.slane %v175, %v936
    %v939 = vsel %vm184, %v932, 0
    %v942 = vsel %vm184, %v933, 0
    %944 = vmatprep.subr.mxu0 0.0
    %945 = vmatpush1.msra.mxu0 0.0
    %946 = vmatprep.subr.mxu0 0.0
    %947 = vmatpush1.msra.mxu0 0.0
    %948 = vmatprep.subr.mxu0 0.0
    %949 = vmatpush1.msra.mxu0 0.0
    %950 = vmatprep.subr.mxu0 0.0
    %951 = vmatpush1.msra.mxu0 0.0
    %952 = vmatprep.subr.mxu0 0.0
    %953 = vmatpush1.msra.mxu0 0.0
    %954 = vmatprep.subr.mxu0 0.0
    %955 = vmatpush1.msra.mxu0 0.0
    %956 = vmatprep.subr.mxu0 0.0
    %957 = vmatpush1.msra.mxu0 0.0
    %958 = vmatprep.subr.mxu0 0.0
    %959 = vmatpush1.msra.mxu0 0.0
    %960 = vmatprep.subr.mxu0 0.0
    %961 = vmatpush1.msra.mxu0 %v174
    %962 = vmatprep.subr.mxu0 0.0
    %963 = vmatpush1.msra.mxu0 %v173
    %964 = vmatprep.subr.mxu0 0.0
    %965 = vmatpush1.msra.mxu0 %v172
    %966 = vmatprep.subr.mxu0 0.0
    %967 = vmatpush1.msra.mxu0 %v171
    %968 = vmatprep.subr.mxu0 0.0
    %969 = vmatpush1.msra.mxu0 %v170
    %970 = vmatprep.subr.mxu0 0.0
    %971 = vmatpush1.msra.mxu0 %v169
    %972 = vmatprep.subr.mxu0 0.0
    %973 = vmatpush1.msra.mxu0 %v168
    %974 = vmatprep.subr.mxu0 0.0
    %975 = vmatpush1.msra.mxu0 %v167
    %976 = vmatprep.subr.mxu0 0.0
    %977 = vmatpush2.msra.mxu0 0.0
    %978 = vmatprep.subr.mxu0 0.0
    %979 = vmatpush2.msra.mxu0 0.0
    %980 = vmatprep.subr.mxu0 0.0
    %981 = vmatpush2.msra.mxu0 0.0
    %982 = vmatprep.subr.mxu0 0.0
    %983 = vmatpush2.msra.mxu0 0.0
    %984 = vmatprep.subr.mxu0 0.0
    %985 = vmatpush2.msra.mxu0 0.0
    %986 = vmatprep.subr.mxu0 0.0
    %987 = vmatpush2.msra.mxu0 0.0
    %988 = vmatprep.subr.mxu0 0.0
    %989 = vmatpush2.msra.mxu0 0.0
    %990 = vmatprep.subr.mxu0 0.0
    %991 = vmatpush2.msra.mxu0 0.0
    %992 = vmatprep.subr.mxu0 0.0
    %993 = vmatpush2.msra.mxu0 0.0
    %994 = vmatprep.subr.mxu0 0.0
    %995 = vmatpush2.msra.mxu0 0.0
    %996 = vmatprep.subr.mxu0 0.0
    %997 = vmatpush2.msra.mxu0 0.0
    %998 = vmatprep.subr.mxu0 0.0
    %999 = vmatpush2.msra.mxu0 0.0
    %1000 = vmatprep.subr.mxu0 0.0
    %1001 = vmatpush2.msra.mxu0 0.0
    %1002 = vmatprep.subr.mxu0 0.0
    %1003 = vmatpush2.msra.mxu0 0.0
    %1004 = vmatprep.subr.mxu0 0.0
    %1005 = vmatpush2.msra.mxu0 0.0
    %1006 = vmatprep.subr.mxu0 0.0
    %1007 = vmatpush2.msra.mxu0 0.0
    %1008 = vmatprep.mubr.f32.mxu0 0.0
    %1009 = vmatmul.mubr.f32.gmra.mxu0 %v939
    %v1010 = vpop.f32.mrf.mxu0
    %v1011 = vadd.f32 %v937, %v1010
    %v1012 = vpop.f32.mrf.mxu0
    %1013 = vmatprep.mubr.f32.mxu0 0.0
    %1014 = vmatmul.mubr.f32.gmra.mxu0 %v942
    %v1015 = vpop.f32.mrf.mxu0
    %v1016 = vadd.f32 %v937, %v1015
    %v1017 = vpop.f32.mrf.mxu0
    %1018 = vdwg.mxu0
    %v1019 = vadd.f32 %v845, %v1011
    %v1020 = vadd.f32 %v846, %v1016
    %v1021 = vsel %vm184, %v1019, 0.0
    %1022 = vadd.xlane.f32.xlu0 %v1021
    %v1023 = vpop.xlane.xlu0 %1022
    %v1024 = vsel %vm184, %v1020, 0.0
    %1025 = vadd.xlane.f32.xlu0 %v1024
    %v1026 = vpop.xlane.xlu0 %1025
    %v1027 = vmul.f32 %v1023, %v814
    %v1028 = vmul.f32 %v1026, %v814
    %v1029 = vsub.f32 %v1019, %v1027
    %v1030 = vsub.f32 %v1020, %v1028
    %v1031 = vmul.f32 %v1029, %v1029
    %v1032 = vmul.f32 %v1030, %v1030
    %v1033 = vsel %vm184, %v1031, 0.0
    %1034 = vadd.xlane.f32.xlu0 %v1033
    %v1035 = vpop.xlane.xlu0 %1034
    %v1036 = vsel %vm184, %v1032, 0.0
    %1037 = vadd.xlane.f32.xlu0 %v1036
    %v1038 = vpop.xlane.xlu0 %1037
    %v1039 = vmul.f32 %v1035, %v814
    %v1040 = vmul.f32 %v1038, %v814
    %v1041 = vadd.f32 %v1039, 1e-05
    %v1042 = vadd.f32 %v1040, 1e-05
    %v1043 = vrsqrt.pop %v1041
    %v1044 = vrsqrt.pop %v1042
    %v1045 = vmul.f32 %v1029, %v1043
    %v1046 = vmul.f32 %v1030, %v1044
    %v1047 = vlaneseq
    %v1048 = vshrl.u32 %v1047, 7
    %v1049 = vsub.s32 5, %v1048
    %v1050 = vrot.slane %v175, %v1049
    %v1051 = vmul.f32 %v1045, %v1050
    %v1052 = vmul.f32 %v1046, %v1050
    %v1053 = vlaneseq
    %v1054 = vshrl.u32 %v1053, 7
    %v1055 = vsub.s32 6, %v1054
    %v1056 = vrot.slane %v175, %v1055
    %v1057 = vadd.f32 %v1051, %v1056
    %v1058 = vadd.f32 %v1052, %v1056
    %s1059 = scalar_lea.vmem %s4, 144
    %v1060 = vld [vmem:[%s1059] sm:$0xff]
    %v1061 = vld [vmem:[%s1059 + $0x8] sm:$0xff]
    %v1062 = vld [vmem:[%s1059 + $0x10] sm:$0xff]
    %v1063 = vld [vmem:[%s1059 + $0x18] sm:$0xff]
    %v1064 = vld [vmem:[%s1059 + $0x20] sm:$0xff]
    %v1065 = vld [vmem:[%s1059 + $0x28] sm:$0xff]
    %v1066 = vld [vmem:[%s1059 + $0x30] sm:$0xff]
    %v1067 = vld [vmem:[%s1059 + $0x38] sm:$0xff]
    %v1068 = vld [vmem:[%s1059 + $0x40] sm:$0xff]
    %v1069 = vld [vmem:[%s1059 + $0x48] sm:$0xff]
    %v1070 = vld [vmem:[%s1059 + $0x50] sm:$0xff]
    %v1071 = vld [vmem:[%s1059 + $0x58] sm:$0xff]
    %v1072 = vld [vmem:[%s1059 + $0x60] sm:$0xff]
    %v1073 = vld [vmem:[%s1059 + $0x68] sm:$0xff]
    %v1074 = vld [vmem:[%s1059 + $0x70] sm:$0xff]
    %v1075 = vld [vmem:[%s1059 + $0x78] sm:$0xff]
    %v1076 = vld [vmem:[%s1059 + $0x80] sm:$0x1]
    %v1077 = vld [vmem:[%s1059 + $0x88] sm:$0x1]
    %s1078 = scalar_lea.vmem %s5, 200
    %v1079 = vld [vmem:[%s1078] sm:$0xff]
    %v1080 = vld [vmem:[%s1078 + $0x8] sm:$0xff]
    %v1081 = vld [vmem:[%s1078 + $0x10] sm:$0xff]
    %v1082 = vld [vmem:[%s1078 + $0x18] sm:$0xff]
    %v1083 = vld [vmem:[%s1078 + $0x20] sm:$0xff]
    %v1084 = vld [vmem:[%s1078 + $0x28] sm:$0xff]
    %v1085 = vld [vmem:[%s1078 + $0x30] sm:$0xff]
    %v1086 = vld [vmem:[%s1078 + $0x38] sm:$0xff]
    %v1087 = vld [vmem:[%s1078 + $0x40] sm:$0xff]
    %v1088 = vld [vmem:[%s1078 + $0x48] sm:$0xff]
    %v1089 = vld [vmem:[%s1078 + $0x50] sm:$0xff]
    %v1090 = vld [vmem:[%s1078 + $0x58] sm:$0xff]
    %v1091 = vld [vmem:[%s1078 + $0x60] sm:$0xff]
    %v1092 = vld [vmem:[%s1078 + $0x68] sm:$0xff]
    %v1093 = vld [vmem:[%s1078 + $0x70] sm:$0xff]
    %v1094 = vld [vmem:[%s1078 + $0x78] sm:$0xff]
    %v1095 = vld [vmem:[%s1078 + $0x80] sm:$0xff]
    %v1096 = vld [vmem:[%s1078 + $0x88] sm:$0xff]
    %v1097 = vld [vmem:[%s1078 + $0x90] sm:$0xff]
    %v1098 = vld [vmem:[%s1078 + $0x98] sm:$0xff]
    %v1099 = vld [vmem:[%s1078 + $0xa0] sm:$0xff]
    %v1100 = vld [vmem:[%s1078 + $0xa8] sm:$0xff]
    %v1101 = vld [vmem:[%s1078 + $0xb0] sm:$0xff]
    %v1102 = vld [vmem:[%s1078 + $0xb8] sm:$0xff]
    %v1103 = vld [vmem:[%s1078 + $0xc0] sm:$0x7f]
    %v1104 = vlaneseq
    %v1105 = vshrl.u32 %v1104, 7
    %v1106 = vsub.s32 0, %v1105
    %v1107 = vrot.slane %v1076, %v1106
    %v1108 = vlaneseq
    %v1109 = vshrl.u32 %v1108, 7
    %v1110 = vsub.s32 0, %v1109
    %v1111 = vrot.slane %v1077, %v1110
    %v1113 = vsel %vm184, %v1057, 0
    %v1116 = vsel %vm184, %v1058, 0
    %1118 = vmatprep.subr.mxu0 0.0
    %1119 = vmatpush1.msra.mxu0 0.0
    %1120 = vmatprep.subr.mxu0 0.0
    %1121 = vmatpush1.msra.mxu0 0.0
    %1122 = vmatprep.subr.mxu0 0.0
    %1123 = vmatpush1.msra.mxu0 0.0
    %1124 = vmatprep.subr.mxu0 0.0
    %1125 = vmatpush1.msra.mxu0 0.0
    %1126 = vmatprep.subr.mxu0 0.0
    %1127 = vmatpush1.msra.mxu0 0.0
    %1128 = vmatprep.subr.mxu0 0.0
    %1129 = vmatpush1.msra.mxu0 0.0
    %1130 = vmatprep.subr.mxu0 0.0
    %1131 = vmatpush1.msra.mxu0 0.0
    %1132 = vmatprep.subr.mxu0 0.0
    %1133 = vmatpush1.msra.mxu0 0.0
    %1134 = vmatprep.subr.mxu0 %v1075
    %1135 = vmatpush1.msra.mxu0 %v1074
    %1136 = vmatprep.subr.mxu0 %v1073
    %1137 = vmatpush1.msra.mxu0 %v1072
    %1138 = vmatprep.subr.mxu0 %v1071
    %1139 = vmatpush1.msra.mxu0 %v1070
    %1140 = vmatprep.subr.mxu0 %v1069
    %1141 = vmatpush1.msra.mxu0 %v1068
    %1142 = vmatprep.subr.mxu0 %v1067
    %1143 = vmatpush1.msra.mxu0 %v1066
    %1144 = vmatprep.subr.mxu0 %v1065
    %1145 = vmatpush1.msra.mxu0 %v1064
    %1146 = vmatprep.subr.mxu0 %v1063
    %1147 = vmatpush1.msra.mxu0 %v1062
    %1148 = vmatprep.subr.mxu0 %v1061
    %1149 = vmatpush1.msra.mxu0 %v1060
    %1150 = vmatprep.subr.mxu0 0.0
    %1151 = vmatpush2.msra.mxu0 0.0
    %1152 = vmatprep.subr.mxu0 0.0
    %1153 = vmatpush2.msra.mxu0 0.0
    %1154 = vmatprep.subr.mxu0 0.0
    %1155 = vmatpush2.msra.mxu0 0.0
    %1156 = vmatprep.subr.mxu0 0.0
    %1157 = vmatpush2.msra.mxu0 0.0
    %1158 = vmatprep.subr.mxu0 0.0
    %1159 = vmatpush2.msra.mxu0 0.0
    %1160 = vmatprep.subr.mxu0 0.0
    %1161 = vmatpush2.msra.mxu0 0.0
    %1162 = vmatprep.subr.mxu0 0.0
    %1163 = vmatpush2.msra.mxu0 0.0
    %1164 = vmatprep.subr.mxu0 0.0
    %1165 = vmatpush2.msra.mxu0 0.0
    %1166 = vmatprep.subr.mxu0 0.0
    %1167 = vmatpush2.msra.mxu0 0.0
    %1168 = vmatprep.subr.mxu0 0.0
    %1169 = vmatpush2.msra.mxu0 0.0
    %1170 = vmatprep.subr.mxu0 0.0
    %1171 = vmatpush2.msra.mxu0 0.0
    %1172 = vmatprep.subr.mxu0 0.0
    %1173 = vmatpush2.msra.mxu0 0.0
    %1174 = vmatprep.subr.mxu0 0.0
    %1175 = vmatpush2.msra.mxu0 0.0
    %1176 = vmatprep.subr.mxu0 0.0
    %1177 = vmatpush2.msra.mxu0 0.0
    %1178 = vmatprep.subr.mxu0 0.0
    %1179 = vmatpush2.msra.mxu0 0.0
    %1180 = vmatprep.subr.mxu0 0.0
    %1181 = vmatpush2.msra.mxu0 0.0
    %1182 = vmatprep.mubr.f32.mxu0 0.0
    %1183 = vmatmul.mubr.f32.gmra.mxu0 %v1113
    %v1184 = vpop.f32.mrf.mxu0
    %v1185 = vadd.f32 %v1107, %v1184
    %v1186 = vpop.f32.mrf.mxu0
    %v1187 = vadd.f32 %v1111, %v1186
    %1188 = vmatprep.mubr.f32.mxu0 0.0
    %1189 = vmatmul.mubr.f32.gmra.mxu0 %v1116
    %v1190 = vpop.f32.mrf.mxu0
    %v1191 = vadd.f32 %v1107, %v1190
    %v1192 = vpop.f32.mrf.mxu0
    %v1193 = vadd.f32 %v1111, %v1192
    %1194 = vdwg.mxu0
    %1197 = vrot.lane.b32.xlu0 %v1185, 112
    %v1198 = vpop.permute.xlu0 %1197
    %1199 = vrot.lane.b32.xlu0 %v1191, 112
    %v1200 = vpop.permute.xlu0 %1199
    %1201 = vrot.lane.b32.xlu0 %v1185, 96
    %v1202 = vpop.permute.xlu0 %1201
    %1203 = vrot.lane.b32.xlu0 %v1191, 96
    %v1204 = vpop.permute.xlu0 %1203
    %1205 = vrot.lane.b32.xlu0 %v1185, 80
    %v1206 = vpop.permute.xlu0 %1205
    %1207 = vrot.lane.b32.xlu0 %v1191, 80
    %v1208 = vpop.permute.xlu0 %1207
    %1211 = vrot.lane.b32.xlu0 %v1187, 112
    %v1212 = vpop.permute.xlu0 %1211
    %1213 = vrot.lane.b32.xlu0 %v1193, 112
    %v1214 = vpop.permute.xlu0 %1213
    %1217 = vrot.lane.b32.xlu0 %v1187, 96
    %v1218 = vpop.permute.xlu0 %1217
    %1219 = vrot.lane.b32.xlu0 %v1193, 96
    %v1220 = vpop.permute.xlu0 %1219
    %1223 = vrot.lane.b32.xlu0 %v1187, 80
    %v1224 = vpop.permute.xlu0 %1223
    %1225 = vrot.lane.b32.xlu0 %v1193, 80
    %v1226 = vpop.permute.xlu0 %1225
    %1229 = vrot.lane.b32.xlu0 %v1185, 64
    %v1230 = vpop.permute.xlu0 %1229
    %1231 = vrot.lane.b32.xlu0 %v1191, 64
    %v1232 = vpop.permute.xlu0 %1231
    %1233 = vrot.lane.b32.xlu0 %v1198, 64
    %v1234 = vpop.permute.xlu0 %1233
    %1235 = vrot.lane.b32.xlu0 %v1200, 64
    %v1236 = vpop.permute.xlu0 %1235
    %1237 = vrot.lane.b32.xlu0 %v1202, 64
    %v1238 = vpop.permute.xlu0 %1237
    %1239 = vrot.lane.b32.xlu0 %v1204, 64
    %v1240 = vpop.permute.xlu0 %1239
    %1241 = vrot.lane.b32.xlu0 %v1206, 64
    %v1242 = vpop.permute.xlu0 %1241
    %1243 = vrot.lane.b32.xlu0 %v1208, 64
    %v1244 = vpop.permute.xlu0 %1243
    %v1245 = vsel %vm318, %v1185, 0
    %v1247 = vsel %vm318, %v1191, 0
    %v1249 = vsel %vm318, %v1198, 0
    %v1251 = vsel %vm318, %v1200, 0
    %v1253 = vsel %vm318, %v1202, 0
    %v1255 = vsel %vm318, %v1204, 0
    %v1257 = vsel %vm318, %v1206, 0
    %v1259 = vsel %vm318, %v1208, 0
    %v1261 = vsel %vm318, %v1230, 0
    %v1263 = vsel %vm318, %v1232, 0
    %v1265 = vsel %vm318, %v1234, 0
    %v1267 = vsel %vm318, %v1236, 0
    %v1269 = vsel %vm318, %v1238, 0
    %v1271 = vsel %vm318, %v1240, 0
    %v1273 = vsel %vm318, %v1242, 0
    %v1275 = vsel %vm318, %v1244, 0
    %1277 = vmatprep.subr.mxu0 0.0
    %1278 = vmatpush1.xpose.msra.mxu0 0.0
    %1279 = vmatprep.subr.mxu0 0.0
    %1280 = vmatpush1.xpose.msra.mxu0 0.0
    %1281 = vmatprep.subr.mxu0 0.0
    %1282 = vmatpush1.xpose.msra.mxu0 0.0
    %1283 = vmatprep.subr.mxu0 0.0
    %1284 = vmatpush1.xpose.msra.mxu0 0.0
    %1285 = vmatprep.subr.mxu0 0.0
    %1286 = vmatpush1.xpose.msra.mxu0 0.0
    %1287 = vmatprep.subr.mxu0 0.0
    %1288 = vmatpush1.xpose.msra.mxu0 0.0
    %1289 = vmatprep.subr.mxu0 0.0
    %1290 = vmatpush1.xpose.msra.mxu0 0.0
    %1291 = vmatprep.subr.mxu0 0.0
    %1292 = vmatpush1.xpose.msra.mxu0 0.0
    %1293 = vmatprep.subr.mxu0 0.0
    %1294 = vmatpush1.xpose.msra.mxu0 %v1275
    %1295 = vmatprep.subr.mxu0 0.0
    %1296 = vmatpush1.xpose.msra.mxu0 %v1273
    %1297 = vmatprep.subr.mxu0 0.0
    %1298 = vmatpush1.xpose.msra.mxu0 %v1271
    %1299 = vmatprep.subr.mxu0 0.0
    %1300 = vmatpush1.xpose.msra.mxu0 %v1269
    %1301 = vmatprep.subr.mxu0 0.0
    %1302 = vmatpush1.xpose.msra.mxu0 %v1267
    %1303 = vmatprep.subr.mxu0 0.0
    %1304 = vmatpush1.xpose.msra.mxu0 %v1265
    %1305 = vmatprep.subr.mxu0 0.0
    %1306 = vmatpush1.xpose.msra.mxu0 %v1263
    %1307 = vmatprep.subr.mxu0 0.0
    %1308 = vmatpush1.xpose.msra.mxu0 %v1261
    %1309 = vmatprep.subr.mxu0 0.0
    %1310 = vmatpush2.xpose.msra.mxu0 0.0
    %1311 = vmatprep.subr.mxu0 0.0
    %1312 = vmatpush2.xpose.msra.mxu0 0.0
    %1313 = vmatprep.subr.mxu0 0.0
    %1314 = vmatpush2.xpose.msra.mxu0 0.0
    %1315 = vmatprep.subr.mxu0 0.0
    %1316 = vmatpush2.xpose.msra.mxu0 0.0
    %1317 = vmatprep.subr.mxu0 0.0
    %1318 = vmatpush2.xpose.msra.mxu0 0.0
    %1319 = vmatprep.subr.mxu0 0.0
    %1320 = vmatpush2.xpose.msra.mxu0 0.0
    %1321 = vmatprep.subr.mxu0 0.0
    %1322 = vmatpush2.xpose.msra.mxu0 0.0
    %1323 = vmatprep.subr.mxu0 0.0
    %1324 = vmatpush2.xpose.msra.mxu0 0.0
    %1325 = vmatprep.subr.mxu0 0.0
    %1326 = vmatpush2.xpose.msra.mxu0 0.0
    %1327 = vmatprep.subr.mxu0 0.0
    %1328 = vmatpush2.xpose.msra.mxu0 0.0
    %1329 = vmatprep.subr.mxu0 0.0
    %1330 = vmatpush2.xpose.msra.mxu0 0.0
    %1331 = vmatprep.subr.mxu0 0.0
    %1332 = vmatpush2.xpose.msra.mxu0 0.0
    %1333 = vmatprep.subr.mxu0 0.0
    %1334 = vmatpush2.xpose.msra.mxu0 0.0
    %1335 = vmatprep.subr.mxu0 0.0
    %1336 = vmatpush2.xpose.msra.mxu0 0.0
    %1337 = vmatprep.subr.mxu0 0.0
    %1338 = vmatpush2.xpose.msra.mxu0 0.0
    %1339 = vmatprep.subr.mxu0 0.0
    %1340 = vmatpush2.xpose.msra.mxu0 0.0
    %1341 = vmatprep.mubr.f32.mxu0 0.0
    %1342 = vmatmul.mubr.f32.gmra.mxu0 %v1245
    %v1343 = vpop.f32.mrf.mxu0
    %v1344 = vadd.f32 0.0, %v1343
    %v1345 = vpop.f32.mrf.mxu0
    %1346 = vmatprep.mubr.f32.mxu0 0.0
    %1347 = vmatmul.mubr.f32.gmra.mxu0 %v1247
    %v1348 = vpop.f32.mrf.mxu0
    %v1349 = vadd.f32 0.0, %v1348
    %v1350 = vpop.f32.mrf.mxu0
    %1351 = vmatprep.mubr.f32.mxu0 0.0
    %1352 = vmatmul.mubr.f32.gmra.mxu0 %v1249
    %v1353 = vpop.f32.mrf.mxu0
    %v1354 = vadd.f32 0.0, %v1353
    %v1355 = vpop.f32.mrf.mxu0
    %1356 = vmatprep.mubr.f32.mxu0 0.0
    %1357 = vmatmul.mubr.f32.gmra.mxu0 %v1251
    %v1358 = vpop.f32.mrf.mxu0
    %v1359 = vadd.f32 0.0, %v1358
    %v1360 = vpop.f32.mrf.mxu0
    %1361 = vmatprep.mubr.f32.mxu0 0.0
    %1362 = vmatmul.mubr.f32.gmra.mxu0 %v1253
    %v1363 = vpop.f32.mrf.mxu0
    %v1364 = vadd.f32 0.0, %v1363
    %v1365 = vpop.f32.mrf.mxu0
    %1366 = vmatprep.mubr.f32.mxu0 0.0
    %1367 = vmatmul.mubr.f32.gmra.mxu0 %v1255
    %v1368 = vpop.f32.mrf.mxu0
    %v1369 = vadd.f32 0.0, %v1368
    %v1370 = vpop.f32.mrf.mxu0
    %1371 = vmatprep.mubr.f32.mxu0 0.0
    %1372 = vmatmul.mubr.f32.gmra.mxu0 %v1257
    %v1373 = vpop.f32.mrf.mxu0
    %v1374 = vadd.f32 0.0, %v1373
    %v1375 = vpop.f32.mrf.mxu0
    %1376 = vmatprep.mubr.f32.mxu0 0.0
    %1377 = vmatmul.mubr.f32.gmra.mxu0 %v1259
    %v1378 = vpop.f32.mrf.mxu0
    %v1379 = vadd.f32 0.0, %v1378
    %v1380 = vpop.f32.mrf.mxu0
    %1381 = vdwg.mxu0
    %v1382 = vmul.f32 %v1344, 0.25
    %v1383 = vmul.f32 %v1349, 0.25
    %v1384 = vmul.f32 %v1354, 0.25
    %v1385 = vmul.f32 %v1359, 0.25
    %v1386 = vmul.f32 %v1364, 0.25
    %v1387 = vmul.f32 %v1369, 0.25
    %v1388 = vmul.f32 %v1374, 0.25
    %v1389 = vmul.f32 %v1379, 0.25
    %v1390 = vadd.f32 %v1382, %v125
    %v1391 = vadd.f32 %v1383, %v126
    %v1392 = vadd.f32 %v1384, %v127
    %v1393 = vadd.f32 %v1385, %v128
    %v1394 = vadd.f32 %v1386, %v129
    %v1395 = vadd.f32 %v1387, %v130
    %v1396 = vadd.f32 %v1388, %v131
    %v1397 = vadd.f32 %v1389, %v132
    %v1398 = vsel %vm184, %v1390, -inf
    %1399 = vmax.xlane.f32.xlu0 %v1398
    %v1400 = vpop.xlane.xlu0 %1399
    %v1401 = vsel %vm184, %v1391, -inf
    %1402 = vmax.xlane.f32.xlu0 %v1401
    %v1403 = vpop.xlane.xlu0 %1402
    %v1404 = vsel %vm184, %v1392, -inf
    %1405 = vmax.xlane.f32.xlu0 %v1404
    %v1406 = vpop.xlane.xlu0 %1405
    %v1407 = vsel %vm184, %v1393, -inf
    %1408 = vmax.xlane.f32.xlu0 %v1407
    %v1409 = vpop.xlane.xlu0 %1408
    %v1410 = vsel %vm184, %v1394, -inf
    %1411 = vmax.xlane.f32.xlu0 %v1410
    %v1412 = vpop.xlane.xlu0 %1411
    %v1413 = vsel %vm184, %v1395, -inf
    %1414 = vmax.xlane.f32.xlu0 %v1413
    %v1415 = vpop.xlane.xlu0 %1414
    %v1416 = vsel %vm184, %v1396, -inf
    %1417 = vmax.xlane.f32.xlu0 %v1416
    %v1418 = vpop.xlane.xlu0 %1417
    %v1419 = vsel %vm184, %v1397, -inf
    %1420 = vmax.xlane.f32.xlu0 %v1419
    %v1421 = vpop.xlane.xlu0 %1420
    %v1422 = vsub.f32 %v1390, %v1400
    %v1423 = vsub.f32 %v1391, %v1403
    %v1424 = vsub.f32 %v1392, %v1406
    %v1425 = vsub.f32 %v1393, %v1409
    %v1426 = vsub.f32 %v1394, %v1412
    %v1427 = vsub.f32 %v1395, %v1415
    %v1428 = vsub.f32 %v1396, %v1418
    %v1429 = vsub.f32 %v1397, %v1421
    %v1430 = vmul.f32 %v1422, 1.442695
    %v1431 = vpow.pop %v1430
    %v1432 = vmul.f32 %v1423, 1.442695
    %v1433 = vpow.pop %v1432
    %v1434 = vmul.f32 %v1424, 1.442695
    %v1435 = vpow.pop %v1434
    %v1436 = vmul.f32 %v1425, 1.442695
    %v1437 = vpow.pop %v1436
    %v1438 = vmul.f32 %v1426, 1.442695
    %v1439 = vpow.pop %v1438
    %v1440 = vmul.f32 %v1427, 1.442695
    %v1441 = vpow.pop %v1440
    %v1442 = vmul.f32 %v1428, 1.442695
    %v1443 = vpow.pop %v1442
    %v1444 = vmul.f32 %v1429, 1.442695
    %v1445 = vpow.pop %v1444
    %v1446 = vsel %vm184, %v1431, 0.0
    %1447 = vadd.xlane.f32.xlu0 %v1446
    %v1448 = vpop.xlane.xlu0 %1447
    %v1449 = vsel %vm184, %v1433, 0.0
    %1450 = vadd.xlane.f32.xlu0 %v1449
    %v1451 = vpop.xlane.xlu0 %1450
    %v1452 = vsel %vm184, %v1435, 0.0
    %1453 = vadd.xlane.f32.xlu0 %v1452
    %v1454 = vpop.xlane.xlu0 %1453
    %v1455 = vsel %vm184, %v1437, 0.0
    %1456 = vadd.xlane.f32.xlu0 %v1455
    %v1457 = vpop.xlane.xlu0 %1456
    %v1458 = vsel %vm184, %v1439, 0.0
    %1459 = vadd.xlane.f32.xlu0 %v1458
    %v1460 = vpop.xlane.xlu0 %1459
    %v1461 = vsel %vm184, %v1441, 0.0
    %1462 = vadd.xlane.f32.xlu0 %v1461
    %v1463 = vpop.xlane.xlu0 %1462
    %v1464 = vsel %vm184, %v1443, 0.0
    %1465 = vadd.xlane.f32.xlu0 %v1464
    %v1466 = vpop.xlane.xlu0 %1465
    %v1467 = vsel %vm184, %v1445, 0.0
    %1468 = vadd.xlane.f32.xlu0 %v1467
    %v1469 = vpop.xlane.xlu0 %1468
    %v1470 = vrcp.pop %v1448
    %v1471 = vrcp.pop %v1451
    %v1472 = vrcp.pop %v1454
    %v1473 = vrcp.pop %v1457
    %v1474 = vrcp.pop %v1460
    %v1475 = vrcp.pop %v1463
    %v1476 = vrcp.pop %v1466
    %v1477 = vrcp.pop %v1469
    %v1478 = vmul.f32 %v1431, %v1470
    %v1479 = vmul.f32 %v1433, %v1471
    %v1480 = vmul.f32 %v1435, %v1472
    %v1481 = vmul.f32 %v1437, %v1473
    %v1482 = vmul.f32 %v1439, %v1474
    %v1483 = vmul.f32 %v1441, %v1475
    %v1484 = vmul.f32 %v1443, %v1476
    %v1485 = vmul.f32 %v1445, %v1477
    %v1487 = vsel %vm184, %v1478, 0
    %v1490 = vsel %vm184, %v1479, 0
    %v1493 = vsel %vm184, %v1480, 0
    %v1496 = vsel %vm184, %v1481, 0
    %v1499 = vsel %vm184, %v1482, 0
    %v1502 = vsel %vm184, %v1483, 0
    %v1505 = vsel %vm184, %v1484, 0
    %v1508 = vsel %vm184, %v1485, 0
    %1510 = vmatprep.subr.mxu0 0.0
    %1511 = vmatpush1.msra.mxu0 0.0
    %1512 = vmatprep.subr.mxu0 0.0
    %1513 = vmatpush1.msra.mxu0 0.0
    %1514 = vmatprep.subr.mxu0 0.0
    %1515 = vmatpush1.msra.mxu0 0.0
    %1516 = vmatprep.subr.mxu0 0.0
    %1517 = vmatpush1.msra.mxu0 0.0
    %1518 = vmatprep.subr.mxu0 0.0
    %1519 = vmatpush1.msra.mxu0 0.0
    %1520 = vmatprep.subr.mxu0 0.0
    %1521 = vmatpush1.msra.mxu0 0.0
    %1522 = vmatprep.subr.mxu0 0.0
    %1523 = vmatpush1.msra.mxu0 0.0
    %1524 = vmatprep.subr.mxu0 0.0
    %1525 = vmatpush1.msra.mxu0 0.0
    %1526 = vmatprep.subr.mxu0 0.0
    %1527 = vmatpush1.msra.mxu0 %v1226
    %1528 = vmatprep.subr.mxu0 0.0
    %1529 = vmatpush1.msra.mxu0 %v1224
    %1530 = vmatprep.subr.mxu0 0.0
    %1531 = vmatpush1.msra.mxu0 %v1220
    %1532 = vmatprep.subr.mxu0 0.0
    %1533 = vmatpush1.msra.mxu0 %v1218
    %1534 = vmatprep.subr.mxu0 0.0
    %1535 = vmatpush1.msra.mxu0 %v1214
    %1536 = vmatprep.subr.mxu0 0.0
    %1537 = vmatpush1.msra.mxu0 %v1212
    %1538 = vmatprep.subr.mxu0 0.0
    %1539 = vmatpush1.msra.mxu0 %v1193
    %1540 = vmatprep.subr.mxu0 0.0
    %1541 = vmatpush1.msra.mxu0 %v1187
    %1542 = vmatprep.subr.mxu0 0.0
    %1543 = vmatpush2.msra.mxu0 0.0
    %1544 = vmatprep.subr.mxu0 0.0
    %1545 = vmatpush2.msra.mxu0 0.0
    %1546 = vmatprep.subr.mxu0 0.0
    %1547 = vmatpush2.msra.mxu0 0.0
    %1548 = vmatprep.subr.mxu0 0.0
    %1549 = vmatpush2.msra.mxu0 0.0
    %1550 = vmatprep.subr.mxu0 0.0
    %1551 = vmatpush2.msra.mxu0 0.0
    %1552 = vmatprep.subr.mxu0 0.0
    %1553 = vmatpush2.msra.mxu0 0.0
    %1554 = vmatprep.subr.mxu0 0.0
    %1555 = vmatpush2.msra.mxu0 0.0
    %1556 = vmatprep.subr.mxu0 0.0
    %1557 = vmatpush2.msra.mxu0 0.0
    %1558 = vmatprep.subr.mxu0 0.0
    %1559 = vmatpush2.msra.mxu0 0.0
    %1560 = vmatprep.subr.mxu0 0.0
    %1561 = vmatpush2.msra.mxu0 0.0
    %1562 = vmatprep.subr.mxu0 0.0
    %1563 = vmatpush2.msra.mxu0 0.0
    %1564 = vmatprep.subr.mxu0 0.0
    %1565 = vmatpush2.msra.mxu0 0.0
    %1566 = vmatprep.subr.mxu0 0.0
    %1567 = vmatpush2.msra.mxu0 0.0
    %1568 = vmatprep.subr.mxu0 0.0
    %1569 = vmatpush2.msra.mxu0 0.0
    %1570 = vmatprep.subr.mxu0 0.0
    %1571 = vmatpush2.msra.mxu0 0.0
    %1572 = vmatprep.subr.mxu0 0.0
    %1573 = vmatpush2.msra.mxu0 0.0
    %1574 = vmatprep.mubr.f32.mxu0 0.0
    %1575 = vmatmul.mubr.f32.gmra.mxu0 %v1487
    %v1576 = vpop.f32.mrf.mxu0
    %v1577 = vadd.f32 0.0, %v1576
    %v1578 = vpop.f32.mrf.mxu0
    %1579 = vmatprep.mubr.f32.mxu0 0.0
    %1580 = vmatmul.mubr.f32.gmra.mxu0 %v1490
    %v1581 = vpop.f32.mrf.mxu0
    %v1582 = vadd.f32 0.0, %v1581
    %v1583 = vpop.f32.mrf.mxu0
    %1584 = vmatprep.mubr.f32.mxu0 0.0
    %1585 = vmatmul.mubr.f32.gmra.mxu0 %v1493
    %v1586 = vpop.f32.mrf.mxu0
    %v1587 = vadd.f32 0.0, %v1586
    %v1588 = vpop.f32.mrf.mxu0
    %1589 = vmatprep.mubr.f32.mxu0 0.0
    %1590 = vmatmul.mubr.f32.gmra.mxu0 %v1496
    %v1591 = vpop.f32.mrf.mxu0
    %v1592 = vadd.f32 0.0, %v1591
    %v1593 = vpop.f32.mrf.mxu0
    %1594 = vmatprep.mubr.f32.mxu0 0.0
    %1595 = vmatmul.mubr.f32.gmra.mxu0 %v1499
    %v1596 = vpop.f32.mrf.mxu0
    %v1597 = vadd.f32 0.0, %v1596
    %v1598 = vpop.f32.mrf.mxu0
    %1599 = vmatprep.mubr.f32.mxu0 0.0
    %1600 = vmatmul.mubr.f32.gmra.mxu0 %v1502
    %v1601 = vpop.f32.mrf.mxu0
    %v1602 = vadd.f32 0.0, %v1601
    %v1603 = vpop.f32.mrf.mxu0
    %1604 = vmatprep.mubr.f32.mxu0 0.0
    %1605 = vmatmul.mubr.f32.gmra.mxu0 %v1505
    %v1606 = vpop.f32.mrf.mxu0
    %v1607 = vadd.f32 0.0, %v1606
    %v1608 = vpop.f32.mrf.mxu0
    %1609 = vmatprep.mubr.f32.mxu0 0.0
    %1610 = vmatmul.mubr.f32.gmra.mxu0 %v1508
    %v1611 = vpop.f32.mrf.mxu0
    %v1612 = vadd.f32 0.0, %v1611
    %v1613 = vpop.f32.mrf.mxu0
    %1614 = vdwg.mxu0
    %1617 = vrot.lane.b32.xlu0 %v1587, 16
    %v1618 = vpop.permute.xlu0 %1617
    %1619 = vrot.lane.b32.xlu0 %v1592, 16
    %v1620 = vpop.permute.xlu0 %1619
    %1625 = vrot.lane.b32.xlu0 %v1597, 32
    %v1626 = vpop.permute.xlu0 %1625
    %1627 = vrot.lane.b32.xlu0 %v1602, 32
    %v1628 = vpop.permute.xlu0 %1627
    %1633 = vrot.lane.b32.xlu0 %v1607, 48
    %v1634 = vpop.permute.xlu0 %1633
    %1635 = vrot.lane.b32.xlu0 %v1612, 48
    %v1636 = vpop.permute.xlu0 %1635
    %v1639 = vsel %vm318, %v1577, %v1618
    %v1640 = vsel %vm318, %v1582, %v1620
    %v1641 = vsel %vm715, %v1639, %v1626
    %v1642 = vsel %vm715, %v1640, %v1628
    %v1643 = vsel %vm718, %v1641, %v1634
    %v1644 = vsel %vm718, %v1642, %v1636
    %v1645 = vlaneseq
    %v1646 = vshrl.u32 %v1645, 7
    %v1647 = vsub.s32 0, %v1646
    %v1648 = vrot.slane %v1103, %v1647
    %v1650 = vsel %vm184, %v1643, 0
    %v1653 = vsel %vm184, %v1644, 0
    %1655 = vmatprep.subr.mxu0 0.0
    %1656 = vmatpush1.msra.mxu0 0.0
    %1657 = vmatprep.subr.mxu0 0.0
    %1658 = vmatpush1.msra.mxu0 0.0
    %1659 = vmatprep.subr.mxu0 0.0
    %1660 = vmatpush1.msra.mxu0 0.0
    %1661 = vmatprep.subr.mxu0 0.0
    %1662 = vmatpush1.msra.mxu0 0.0
    %1663 = vmatprep.subr.mxu0 0.0
    %1664 = vmatpush1.msra.mxu0 0.0
    %1665 = vmatprep.subr.mxu0 0.0
    %1666 = vmatpush1.msra.mxu0 0.0
    %1667 = vmatprep.subr.mxu0 0.0
    %1668 = vmatpush1.msra.mxu0 0.0
    %1669 = vmatprep.subr.mxu0 0.0
    %1670 = vmatpush1.msra.mxu0 0.0
    %1671 = vmatprep.subr.mxu0 0.0
    %1672 = vmatpush1.msra.mxu0 %v1086
    %1673 = vmatprep.subr.mxu0 0.0
    %1674 = vmatpush1.msra.mxu0 %v1085
    %1675 = vmatprep.subr.mxu0 0.0
    %1676 = vmatpush1.msra.mxu0 %v1084
    %1677 = vmatprep.subr.mxu0 0.0
    %1678 = vmatpush1.msra.mxu0 %v1083
    %1679 = vmatprep.subr.mxu0 0.0
    %1680 = vmatpush1.msra.mxu0 %v1082
    %1681 = vmatprep.subr.mxu0 0.0
    %1682 = vmatpush1.msra.mxu0 %v1081
    %1683 = vmatprep.subr.mxu0 0.0
    %1684 = vmatpush1.msra.mxu0 %v1080
    %1685 = vmatprep.subr.mxu0 0.0
    %1686 = vmatpush1.msra.mxu0 %v1079
    %1687 = vmatprep.subr.mxu0 0.0
    %1688 = vmatpush2.msra.mxu0 0.0
    %1689 = vmatprep.subr.mxu0 0.0
    %1690 = vmatpush2.msra.mxu0 0.0
    %1691 = vmatprep.subr.mxu0 0.0
    %1692 = vmatpush2.msra.mxu0 0.0
    %1693 = vmatprep.subr.mxu0 0.0
    %1694 = vmatpush2.msra.mxu0 0.0
    %1695 = vmatprep.subr.mxu0 0.0
    %1696 = vmatpush2.msra.mxu0 0.0
    %1697 = vmatprep.subr.mxu0 0.0
    %1698 = vmatpush2.msra.mxu0 0.0
    %1699 = vmatprep.subr.mxu0 0.0
    %1700 = vmatpush2.msra.mxu0 0.0
    %1701 = vmatprep.subr.mxu0 0.0
    %1702 = vmatpush2.msra.mxu0 0.0
    %1703 = vmatprep.subr.mxu0 0.0
    %1704 = vmatpush2.msra.mxu0 0.0
    %1705 = vmatprep.subr.mxu0 0.0
    %1706 = vmatpush2.msra.mxu0 0.0
    %1707 = vmatprep.subr.mxu0 0.0
    %1708 = vmatpush2.msra.mxu0 0.0
    %1709 = vmatprep.subr.mxu0 0.0
    %1710 = vmatpush2.msra.mxu0 0.0
    %1711 = vmatprep.subr.mxu0 0.0
    %1712 = vmatpush2.msra.mxu0 0.0
    %1713 = vmatprep.subr.mxu0 0.0
    %1714 = vmatpush2.msra.mxu0 0.0
    %1715 = vmatprep.subr.mxu0 0.0
    %1716 = vmatpush2.msra.mxu0 0.0
    %1717 = vmatprep.subr.mxu0 0.0
    %1718 = vmatpush2.msra.mxu0 0.0
    %1719 = vmatprep.mubr.f32.mxu0 0.0
    %1720 = vmatmul.mubr.f32.gmra.mxu0 %v1650
    %v1721 = vpop.f32.mrf.mxu0
    %v1722 = vadd.f32 %v1648, %v1721
    %v1723 = vpop.f32.mrf.mxu0
    %1724 = vmatprep.mubr.f32.mxu0 0.0
    %1725 = vmatmul.mubr.f32.gmra.mxu0 %v1653
    %v1726 = vpop.f32.mrf.mxu0
    %v1727 = vadd.f32 %v1648, %v1726
    %v1728 = vpop.f32.mrf.mxu0
    %1729 = vdwg.mxu0
    %v1730 = vadd.f32 %v1057, %v1722
    %v1731 = vadd.f32 %v1058, %v1727
    %v1732 = vsel %vm184, %v1730, 0.0
    %1733 = vadd.xlane.f32.xlu0 %v1732
    %v1734 = vpop.xlane.xlu0 %1733
    %v1735 = vsel %vm184, %v1731, 0.0
    %1736 = vadd.xlane.f32.xlu0 %v1735
    %v1737 = vpop.xlane.xlu0 %1736
    %v1738 = vmul.f32 %v1734, %v814
    %v1739 = vmul.f32 %v1737, %v814
    %v1740 = vsub.f32 %v1730, %v1738
    %v1741 = vsub.f32 %v1731, %v1739
    %v1742 = vmul.f32 %v1740, %v1740
    %v1743 = vmul.f32 %v1741, %v1741
    %v1744 = vsel %vm184, %v1742, 0.0
    %1745 = vadd.xlane.f32.xlu0 %v1744
    %v1746 = vpop.xlane.xlu0 %1745
    %v1747 = vsel %vm184, %v1743, 0.0
    %1748 = vadd.xlane.f32.xlu0 %v1747
    %v1749 = vpop.xlane.xlu0 %1748
    %v1750 = vmul.f32 %v1746, %v814
    %v1751 = vmul.f32 %v1749, %v814
    %v1752 = vadd.f32 %v1750, 1e-05
    %v1753 = vadd.f32 %v1751, 1e-05
    %v1754 = vrsqrt.pop %v1752
    %v1755 = vrsqrt.pop %v1753
    %v1756 = vmul.f32 %v1740, %v1754
    %v1757 = vmul.f32 %v1741, %v1755
    %v1758 = vlaneseq
    %v1759 = vshrl.u32 %v1758, 7
    %v1760 = vsub.s32 1, %v1759
    %v1761 = vrot.slane %v1103, %v1760
    %v1762 = vmul.f32 %v1756, %v1761
    %v1763 = vmul.f32 %v1757, %v1761
    %v1764 = vlaneseq
    %v1765 = vshrl.u32 %v1764, 7
    %v1766 = vsub.s32 2, %v1765
    %v1767 = vrot.slane %v1103, %v1766
    %v1768 = vadd.f32 %v1762, %v1767
    %v1769 = vadd.f32 %v1763, %v1767
    %v1770 = vlaneseq
    %v1771 = vshrl.u32 %v1770, 7
    %v1772 = vsub.s32 3, %v1771
    %v1773 = vrot.slane %v1103, %v1772
    %v1775 = vsel %vm184, %v1768, 0
    %v1778 = vsel %vm184, %v1769, 0
    %1780 = vmatprep.subr.mxu0 0.0
    %1781 = vmatpush1.msra.mxu0 0.0
    %1782 = vmatprep.subr.mxu0 0.0
    %1783 = vmatpush1.msra.mxu0 0.0
    %1784 = vmatprep.subr.mxu0 0.0
    %1785 = vmatpush1.msra.mxu0 0.0
    %1786 = vmatprep.subr.mxu0 0.0
    %1787 = vmatpush1.msra.mxu0 0.0
    %1788 = vmatprep.subr.mxu0 0.0
    %1789 = vmatpush1.msra.mxu0 0.0
    %1790 = vmatprep.subr.mxu0 0.0
    %1791 = vmatpush1.msra.mxu0 0.0
    %1792 = vmatprep.subr.mxu0 0.0
    %1793 = vmatpush1.msra.mxu0 0.0
    %1794 = vmatprep.subr.mxu0 0.0
    %1795 = vmatpush1.msra.mxu0 0.0
    %1796 = vmatprep.subr.mxu0 0.0
    %1797 = vmatpush1.msra.mxu0 %v1094
    %1798 = vmatprep.subr.mxu0 0.0
    %1799 = vmatpush1.msra.mxu0 %v1093
    %1800 = vmatprep.subr.mxu0 0.0
    %1801 = vmatpush1.msra.mxu0 %v1092
    %1802 = vmatprep.subr.mxu0 0.0
    %1803 = vmatpush1.msra.mxu0 %v1091
    %1804 = vmatprep.subr.mxu0 0.0
    %1805 = vmatpush1.msra.mxu0 %v1090
    %1806 = vmatprep.subr.mxu0 0.0
    %1807 = vmatpush1.msra.mxu0 %v1089
    %1808 = vmatprep.subr.mxu0 0.0
    %1809 = vmatpush1.msra.mxu0 %v1088
    %1810 = vmatprep.subr.mxu0 0.0
    %1811 = vmatpush1.msra.mxu0 %v1087
    %1812 = vmatprep.subr.mxu0 0.0
    %1813 = vmatpush2.msra.mxu0 0.0
    %1814 = vmatprep.subr.mxu0 0.0
    %1815 = vmatpush2.msra.mxu0 0.0
    %1816 = vmatprep.subr.mxu0 0.0
    %1817 = vmatpush2.msra.mxu0 0.0
    %1818 = vmatprep.subr.mxu0 0.0
    %1819 = vmatpush2.msra.mxu0 0.0
    %1820 = vmatprep.subr.mxu0 0.0
    %1821 = vmatpush2.msra.mxu0 0.0
    %1822 = vmatprep.subr.mxu0 0.0
    %1823 = vmatpush2.msra.mxu0 0.0
    %1824 = vmatprep.subr.mxu0 0.0
    %1825 = vmatpush2.msra.mxu0 0.0
    %1826 = vmatprep.subr.mxu0 0.0
    %1827 = vmatpush2.msra.mxu0 0.0
    %1828 = vmatprep.subr.mxu0 0.0
    %1829 = vmatpush2.msra.mxu0 0.0
    %1830 = vmatprep.subr.mxu0 0.0
    %1831 = vmatpush2.msra.mxu0 0.0
    %1832 = vmatprep.subr.mxu0 0.0
    %1833 = vmatpush2.msra.mxu0 0.0
    %1834 = vmatprep.subr.mxu0 0.0
    %1835 = vmatpush2.msra.mxu0 0.0
    %1836 = vmatprep.subr.mxu0 0.0
    %1837 = vmatpush2.msra.mxu0 0.0
    %1838 = vmatprep.subr.mxu0 0.0
    %1839 = vmatpush2.msra.mxu0 0.0
    %1840 = vmatprep.subr.mxu0 0.0
    %1841 = vmatpush2.msra.mxu0 0.0
    %1842 = vmatprep.subr.mxu0 0.0
    %1843 = vmatpush2.msra.mxu0 0.0
    %1844 = vmatprep.mubr.f32.mxu0 0.0
    %1845 = vmatmul.mubr.f32.gmra.mxu0 %v1775
    %v1846 = vpop.f32.mrf.mxu0
    %v1847 = vadd.f32 %v1773, %v1846
    %v1848 = vpop.f32.mrf.mxu0
    %1849 = vmatprep.mubr.f32.mxu0 0.0
    %1850 = vmatmul.mubr.f32.gmra.mxu0 %v1778
    %v1851 = vpop.f32.mrf.mxu0
    %v1852 = vadd.f32 %v1773, %v1851
    %v1853 = vpop.f32.mrf.mxu0
    %1854 = vdwg.mxu0
    %v1855 = vmax.f32 %v1847, 0.0
    %v1856 = vmax.f32 %v1852, 0.0
    %v1857 = vlaneseq
    %v1858 = vshrl.u32 %v1857, 7
    %v1859 = vsub.s32 4, %v1858
    %v1860 = vrot.slane %v1103, %v1859
    %v1862 = vsel %vm184, %v1855, 0
    %v1865 = vsel %vm184, %v1856, 0
    %1867 = vmatprep.subr.mxu0 0.0
    %1868 = vmatpush1.msra.mxu0 0.0
    %1869 = vmatprep.subr.mxu0 0.0
    %1870 = vmatpush1.msra.mxu0 0.0
    %1871 = vmatprep.subr.mxu0 0.0
    %1872 = vmatpush1.msra.mxu0 0.0
    %1873 = vmatprep.subr.mxu0 0.0
    %1874 = vmatpush1.msra.mxu0 0.0
    %1875 = vmatprep.subr.mxu0 0.0
    %1876 = vmatpush1.msra.mxu0 0.0
    %1877 = vmatprep.subr.mxu0 0.0
    %1878 = vmatpush1.msra.mxu0 0.0
    %1879 = vmatprep.subr.mxu0 0.0
    %1880 = vmatpush1.msra.mxu0 0.0
    %1881 = vmatprep.subr.mxu0 0.0
    %1882 = vmatpush1.msra.mxu0 0.0
    %1883 = vmatprep.subr.mxu0 0.0
    %1884 = vmatpush1.msra.mxu0 %v1102
    %1885 = vmatprep.subr.mxu0 0.0
    %1886 = vmatpush1.msra.mxu0 %v1101
    %1887 = vmatprep.subr.mxu0 0.0
    %1888 = vmatpush1.msra.mxu0 %v1100
    %1889 = vmatprep.subr.mxu0 0.0
    %1890 = vmatpush1.msra.mxu0 %v1099
    %1891 = vmatprep.subr.mxu0 0.0
    %1892 = vmatpush1.msra.mxu0 %v1098
    %1893 = vmatprep.subr.mxu0 0.0
    %1894 = vmatpush1.msra.mxu0 %v1097
    %1895 = vmatprep.subr.mxu0 0.0
    %1896 = vmatpush1.msra.mxu0 %v1096
    %1897 = vmatprep.subr.mxu0 0.0
    %1898 = vmatpush1.msra.mxu0 %v1095
    %1899 = vmatprep.subr.mxu0 0.0
    %1900 = vmatpush2.msra.mxu0 0.0
    %1901 = vmatprep.subr.mxu0 0.0
    %1902 = vmatpush2.msra.mxu0 0.0
    %1903 = vmatprep.subr.mxu0 0.0
    %1904 = vmatpush2.msra.mxu0 0.0
    %1905 = vmatprep.subr.mxu0 0.0
    %1906 = vmatpush2.msra.mxu0 0.0
    %1907 = vmatprep.subr.mxu0 0.0
    %1908 = vmatpush2.msra.mxu0 0.0
    %1909 = vmatprep.subr.mxu0 0.0
    %1910 = vmatpush2.msra.mxu0 0.0
    %1911 = vmatprep.subr.mxu0 0.0
    %1912 = vmatpush2.msra.mxu0 0.0
    %1913 = vmatprep.subr.mxu0 0.0
    %1914 = vmatpush2.msra.mxu0 0.0
    %1915 = vmatprep.subr.mxu0 0.0
    %1916 = vmatpush2.msra.mxu0 0.0
    %1917 = vmatprep.subr.mxu0 0.0
    %1918 = vmatpush2.msra.mxu0 0.0
    %1919 = vmatprep.subr.mxu0 0.0
    %1920 = vmatpush2.msra.mxu0 0.0
    %1921 = vmatprep.subr.mxu0 0.0
    %1922 = vmatpush2.msra.mxu0 0.0
    %1923 = vmatprep.subr.mxu0 0.0
    %1924 = vmatpush2.msra.mxu0 0.0
    %1925 = vmatprep.subr.mxu0 0.0
    %1926 = vmatpush2.msra.mxu0 0.0
    %1927 = vmatprep.subr.mxu0 0.0
    %1928 = vmatpush2.msra.mxu0 0.0
    %1929 = vmatprep.subr.mxu0 0.0
    %1930 = vmatpush2.msra.mxu0 0.0
    %1931 = vmatprep.mubr.f32.mxu0 0.0
    %1932 = vmatmul.mubr.f32.gmra.mxu0 %v1862
    %v1933 = vpop.f32.mrf.mxu0
    %v1934 = vadd.f32 %v1860, %v1933
    %v1935 = vpop.f32.mrf.mxu0
    %1936 = vmatprep.mubr.f32.mxu0 0.0
    %1937 = vmatmul.mubr.f32.gmra.mxu0 %v1865
    %v1938 = vpop.f32.mrf.mxu0
    %v1939 = vadd.f32 %v1860, %v1938
    %v1940 = vpop.f32.mrf.mxu0
    %1941 = vdwg.mxu0
    %v1942 = vadd.f32 %v1768, %v1934
    %v1943 = vadd.f32 %v1769, %v1939
    %v1944 = vsel %vm184, %v1942, 0.0
    %1945 = vadd.xlane.f32.xlu0 %v1944
    %v1946 = vpop.xlane.xlu0 %1945
    %v1947 = vsel %vm184, %v1943, 0.0
    %1948 = vadd.xlane.f32.xlu0 %v1947
    %v1949 = vpop.xlane.xlu0 %1948
    %v1950 = vmul.f32 %v1946, %v814
    %v1951 = vmul.f32 %v1949, %v814
    %v1952 = vsub.f32 %v1942, %v1950
    %v1953 = vsub.f32 %v1943, %v1951
    %v1954 = vmul.f32 %v1952, %v1952
    %v1955 = vmul.f32 %v1953, %v1953
    %v1956 = vsel %vm184, %v1954, 0.0
    %1957 = vadd.xlane.f32.xlu0 %v1956
    %v1958 = vpop.xlane.xlu0 %1957
    %v1959 = vsel %vm184, %v1955, 0.0
    %1960 = vadd.xlane.f32.xlu0 %v1959
    %v1961 = vpop.xlane.xlu0 %1960
    %v1962 = vmul.f32 %v1958, %v814
    %v1963 = vmul.f32 %v1961, %v814
    %v1964 = vadd.f32 %v1962, 1e-05
    %v1965 = vadd.f32 %v1963, 1e-05
    %v1966 = vrsqrt.pop %v1964
    %v1967 = vrsqrt.pop %v1965
    %v1968 = vmul.f32 %v1952, %v1966
    %v1969 = vmul.f32 %v1953, %v1967
    %v1970 = vlaneseq
    %v1971 = vshrl.u32 %v1970, 7
    %v1972 = vsub.s32 5, %v1971
    %v1973 = vrot.slane %v1103, %v1972
    %v1974 = vmul.f32 %v1968, %v1973
    %v1975 = vmul.f32 %v1969, %v1973
    %v1976 = vlaneseq
    %v1977 = vshrl.u32 %v1976, 7
    %v1978 = vsub.s32 6, %v1977
    %v1979 = vrot.slane %v1103, %v1978
    %v1980 = vadd.f32 %v1974, %v1979
    %v1981 = vadd.f32 %v1975, %v1979
    %s1982 = scalar_lea.vmem %s4, 288
    %v1983 = vld [vmem:[%s1982] sm:$0xff]
    %v1984 = vld [vmem:[%s1982 + $0x8] sm:$0xff]
    %v1985 = vld [vmem:[%s1982 + $0x10] sm:$0xff]
    %v1986 = vld [vmem:[%s1982 + $0x18] sm:$0xff]
    %v1987 = vld [vmem:[%s1982 + $0x20] sm:$0xff]
    %v1988 = vld [vmem:[%s1982 + $0x28] sm:$0xff]
    %v1989 = vld [vmem:[%s1982 + $0x30] sm:$0xff]
    %v1990 = vld [vmem:[%s1982 + $0x38] sm:$0xff]
    %v1991 = vld [vmem:[%s1982 + $0x40] sm:$0xff]
    %v1992 = vld [vmem:[%s1982 + $0x48] sm:$0xff]
    %v1993 = vld [vmem:[%s1982 + $0x50] sm:$0xff]
    %v1994 = vld [vmem:[%s1982 + $0x58] sm:$0xff]
    %v1995 = vld [vmem:[%s1982 + $0x60] sm:$0xff]
    %v1996 = vld [vmem:[%s1982 + $0x68] sm:$0xff]
    %v1997 = vld [vmem:[%s1982 + $0x70] sm:$0xff]
    %v1998 = vld [vmem:[%s1982 + $0x78] sm:$0xff]
    %v1999 = vld [vmem:[%s1982 + $0x80] sm:$0x1]
    %v2000 = vld [vmem:[%s1982 + $0x88] sm:$0x1]
    %s2001 = scalar_lea.vmem %s5, 400
    %v2002 = vld [vmem:[%s2001] sm:$0xff]
    %v2003 = vld [vmem:[%s2001 + $0x8] sm:$0xff]
    %v2004 = vld [vmem:[%s2001 + $0x10] sm:$0xff]
    %v2005 = vld [vmem:[%s2001 + $0x18] sm:$0xff]
    %v2006 = vld [vmem:[%s2001 + $0x20] sm:$0xff]
    %v2007 = vld [vmem:[%s2001 + $0x28] sm:$0xff]
    %v2008 = vld [vmem:[%s2001 + $0x30] sm:$0xff]
    %v2009 = vld [vmem:[%s2001 + $0x38] sm:$0xff]
    %v2010 = vld [vmem:[%s2001 + $0x40] sm:$0xff]
    %v2011 = vld [vmem:[%s2001 + $0x48] sm:$0xff]
    %v2012 = vld [vmem:[%s2001 + $0x50] sm:$0xff]
    %v2013 = vld [vmem:[%s2001 + $0x58] sm:$0xff]
    %v2014 = vld [vmem:[%s2001 + $0x60] sm:$0xff]
    %v2015 = vld [vmem:[%s2001 + $0x68] sm:$0xff]
    %v2016 = vld [vmem:[%s2001 + $0x70] sm:$0xff]
    %v2017 = vld [vmem:[%s2001 + $0x78] sm:$0xff]
    %v2018 = vld [vmem:[%s2001 + $0x80] sm:$0xff]
    %v2019 = vld [vmem:[%s2001 + $0x88] sm:$0xff]
    %v2020 = vld [vmem:[%s2001 + $0x90] sm:$0xff]
    %v2021 = vld [vmem:[%s2001 + $0x98] sm:$0xff]
    %v2022 = vld [vmem:[%s2001 + $0xa0] sm:$0xff]
    %v2023 = vld [vmem:[%s2001 + $0xa8] sm:$0xff]
    %v2024 = vld [vmem:[%s2001 + $0xb0] sm:$0xff]
    %v2025 = vld [vmem:[%s2001 + $0xb8] sm:$0xff]
    %v2026 = vld [vmem:[%s2001 + $0xc0] sm:$0x7f]
    %v2027 = vlaneseq
    %v2028 = vshrl.u32 %v2027, 7
    %v2029 = vsub.s32 0, %v2028
    %v2030 = vrot.slane %v1999, %v2029
    %v2031 = vlaneseq
    %v2032 = vshrl.u32 %v2031, 7
    %v2033 = vsub.s32 0, %v2032
    %v2034 = vrot.slane %v2000, %v2033
    %v2036 = vsel %vm184, %v1980, 0
    %v2039 = vsel %vm184, %v1981, 0
    %2041 = vmatprep.subr.mxu0 0.0
    %2042 = vmatpush1.msra.mxu0 0.0
    %2043 = vmatprep.subr.mxu0 0.0
    %2044 = vmatpush1.msra.mxu0 0.0
    %2045 = vmatprep.subr.mxu0 0.0
    %2046 = vmatpush1.msra.mxu0 0.0
    %2047 = vmatprep.subr.mxu0 0.0
    %2048 = vmatpush1.msra.mxu0 0.0
    %2049 = vmatprep.subr.mxu0 0.0
    %2050 = vmatpush1.msra.mxu0 0.0
    %2051 = vmatprep.subr.mxu0 0.0
    %2052 = vmatpush1.msra.mxu0 0.0
    %2053 = vmatprep.subr.mxu0 0.0
    %2054 = vmatpush1.msra.mxu0 0.0
    %2055 = vmatprep.subr.mxu0 0.0
    %2056 = vmatpush1.msra.mxu0 0.0
    %2057 = vmatprep.subr.mxu0 %v1998
    %2058 = vmatpush1.msra.mxu0 %v1997
    %2059 = vmatprep.subr.mxu0 %v1996
    %2060 = vmatpush1.msra.mxu0 %v1995
    %2061 = vmatprep.subr.mxu0 %v1994
    %2062 = vmatpush1.msra.mxu0 %v1993
    %2063 = vmatprep.subr.mxu0 %v1992
    %2064 = vmatpush1.msra.mxu0 %v1991
    %2065 = vmatprep.subr.mxu0 %v1990
    %2066 = vmatpush1.msra.mxu0 %v1989
    %2067 = vmatprep.subr.mxu0 %v1988
    %2068 = vmatpush1.msra.mxu0 %v1987
    %2069 = vmatprep.subr.mxu0 %v1986
    %2070 = vmatpush1.msra.mxu0 %v1985
    %2071 = vmatprep.subr.mxu0 %v1984
    %2072 = vmatpush1.msra.mxu0 %v1983
    %2073 = vmatprep.subr.mxu0 0.0
    %2074 = vmatpush2.msra.mxu0 0.0
    %2075 = vmatprep.subr.mxu0 0.0
    %2076 = vmatpush2.msra.mxu0 0.0
    %2077 = vmatprep.subr.mxu0 0.0
    %2078 = vmatpush2.msra.mxu0 0.0
    %2079 = vmatprep.subr.mxu0 0.0
    %2080 = vmatpush2.msra.mxu0 0.0
    %2081 = vmatprep.subr.mxu0 0.0
    %2082 = vmatpush2.msra.mxu0 0.0
    %2083 = vmatprep.subr.mxu0 0.0
    %2084 = vmatpush2.msra.mxu0 0.0
    %2085 = vmatprep.subr.mxu0 0.0
    %2086 = vmatpush2.msra.mxu0 0.0
    %2087 = vmatprep.subr.mxu0 0.0
    %2088 = vmatpush2.msra.mxu0 0.0
    %2089 = vmatprep.subr.mxu0 0.0
    %2090 = vmatpush2.msra.mxu0 0.0
    %2091 = vmatprep.subr.mxu0 0.0
    %2092 = vmatpush2.msra.mxu0 0.0
    %2093 = vmatprep.subr.mxu0 0.0
    %2094 = vmatpush2.msra.mxu0 0.0
    %2095 = vmatprep.subr.mxu0 0.0
    %2096 = vmatpush2.msra.mxu0 0.0
    %2097 = vmatprep.subr.mxu0 0.0
    %2098 = vmatpush2.msra.mxu0 0.0
    %2099 = vmatprep.subr.mxu0 0.0
    %2100 = vmatpush2.msra.mxu0 0.0
    %2101 = vmatprep.subr.mxu0 0.0
    %2102 = vmatpush2.msra.mxu0 0.0
    %2103 = vmatprep.subr.mxu0 0.0
    %2104 = vmatpush2.msra.mxu0 0.0
    %2105 = vmatprep.mubr.f32.mxu0 0.0
    %2106 = vmatmul.mubr.f32.gmra.mxu0 %v2036
    %v2107 = vpop.f32.mrf.mxu0
    %v2108 = vadd.f32 %v2030, %v2107
    %v2109 = vpop.f32.mrf.mxu0
    %v2110 = vadd.f32 %v2034, %v2109
    %2111 = vmatprep.mubr.f32.mxu0 0.0
    %2112 = vmatmul.mubr.f32.gmra.mxu0 %v2039
    %v2113 = vpop.f32.mrf.mxu0
    %v2114 = vadd.f32 %v2030, %v2113
    %v2115 = vpop.f32.mrf.mxu0
    %v2116 = vadd.f32 %v2034, %v2115
    %2117 = vdwg.mxu0
    %2120 = vrot.lane.b32.xlu0 %v2108, 112
    %v2121 = vpop.permute.xlu0 %2120
    %2122 = vrot.lane.b32.xlu0 %v2114, 112
    %v2123 = vpop.permute.xlu0 %2122
    %2124 = vrot.lane.b32.xlu0 %v2108, 96
    %v2125 = vpop.permute.xlu0 %2124
    %2126 = vrot.lane.b32.xlu0 %v2114, 96
    %v2127 = vpop.permute.xlu0 %2126
    %2128 = vrot.lane.b32.xlu0 %v2108, 80
    %v2129 = vpop.permute.xlu0 %2128
    %2130 = vrot.lane.b32.xlu0 %v2114, 80
    %v2131 = vpop.permute.xlu0 %2130
    %2134 = vrot.lane.b32.xlu0 %v2110, 112
    %v2135 = vpop.permute.xlu0 %2134
    %2136 = vrot.lane.b32.xlu0 %v2116, 112
    %v2137 = vpop.permute.xlu0 %2136
    %2140 = vrot.lane.b32.xlu0 %v2110, 96
    %v2141 = vpop.permute.xlu0 %2140
    %2142 = vrot.lane.b32.xlu0 %v2116, 96
    %v2143 = vpop.permute.xlu0 %2142
    %2146 = vrot.lane.b32.xlu0 %v2110, 80
    %v2147 = vpop.permute.xlu0 %2146
    %2148 = vrot.lane.b32.xlu0 %v2116, 80
    %v2149 = vpop.permute.xlu0 %2148
    %2152 = vrot.lane.b32.xlu0 %v2108, 64
    %v2153 = vpop.permute.xlu0 %2152
    %2154 = vrot.lane.b32.xlu0 %v2114, 64
    %v2155 = vpop.permute.xlu0 %2154
    %2156 = vrot.lane.b32.xlu0 %v2121, 64
    %v2157 = vpop.permute.xlu0 %2156
    %2158 = vrot.lane.b32.xlu0 %v2123, 64
    %v2159 = vpop.permute.xlu0 %2158
    %2160 = vrot.lane.b32.xlu0 %v2125, 64
    %v2161 = vpop.permute.xlu0 %2160
    %2162 = vrot.lane.b32.xlu0 %v2127, 64
    %v2163 = vpop.permute.xlu0 %2162
    %2164 = vrot.lane.b32.xlu0 %v2129, 64
    %v2165 = vpop.permute.xlu0 %2164
    %2166 = vrot.lane.b32.xlu0 %v2131, 64
    %v2167 = vpop.permute.xlu0 %2166
    %v2168 = vsel %vm318, %v2108, 0
    %v2170 = vsel %vm318, %v2114, 0
    %v2172 = vsel %vm318, %v2121, 0
    %v2174 = vsel %vm318, %v2123, 0
    %v2176 = vsel %vm318, %v2125, 0
    %v2178 = vsel %vm318, %v2127, 0
    %v2180 = vsel %vm318, %v2129, 0
    %v2182 = vsel %vm318, %v2131, 0
    %v2184 = vsel %vm318, %v2153, 0
    %v2186 = vsel %vm318, %v2155, 0
    %v2188 = vsel %vm318, %v2157, 0
    %v2190 = vsel %vm318, %v2159, 0
    %v2192 = vsel %vm318, %v2161, 0
    %v2194 = vsel %vm318, %v2163, 0
    %v2196 = vsel %vm318, %v2165, 0
    %v2198 = vsel %vm318, %v2167, 0
    %2200 = vmatprep.subr.mxu0 0.0
    %2201 = vmatpush1.xpose.msra.mxu0 0.0
    %2202 = vmatprep.subr.mxu0 0.0
    %2203 = vmatpush1.xpose.msra.mxu0 0.0
    %2204 = vmatprep.subr.mxu0 0.0
    %2205 = vmatpush1.xpose.msra.mxu0 0.0
    %2206 = vmatprep.subr.mxu0 0.0
    %2207 = vmatpush1.xpose.msra.mxu0 0.0
    %2208 = vmatprep.subr.mxu0 0.0
    %2209 = vmatpush1.xpose.msra.mxu0 0.0
    %2210 = vmatprep.subr.mxu0 0.0
    %2211 = vmatpush1.xpose.msra.mxu0 0.0
    %2212 = vmatprep.subr.mxu0 0.0
    %2213 = vmatpush1.xpose.msra.mxu0 0.0
    %2214 = vmatprep.subr.mxu0 0.0
    %2215 = vmatpush1.xpose.msra.mxu0 0.0
    %2216 = vmatprep.subr.mxu0 0.0
    %2217 = vmatpush1.xpose.msra.mxu0 %v2198
    %2218 = vmatprep.subr.mxu0 0.0
    %2219 = vmatpush1.xpose.msra.mxu0 %v2196
    %2220 = vmatprep.subr.mxu0 0.0
    %2221 = vmatpush1.xpose.msra.mxu0 %v2194
    %2222 = vmatprep.subr.mxu0 0.0
    %2223 = vmatpush1.xpose.msra.mxu0 %v2192
    %2224 = vmatprep.subr.mxu0 0.0
    %2225 = vmatpush1.xpose.msra.mxu0 %v2190
    %2226 = vmatprep.subr.mxu0 0.0
    %2227 = vmatpush1.xpose.msra.mxu0 %v2188
    %2228 = vmatprep.subr.mxu0 0.0
    %2229 = vmatpush1.xpose.msra.mxu0 %v2186
    %2230 = vmatprep.subr.mxu0 0.0
    %2231 = vmatpush1.xpose.msra.mxu0 %v2184
    %2232 = vmatprep.subr.mxu0 0.0
    %2233 = vmatpush2.xpose.msra.mxu0 0.0
    %2234 = vmatprep.subr.mxu0 0.0
    %2235 = vmatpush2.xpose.msra.mxu0 0.0
    %2236 = vmatprep.subr.mxu0 0.0
    %2237 = vmatpush2.xpose.msra.mxu0 0.0
    %2238 = vmatprep.subr.mxu0 0.0
    %2239 = vmatpush2.xpose.msra.mxu0 0.0
    %2240 = vmatprep.subr.mxu0 0.0
    %2241 = vmatpush2.xpose.msra.mxu0 0.0
    %2242 = vmatprep.subr.mxu0 0.0
    %2243 = vmatpush2.xpose.msra.mxu0 0.0
    %2244 = vmatprep.subr.mxu0 0.0
    %2245 = vmatpush2.xpose.msra.mxu0 0.0
    %2246 = vmatprep.subr.mxu0 0.0
    %2247 = vmatpush2.xpose.msra.mxu0 0.0
    %2248 = vmatprep.subr.mxu0 0.0
    %2249 = vmatpush2.xpose.msra.mxu0 0.0
    %2250 = vmatprep.subr.mxu0 0.0
    %2251 = vmatpush2.xpose.msra.mxu0 0.0
    %2252 = vmatprep.subr.mxu0 0.0
    %2253 = vmatpush2.xpose.msra.mxu0 0.0
    %2254 = vmatprep.subr.mxu0 0.0
    %2255 = vmatpush2.xpose.msra.mxu0 0.0
    %2256 = vmatprep.subr.mxu0 0.0
    %2257 = vmatpush2.xpose.msra.mxu0 0.0
    %2258 = vmatprep.subr.mxu0 0.0
    %2259 = vmatpush2.xpose.msra.mxu0 0.0
    %2260 = vmatprep.subr.mxu0 0.0
    %2261 = vmatpush2.xpose.msra.mxu0 0.0
    %2262 = vmatprep.subr.mxu0 0.0
    %2263 = vmatpush2.xpose.msra.mxu0 0.0
    %2264 = vmatprep.mubr.f32.mxu0 0.0
    %2265 = vmatmul.mubr.f32.gmra.mxu0 %v2168
    %v2266 = vpop.f32.mrf.mxu0
    %v2267 = vadd.f32 0.0, %v2266
    %v2268 = vpop.f32.mrf.mxu0
    %2269 = vmatprep.mubr.f32.mxu0 0.0
    %2270 = vmatmul.mubr.f32.gmra.mxu0 %v2170
    %v2271 = vpop.f32.mrf.mxu0
    %v2272 = vadd.f32 0.0, %v2271
    %v2273 = vpop.f32.mrf.mxu0
    %2274 = vmatprep.mubr.f32.mxu0 0.0
    %2275 = vmatmul.mubr.f32.gmra.mxu0 %v2172
    %v2276 = vpop.f32.mrf.mxu0
    %v2277 = vadd.f32 0.0, %v2276
    %v2278 = vpop.f32.mrf.mxu0
    %2279 = vmatprep.mubr.f32.mxu0 0.0
    %2280 = vmatmul.mubr.f32.gmra.mxu0 %v2174
    %v2281 = vpop.f32.mrf.mxu0
    %v2282 = vadd.f32 0.0, %v2281
    %v2283 = vpop.f32.mrf.mxu0
    %2284 = vmatprep.mubr.f32.mxu0 0.0
    %2285 = vmatmul.mubr.f32.gmra.mxu0 %v2176
    %v2286 = vpop.f32.mrf.mxu0
    %v2287 = vadd.f32 0.0, %v2286
    %v2288 = vpop.f32.mrf.mxu0
    %2289 = vmatprep.mubr.f32.mxu0 0.0
    %2290 = vmatmul.mubr.f32.gmra.mxu0 %v2178
    %v2291 = vpop.f32.mrf.mxu0
    %v2292 = vadd.f32 0.0, %v2291
    %v2293 = vpop.f32.mrf.mxu0
    %2294 = vmatprep.mubr.f32.mxu0 0.0
    %2295 = vmatmul.mubr.f32.gmra.mxu0 %v2180
    %v2296 = vpop.f32.mrf.mxu0
    %v2297 = vadd.f32 0.0, %v2296
    %v2298 = vpop.f32.mrf.mxu0
    %2299 = vmatprep.mubr.f32.mxu0 0.0
    %2300 = vmatmul.mubr.f32.gmra.mxu0 %v2182
    %v2301 = vpop.f32.mrf.mxu0
    %v2302 = vadd.f32 0.0, %v2301
    %v2303 = vpop.f32.mrf.mxu0
    %2304 = vdwg.mxu0
    %v2305 = vmul.f32 %v2267, 0.25
    %v2306 = vmul.f32 %v2272, 0.25
    %v2307 = vmul.f32 %v2277, 0.25
    %v2308 = vmul.f32 %v2282, 0.25
    %v2309 = vmul.f32 %v2287, 0.25
    %v2310 = vmul.f32 %v2292, 0.25
    %v2311 = vmul.f32 %v2297, 0.25
    %v2312 = vmul.f32 %v2302, 0.25
    %v2313 = vadd.f32 %v2305, %v125
    %v2314 = vadd.f32 %v2306, %v126
    %v2315 = vadd.f32 %v2307, %v127
    %v2316 = vadd.f32 %v2308, %v128
    %v2317 = vadd.f32 %v2309, %v129
    %v2318 = vadd.f32 %v2310, %v130
    %v2319 = vadd.f32 %v2311, %v131
    %v2320 = vadd.f32 %v2312, %v132
    %v2321 = vsel %vm184, %v2313, -inf
    %2322 = vmax.xlane.f32.xlu0 %v2321
    %v2323 = vpop.xlane.xlu0 %2322
    %v2324 = vsel %vm184, %v2314, -inf
    %2325 = vmax.xlane.f32.xlu0 %v2324
    %v2326 = vpop.xlane.xlu0 %2325
    %v2327 = vsel %vm184, %v2315, -inf
    %2328 = vmax.xlane.f32.xlu0 %v2327
    %v2329 = vpop.xlane.xlu0 %2328
    %v2330 = vsel %vm184, %v2316, -inf
    %2331 = vmax.xlane.f32.xlu0 %v2330
    %v2332 = vpop.xlane.xlu0 %2331
    %v2333 = vsel %vm184, %v2317, -inf
    %2334 = vmax.xlane.f32.xlu0 %v2333
    %v2335 = vpop.xlane.xlu0 %2334
    %v2336 = vsel %vm184, %v2318, -inf
    %2337 = vmax.xlane.f32.xlu0 %v2336
    %v2338 = vpop.xlane.xlu0 %2337
    %v2339 = vsel %vm184, %v2319, -inf
    %2340 = vmax.xlane.f32.xlu0 %v2339
    %v2341 = vpop.xlane.xlu0 %2340
    %v2342 = vsel %vm184, %v2320, -inf
    %2343 = vmax.xlane.f32.xlu0 %v2342
    %v2344 = vpop.xlane.xlu0 %2343
    %v2345 = vsub.f32 %v2313, %v2323
    %v2346 = vsub.f32 %v2314, %v2326
    %v2347 = vsub.f32 %v2315, %v2329
    %v2348 = vsub.f32 %v2316, %v2332
    %v2349 = vsub.f32 %v2317, %v2335
    %v2350 = vsub.f32 %v2318, %v2338
    %v2351 = vsub.f32 %v2319, %v2341
    %v2352 = vsub.f32 %v2320, %v2344
    %v2353 = vmul.f32 %v2345, 1.442695
    %v2354 = vpow.pop %v2353
    %v2355 = vmul.f32 %v2346, 1.442695
    %v2356 = vpow.pop %v2355
    %v2357 = vmul.f32 %v2347, 1.442695
    %v2358 = vpow.pop %v2357
    %v2359 = vmul.f32 %v2348, 1.442695
    %v2360 = vpow.pop %v2359
    %v2361 = vmul.f32 %v2349, 1.442695
    %v2362 = vpow.pop %v2361
    %v2363 = vmul.f32 %v2350, 1.442695
    %v2364 = vpow.pop %v2363
    %v2365 = vmul.f32 %v2351, 1.442695
    %v2366 = vpow.pop %v2365
    %v2367 = vmul.f32 %v2352, 1.442695
    %v2368 = vpow.pop %v2367
    %v2369 = vsel %vm184, %v2354, 0.0
    %2370 = vadd.xlane.f32.xlu0 %v2369
    %v2371 = vpop.xlane.xlu0 %2370
    %v2372 = vsel %vm184, %v2356, 0.0
    %2373 = vadd.xlane.f32.xlu0 %v2372
    %v2374 = vpop.xlane.xlu0 %2373
    %v2375 = vsel %vm184, %v2358, 0.0
    %2376 = vadd.xlane.f32.xlu0 %v2375
    %v2377 = vpop.xlane.xlu0 %2376
    %v2378 = vsel %vm184, %v2360, 0.0
    %2379 = vadd.xlane.f32.xlu0 %v2378
    %v2380 = vpop.xlane.xlu0 %2379
    %v2381 = vsel %vm184, %v2362, 0.0
    %2382 = vadd.xlane.f32.xlu0 %v2381
    %v2383 = vpop.xlane.xlu0 %2382
    %v2384 = vsel %vm184, %v2364, 0.0
    %2385 = vadd.xlane.f32.xlu0 %v2384
    %v2386 = vpop.xlane.xlu0 %2385
    %v2387 = vsel %vm184, %v2366, 0.0
    %2388 = vadd.xlane.f32.xlu0 %v2387
    %v2389 = vpop.xlane.xlu0 %2388
    %v2390 = vsel %vm184, %v2368, 0.0
    %2391 = vadd.xlane.f32.xlu0 %v2390
    %v2392 = vpop.xlane.xlu0 %2391
    %v2393 = vrcp.pop %v2371
    %v2394 = vrcp.pop %v2374
    %v2395 = vrcp.pop %v2377
    %v2396 = vrcp.pop %v2380
    %v2397 = vrcp.pop %v2383
    %v2398 = vrcp.pop %v2386
    %v2399 = vrcp.pop %v2389
    %v2400 = vrcp.pop %v2392
    %v2401 = vmul.f32 %v2354, %v2393
    %v2402 = vmul.f32 %v2356, %v2394
    %v2403 = vmul.f32 %v2358, %v2395
    %v2404 = vmul.f32 %v2360, %v2396
    %v2405 = vmul.f32 %v2362, %v2397
    %v2406 = vmul.f32 %v2364, %v2398
    %v2407 = vmul.f32 %v2366, %v2399
    %v2408 = vmul.f32 %v2368, %v2400
    %v2410 = vsel %vm184, %v2401, 0
    %v2413 = vsel %vm184, %v2402, 0
    %v2416 = vsel %vm184, %v2403, 0
    %v2419 = vsel %vm184, %v2404, 0
    %v2422 = vsel %vm184, %v2405, 0
    %v2425 = vsel %vm184, %v2406, 0
    %v2428 = vsel %vm184, %v2407, 0
    %v2431 = vsel %vm184, %v2408, 0
    %2433 = vmatprep.subr.mxu0 0.0
    %2434 = vmatpush1.msra.mxu0 0.0
    %2435 = vmatprep.subr.mxu0 0.0
    %2436 = vmatpush1.msra.mxu0 0.0
    %2437 = vmatprep.subr.mxu0 0.0
    %2438 = vmatpush1.msra.mxu0 0.0
    %2439 = vmatprep.subr.mxu0 0.0
    %2440 = vmatpush1.msra.mxu0 0.0
    %2441 = vmatprep.subr.mxu0 0.0
    %2442 = vmatpush1.msra.mxu0 0.0
    %2443 = vmatprep.subr.mxu0 0.0
    %2444 = vmatpush1.msra.mxu0 0.0
    %2445 = vmatprep.subr.mxu0 0.0
    %2446 = vmatpush1.msra.mxu0 0.0
    %2447 = vmatprep.subr.mxu0 0.0
    %2448 = vmatpush1.msra.mxu0 0.0
    %2449 = vmatprep.subr.mxu0 0.0
    %2450 = vmatpush1.msra.mxu0 %v2149
    %2451 = vmatprep.subr.mxu0 0.0
    %2452 = vmatpush1.msra.mxu0 %v2147
    %2453 = vmatprep.subr.mxu0 0.0
    %2454 = vmatpush1.msra.mxu0 %v2143
    %2455 = vmatprep.subr.mxu0 0.0
    %2456 = vmatpush1.msra.mxu0 %v2141
    %2457 = vmatprep.subr.mxu0 0.0
    %2458 = vmatpush1.msra.mxu0 %v2137
    %2459 = vmatprep.subr.mxu0 0.0
    %2460 = vmatpush1.msra.mxu0 %v2135
    %2461 = vmatprep.subr.mxu0 0.0
    %2462 = vmatpush1.msra.mxu0 %v2116
    %2463 = vmatprep.subr.mxu0 0.0
    %2464 = vmatpush1.msra.mxu0 %v2110
    %2465 = vmatprep.subr.mxu0 0.0
    %2466 = vmatpush2.msra.mxu0 0.0
    %2467 = vmatprep.subr.mxu0 0.0
    %2468 = vmatpush2.msra.mxu0 0.0
    %2469 = vmatprep.subr.mxu0 0.0
    %2470 = vmatpush2.msra.mxu0 0.0
    %2471 = vmatprep.subr.mxu0 0.0
    %2472 = vmatpush2.msra.mxu0 0.0
    %2473 = vmatprep.subr.mxu0 0.0
    %2474 = vmatpush2.msra.mxu0 0.0
    %2475 = vmatprep.subr.mxu0 0.0
    %2476 = vmatpush2.msra.mxu0 0.0
    %2477 = vmatprep.subr.mxu0 0.0
    %2478 = vmatpush2.msra.mxu0 0.0
    %2479 = vmatprep.subr.mxu0 0.0
    %2480 = vmatpush2.msra.mxu0 0.0
    %2481 = vmatprep.subr.mxu0 0.0
    %2482 = vmatpush2.msra.mxu0 0.0
    %2483 = vmatprep.subr.mxu0 0.0
    %2484 = vmatpush2.msra.mxu0 0.0
    %2485 = vmatprep.subr.mxu0 0.0
    %2486 = vmatpush2.msra.mxu0 0.0
    %2487 = vmatprep.subr.mxu0 0.0
    %2488 = vmatpush2.msra.mxu0 0.0
    %2489 = vmatprep.subr.mxu0 0.0
    %2490 = vmatpush2.msra.mxu0 0.0
    %2491 = vmatprep.subr.mxu0 0.0
    %2492 = vmatpush2.msra.mxu0 0.0
    %2493 = vmatprep.subr.mxu0 0.0
    %2494 = vmatpush2.msra.mxu0 0.0
    %2495 = vmatprep.subr.mxu0 0.0
    %2496 = vmatpush2.msra.mxu0 0.0
    %2497 = vmatprep.mubr.f32.mxu0 0.0
    %2498 = vmatmul.mubr.f32.gmra.mxu0 %v2410
    %v2499 = vpop.f32.mrf.mxu0
    %v2500 = vadd.f32 0.0, %v2499
    %v2501 = vpop.f32.mrf.mxu0
    %2502 = vmatprep.mubr.f32.mxu0 0.0
    %2503 = vmatmul.mubr.f32.gmra.mxu0 %v2413
    %v2504 = vpop.f32.mrf.mxu0
    %v2505 = vadd.f32 0.0, %v2504
    %v2506 = vpop.f32.mrf.mxu0
    %2507 = vmatprep.mubr.f32.mxu0 0.0
    %2508 = vmatmul.mubr.f32.gmra.mxu0 %v2416
    %v2509 = vpop.f32.mrf.mxu0
    %v2510 = vadd.f32 0.0, %v2509
    %v2511 = vpop.f32.mrf.mxu0
    %2512 = vmatprep.mubr.f32.mxu0 0.0
    %2513 = vmatmul.mubr.f32.gmra.mxu0 %v2419
    %v2514 = vpop.f32.mrf.mxu0
    %v2515 = vadd.f32 0.0, %v2514
    %v2516 = vpop.f32.mrf.mxu0
    %2517 = vmatprep.mubr.f32.mxu0 0.0
    %2518 = vmatmul.mubr.f32.gmra.mxu0 %v2422
    %v2519 = vpop.f32.mrf.mxu0
    %v2520 = vadd.f32 0.0, %v2519
    %v2521 = vpop.f32.mrf.mxu0
    %2522 = vmatprep.mubr.f32.mxu0 0.0
    %2523 = vmatmul.mubr.f32.gmra.mxu0 %v2425
    %v2524 = vpop.f32.mrf.mxu0
    %v2525 = vadd.f32 0.0, %v2524
    %v2526 = vpop.f32.mrf.mxu0
    %2527 = vmatprep.mubr.f32.mxu0 0.0
    %2528 = vmatmul.mubr.f32.gmra.mxu0 %v2428
    %v2529 = vpop.f32.mrf.mxu0
    %v2530 = vadd.f32 0.0, %v2529
    %v2531 = vpop.f32.mrf.mxu0
    %2532 = vmatprep.mubr.f32.mxu0 0.0
    %2533 = vmatmul.mubr.f32.gmra.mxu0 %v2431
    %v2534 = vpop.f32.mrf.mxu0
    %v2535 = vadd.f32 0.0, %v2534
    %v2536 = vpop.f32.mrf.mxu0
    %2537 = vdwg.mxu0
    %2540 = vrot.lane.b32.xlu0 %v2510, 16
    %v2541 = vpop.permute.xlu0 %2540
    %2542 = vrot.lane.b32.xlu0 %v2515, 16
    %v2543 = vpop.permute.xlu0 %2542
    %2548 = vrot.lane.b32.xlu0 %v2520, 32
    %v2549 = vpop.permute.xlu0 %2548
    %2550 = vrot.lane.b32.xlu0 %v2525, 32
    %v2551 = vpop.permute.xlu0 %2550
    %2556 = vrot.lane.b32.xlu0 %v2530, 48
    %v2557 = vpop.permute.xlu0 %2556
    %2558 = vrot.lane.b32.xlu0 %v2535, 48
    %v2559 = vpop.permute.xlu0 %2558
    %v2562 = vsel %vm318, %v2500, %v2541
    %v2563 = vsel %vm318, %v2505, %v2543
    %v2564 = vsel %vm715, %v2562, %v2549
    %v2565 = vsel %vm715, %v2563, %v2551
    %v2566 = vsel %vm718, %v2564, %v2557
    %v2567 = vsel %vm718, %v2565, %v2559
    %v2568 = vlaneseq
    %v2569 = vshrl.u32 %v2568, 7
    %v2570 = vsub.s32 0, %v2569
    %v2571 = vrot.slane %v2026, %v2570
    %v2573 = vsel %vm184, %v2566, 0
    %v2576 = vsel %vm184, %v2567, 0
    %2578 = vmatprep.subr.mxu0 0.0
    %2579 = vmatpush1.msra.mxu0 0.0
    %2580 = vmatprep.subr.mxu0 0.0
    %2581 = vmatpush1.msra.mxu0 0.0
    %2582 = vmatprep.subr.mxu0 0.0
    %2583 = vmatpush1.msra.mxu0 0.0
    %2584 = vmatprep.subr.mxu0 0.0
    %2585 = vmatpush1.msra.mxu0 0.0
    %2586 = vmatprep.subr.mxu0 0.0
    %2587 = vmatpush1.msra.mxu0 0.0
    %2588 = vmatprep.subr.mxu0 0.0
    %2589 = vmatpush1.msra.mxu0 0.0
    %2590 = vmatprep.subr.mxu0 0.0
    %2591 = vmatpush1.msra.mxu0 0.0
    %2592 = vmatprep.subr.mxu0 0.0
    %2593 = vmatpush1.msra.mxu0 0.0
    %2594 = vmatprep.subr.mxu0 0.0
    %2595 = vmatpush1.msra.mxu0 %v2009
    %2596 = vmatprep.subr.mxu0 0.0
    %2597 = vmatpush1.msra.mxu0 %v2008
    %2598 = vmatprep.subr.mxu0 0.0
    %2599 = vmatpush1.msra.mxu0 %v2007
    %2600 = vmatprep.subr.mxu0 0.0
    %2601 = vmatpush1.msra.mxu0 %v2006
    %2602 = vmatprep.subr.mxu0 0.0
    %2603 = vmatpush1.msra.mxu0 %v2005
    %2604 = vmatprep.subr.mxu0 0.0
    %2605 = vmatpush1.msra.mxu0 %v2004
    %2606 = vmatprep.subr.mxu0 0.0
    %2607 = vmatpush1.msra.mxu0 %v2003
    %2608 = vmatprep.subr.mxu0 0.0
    %2609 = vmatpush1.msra.mxu0 %v2002
    %2610 = vmatprep.subr.mxu0 0.0
    %2611 = vmatpush2.msra.mxu0 0.0
    %2612 = vmatprep.subr.mxu0 0.0
    %2613 = vmatpush2.msra.mxu0 0.0
    %2614 = vmatprep.subr.mxu0 0.0
    %2615 = vmatpush2.msra.mxu0 0.0
    %2616 = vmatprep.subr.mxu0 0.0
    %2617 = vmatpush2.msra.mxu0 0.0
    %2618 = vmatprep.subr.mxu0 0.0
    %2619 = vmatpush2.msra.mxu0 0.0
    %2620 = vmatprep.subr.mxu0 0.0
    %2621 = vmatpush2.msra.mxu0 0.0
    %2622 = vmatprep.subr.mxu0 0.0
    %2623 = vmatpush2.msra.mxu0 0.0
    %2624 = vmatprep.subr.mxu0 0.0
    %2625 = vmatpush2.msra.mxu0 0.0
    %2626 = vmatprep.subr.mxu0 0.0
    %2627 = vmatpush2.msra.mxu0 0.0
    %2628 = vmatprep.subr.mxu0 0.0
    %2629 = vmatpush2.msra.mxu0 0.0
    %2630 = vmatprep.subr.mxu0 0.0
    %2631 = vmatpush2.msra.mxu0 0.0
    %2632 = vmatprep.subr.mxu0 0.0
    %2633 = vmatpush2.msra.mxu0 0.0
    %2634 = vmatprep.subr.mxu0 0.0
    %2635 = vmatpush2.msra.mxu0 0.0
    %2636 = vmatprep.subr.mxu0 0.0
    %2637 = vmatpush2.msra.mxu0 0.0
    %2638 = vmatprep.subr.mxu0 0.0
    %2639 = vmatpush2.msra.mxu0 0.0
    %2640 = vmatprep.subr.mxu0 0.0
    %2641 = vmatpush2.msra.mxu0 0.0
    %2642 = vmatprep.mubr.f32.mxu0 0.0
    %2643 = vmatmul.mubr.f32.gmra.mxu0 %v2573
    %v2644 = vpop.f32.mrf.mxu0
    %v2645 = vadd.f32 %v2571, %v2644
    %v2646 = vpop.f32.mrf.mxu0
    %2647 = vmatprep.mubr.f32.mxu0 0.0
    %2648 = vmatmul.mubr.f32.gmra.mxu0 %v2576
    %v2649 = vpop.f32.mrf.mxu0
    %v2650 = vadd.f32 %v2571, %v2649
    %v2651 = vpop.f32.mrf.mxu0
    %2652 = vdwg.mxu0
    %v2653 = vadd.f32 %v1980, %v2645
    %v2654 = vadd.f32 %v1981, %v2650
    %v2655 = vsel %vm184, %v2653, 0.0
    %2656 = vadd.xlane.f32.xlu0 %v2655
    %v2657 = vpop.xlane.xlu0 %2656
    %v2658 = vsel %vm184, %v2654, 0.0
    %2659 = vadd.xlane.f32.xlu0 %v2658
    %v2660 = vpop.xlane.xlu0 %2659
    %v2661 = vmul.f32 %v2657, %v814
    %v2662 = vmul.f32 %v2660, %v814
    %v2663 = vsub.f32 %v2653, %v2661
    %v2664 = vsub.f32 %v2654, %v2662
    %v2665 = vmul.f32 %v2663, %v2663
    %v2666 = vmul.f32 %v2664, %v2664
    %v2667 = vsel %vm184, %v2665, 0.0
    %2668 = vadd.xlane.f32.xlu0 %v2667
    %v2669 = vpop.xlane.xlu0 %2668
    %v2670 = vsel %vm184, %v2666, 0.0
    %2671 = vadd.xlane.f32.xlu0 %v2670
    %v2672 = vpop.xlane.xlu0 %2671
    %v2673 = vmul.f32 %v2669, %v814
    %v2674 = vmul.f32 %v2672, %v814
    %v2675 = vadd.f32 %v2673, 1e-05
    %v2676 = vadd.f32 %v2674, 1e-05
    %v2677 = vrsqrt.pop %v2675
    %v2678 = vrsqrt.pop %v2676
    %v2679 = vmul.f32 %v2663, %v2677
    %v2680 = vmul.f32 %v2664, %v2678
    %v2681 = vlaneseq
    %v2682 = vshrl.u32 %v2681, 7
    %v2683 = vsub.s32 1, %v2682
    %v2684 = vrot.slane %v2026, %v2683
    %v2685 = vmul.f32 %v2679, %v2684
    %v2686 = vmul.f32 %v2680, %v2684
    %v2687 = vlaneseq
    %v2688 = vshrl.u32 %v2687, 7
    %v2689 = vsub.s32 2, %v2688
    %v2690 = vrot.slane %v2026, %v2689
    %v2691 = vadd.f32 %v2685, %v2690
    %v2692 = vadd.f32 %v2686, %v2690
    %v2693 = vlaneseq
    %v2694 = vshrl.u32 %v2693, 7
    %v2695 = vsub.s32 3, %v2694
    %v2696 = vrot.slane %v2026, %v2695
    %v2698 = vsel %vm184, %v2691, 0
    %v2701 = vsel %vm184, %v2692, 0
    %2703 = vmatprep.subr.mxu0 0.0
    %2704 = vmatpush1.msra.mxu0 0.0
    %2705 = vmatprep.subr.mxu0 0.0
    %2706 = vmatpush1.msra.mxu0 0.0
    %2707 = vmatprep.subr.mxu0 0.0
    %2708 = vmatpush1.msra.mxu0 0.0
    %2709 = vmatprep.subr.mxu0 0.0
    %2710 = vmatpush1.msra.mxu0 0.0
    %2711 = vmatprep.subr.mxu0 0.0
    %2712 = vmatpush1.msra.mxu0 0.0
    %2713 = vmatprep.subr.mxu0 0.0
    %2714 = vmatpush1.msra.mxu0 0.0
    %2715 = vmatprep.subr.mxu0 0.0
    %2716 = vmatpush1.msra.mxu0 0.0
    %2717 = vmatprep.subr.mxu0 0.0
    %2718 = vmatpush1.msra.mxu0 0.0
    %2719 = vmatprep.subr.mxu0 0.0
    %2720 = vmatpush1.msra.mxu0 %v2017
    %2721 = vmatprep.subr.mxu0 0.0
    %2722 = vmatpush1.msra.mxu0 %v2016
    %2723 = vmatprep.subr.mxu0 0.0
    %2724 = vmatpush1.msra.mxu0 %v2015
    %2725 = vmatprep.subr.mxu0 0.0
    %2726 = vmatpush1.msra.mxu0 %v2014
    %2727 = vmatprep.subr.mxu0 0.0
    %2728 = vmatpush1.msra.mxu0 %v2013
    %2729 = vmatprep.subr.mxu0 0.0
    %2730 = vmatpush1.msra.mxu0 %v2012
    %2731 = vmatprep.subr.mxu0 0.0
    %2732 = vmatpush1.msra.mxu0 %v2011
    %2733 = vmatprep.subr.mxu0 0.0
    %2734 = vmatpush1.msra.mxu0 %v2010
    %2735 = vmatprep.subr.mxu0 0.0
    %2736 = vmatpush2.msra.mxu0 0.0
    %2737 = vmatprep.subr.mxu0 0.0
    %2738 = vmatpush2.msra.mxu0 0.0
    %2739 = vmatprep.subr.mxu0 0.0
    %2740 = vmatpush2.msra.mxu0 0.0
    %2741 = vmatprep.subr.mxu0 0.0
    %2742 = vmatpush2.msra.mxu0 0.0
    %2743 = vmatprep.subr.mxu0 0.0
    %2744 = vmatpush2.msra.mxu0 0.0
    %2745 = vmatprep.subr.mxu0 0.0
    %2746 = vmatpush2.msra.mxu0 0.0
    %2747 = vmatprep.subr.mxu0 0.0
    %2748 = vmatpush2.msra.mxu0 0.0
    %2749 = vmatprep.subr.mxu0 0.0
    %2750 = vmatpush2.msra.mxu0 0.0
    %2751 = vmatprep.subr.mxu0 0.0
    %2752 = vmatpush2.msra.mxu0 0.0
    %2753 = vmatprep.subr.mxu0 0.0
    %2754 = vmatpush2.msra.mxu0 0.0
    %2755 = vmatprep.subr.mxu0 0.0
    %2756 = vmatpush2.msra.mxu0 0.0
    %2757 = vmatprep.subr.mxu0 0.0
    %2758 = vmatpush2.msra.mxu0 0.0
    %2759 = vmatprep.subr.mxu0 0.0
    %2760 = vmatpush2.msra.mxu0 0.0
    %2761 = vmatprep.subr.mxu0 0.0
    %2762 = vmatpush2.msra.mxu0 0.0
    %2763 = vmatprep.subr.mxu0 0.0
    %2764 = vmatpush2.msra.mxu0 0.0
    %2765 = vmatprep.subr.mxu0 0.0
    %2766 = vmatpush2.msra.mxu0 0.0
    %2767 = vmatprep.mubr.f32.mxu0 0.0
    %2768 = vmatmul.mubr.f32.gmra.mxu0 %v2698
    %v2769 = vpop.f32.mrf.mxu0
    %v2770 = vadd.f32 %v2696, %v2769
    %v2771 = vpop.f32.mrf.mxu0
    %2772 = vmatprep.mubr.f32.mxu0 0.0
    %2773 = vmatmul.mubr.f32.gmra.mxu0 %v2701
    %v2774 = vpop.f32.mrf.mxu0
    %v2775 = vadd.f32 %v2696, %v2774
    %v2776 = vpop.f32.mrf.mxu0
    %2777 = vdwg.mxu0
    %v2778 = vmax.f32 %v2770, 0.0
    %v2779 = vmax.f32 %v2775, 0.0
    %v2780 = vlaneseq
    %v2781 = vshrl.u32 %v2780, 7
    %v2782 = vsub.s32 4, %v2781
    %v2783 = vrot.slane %v2026, %v2782
    %v2785 = vsel %vm184, %v2778, 0
    %v2788 = vsel %vm184, %v2779, 0
    %2790 = vmatprep.subr.mxu0 0.0
    %2791 = vmatpush1.msra.mxu0 0.0
    %2792 = vmatprep.subr.mxu0 0.0
    %2793 = vmatpush1.msra.mxu0 0.0
    %2794 = vmatprep.subr.mxu0 0.0
    %2795 = vmatpush1.msra.mxu0 0.0
    %2796 = vmatprep.subr.mxu0 0.0
    %2797 = vmatpush1.msra.mxu0 0.0
    %2798 = vmatprep.subr.mxu0 0.0
    %2799 = vmatpush1.msra.mxu0 0.0
    %2800 = vmatprep.subr.mxu0 0.0
    %2801 = vmatpush1.msra.mxu0 0.0
    %2802 = vmatprep.subr.mxu0 0.0
    %2803 = vmatpush1.msra.mxu0 0.0
    %2804 = vmatprep.subr.mxu0 0.0
    %2805 = vmatpush1.msra.mxu0 0.0
    %2806 = vmatprep.subr.mxu0 0.0
    %2807 = vmatpush1.msra.mxu0 %v2025
    %2808 = vmatprep.subr.mxu0 0.0
    %2809 = vmatpush1.msra.mxu0 %v2024
    %2810 = vmatprep.subr.mxu0 0.0
    %2811 = vmatpush1.msra.mxu0 %v2023
    %2812 = vmatprep.subr.mxu0 0.0
    %2813 = vmatpush1.msra.mxu0 %v2022
    %2814 = vmatprep.subr.mxu0 0.0
    %2815 = vmatpush1.msra.mxu0 %v2021
    %2816 = vmatprep.subr.mxu0 0.0
    %2817 = vmatpush1.msra.mxu0 %v2020
    %2818 = vmatprep.subr.mxu0 0.0
    %2819 = vmatpush1.msra.mxu0 %v2019
    %2820 = vmatprep.subr.mxu0 0.0
    %2821 = vmatpush1.msra.mxu0 %v2018
    %2822 = vmatprep.subr.mxu0 0.0
    %2823 = vmatpush2.msra.mxu0 0.0
    %2824 = vmatprep.subr.mxu0 0.0
    %2825 = vmatpush2.msra.mxu0 0.0
    %2826 = vmatprep.subr.mxu0 0.0
    %2827 = vmatpush2.msra.mxu0 0.0
    %2828 = vmatprep.subr.mxu0 0.0
    %2829 = vmatpush2.msra.mxu0 0.0
    %2830 = vmatprep.subr.mxu0 0.0
    %2831 = vmatpush2.msra.mxu0 0.0
    %2832 = vmatprep.subr.mxu0 0.0
    %2833 = vmatpush2.msra.mxu0 0.0
    %2834 = vmatprep.subr.mxu0 0.0
    %2835 = vmatpush2.msra.mxu0 0.0
    %2836 = vmatprep.subr.mxu0 0.0
    %2837 = vmatpush2.msra.mxu0 0.0
    %2838 = vmatprep.subr.mxu0 0.0
    %2839 = vmatpush2.msra.mxu0 0.0
    %2840 = vmatprep.subr.mxu0 0.0
    %2841 = vmatpush2.msra.mxu0 0.0
    %2842 = vmatprep.subr.mxu0 0.0
    %2843 = vmatpush2.msra.mxu0 0.0
    %2844 = vmatprep.subr.mxu0 0.0
    %2845 = vmatpush2.msra.mxu0 0.0
    %2846 = vmatprep.subr.mxu0 0.0
    %2847 = vmatpush2.msra.mxu0 0.0
    %2848 = vmatprep.subr.mxu0 0.0
    %2849 = vmatpush2.msra.mxu0 0.0
    %2850 = vmatprep.subr.mxu0 0.0
    %2851 = vmatpush2.msra.mxu0 0.0
    %2852 = vmatprep.subr.mxu0 0.0
    %2853 = vmatpush2.msra.mxu0 0.0
    %2854 = vmatprep.mubr.f32.mxu0 0.0
    %2855 = vmatmul.mubr.f32.gmra.mxu0 %v2785
    %v2856 = vpop.f32.mrf.mxu0
    %v2857 = vadd.f32 %v2783, %v2856
    %v2858 = vpop.f32.mrf.mxu0
    %2859 = vmatprep.mubr.f32.mxu0 0.0
    %2860 = vmatmul.mubr.f32.gmra.mxu0 %v2788
    %v2861 = vpop.f32.mrf.mxu0
    %v2862 = vadd.f32 %v2783, %v2861
    %v2863 = vpop.f32.mrf.mxu0
    %2864 = vdwg.mxu0
    %v2865 = vadd.f32 %v2691, %v2857
    %v2866 = vadd.f32 %v2692, %v2862
    %v2867 = vsel %vm184, %v2865, 0.0
    %2868 = vadd.xlane.f32.xlu0 %v2867
    %v2869 = vpop.xlane.xlu0 %2868
    %v2870 = vsel %vm184, %v2866, 0.0
    %2871 = vadd.xlane.f32.xlu0 %v2870
    %v2872 = vpop.xlane.xlu0 %2871
    %v2873 = vmul.f32 %v2869, %v814
    %v2874 = vmul.f32 %v2872, %v814
    %v2875 = vsub.f32 %v2865, %v2873
    %v2876 = vsub.f32 %v2866, %v2874
    %v2877 = vmul.f32 %v2875, %v2875
    %v2878 = vmul.f32 %v2876, %v2876
    %v2879 = vsel %vm184, %v2877, 0.0
    %2880 = vadd.xlane.f32.xlu0 %v2879
    %v2881 = vpop.xlane.xlu0 %2880
    %v2882 = vsel %vm184, %v2878, 0.0
    %2883 = vadd.xlane.f32.xlu0 %v2882
    %v2884 = vpop.xlane.xlu0 %2883
    %v2885 = vmul.f32 %v2881, %v814
    %v2886 = vmul.f32 %v2884, %v814
    %v2887 = vadd.f32 %v2885, 1e-05
    %v2888 = vadd.f32 %v2886, 1e-05
    %v2889 = vrsqrt.pop %v2887
    %v2890 = vrsqrt.pop %v2888
    %v2891 = vmul.f32 %v2875, %v2889
    %v2892 = vmul.f32 %v2876, %v2890
    %v2893 = vlaneseq
    %v2894 = vshrl.u32 %v2893, 7
    %v2895 = vsub.s32 5, %v2894
    %v2896 = vrot.slane %v2026, %v2895
    %v2897 = vmul.f32 %v2891, %v2896
    %v2898 = vmul.f32 %v2892, %v2896
    %v2899 = vlaneseq
    %v2900 = vshrl.u32 %v2899, 7
    %v2901 = vsub.s32 6, %v2900
    %v2902 = vrot.slane %v2026, %v2901
    %v2903 = vadd.f32 %v2897, %v2902
    %v2904 = vadd.f32 %v2898, %v2902
    %v2905 = vld [vmem:[%s2] sm:$0x3]
    %v2907 = vsel %vm318, %v2905, 0
    %2909 = vmatprep.subr.mxu0 0.0
    %2910 = vmatpush1.msra.mxu0 0.0
    %2911 = vmatprep.subr.mxu0 0.0
    %2912 = vmatpush1.msra.mxu0 0.0
    %2913 = vmatprep.subr.mxu0 0.0
    %2914 = vmatpush1.msra.mxu0 0.0
    %2915 = vmatprep.subr.mxu0 0.0
    %2916 = vmatpush1.msra.mxu0 0.0
    %2917 = vmatprep.subr.mxu0 0.0
    %2918 = vmatpush1.msra.mxu0 0.0
    %2919 = vmatprep.subr.mxu0 0.0
    %2920 = vmatpush1.msra.mxu0 0.0
    %2921 = vmatprep.subr.mxu0 0.0
    %2922 = vmatpush1.msra.mxu0 0.0
    %2923 = vmatprep.subr.mxu0 0.0
    %2924 = vmatpush1.msra.mxu0 0.0
    %2925 = vmatprep.subr.mxu0 0.0
    %2926 = vmatpush1.msra.mxu0 0.0
    %2927 = vmatprep.subr.mxu0 0.0
    %2928 = vmatpush1.msra.mxu0 0.0
    %2929 = vmatprep.subr.mxu0 0.0
    %2930 = vmatpush1.msra.mxu0 0.0
    %2931 = vmatprep.subr.mxu0 0.0
    %2932 = vmatpush1.msra.mxu0 0.0
    %2933 = vmatprep.subr.mxu0 0.0
    %2934 = vmatpush1.msra.mxu0 0.0
    %2935 = vmatprep.subr.mxu0 0.0
    %2936 = vmatpush1.msra.mxu0 0.0
    %2937 = vmatprep.subr.mxu0 0.0
    %2938 = vmatpush1.msra.mxu0 %v2904
    %2939 = vmatprep.subr.mxu0 0.0
    %2940 = vmatpush1.msra.mxu0 %v2903
    %2941 = vmatprep.subr.mxu0 0.0
    %2942 = vmatpush2.msra.mxu0 0.0
    %2943 = vmatprep.subr.mxu0 0.0
    %2944 = vmatpush2.msra.mxu0 0.0
    %2945 = vmatprep.subr.mxu0 0.0
    %2946 = vmatpush2.msra.mxu0 0.0
    %2947 = vmatprep.subr.mxu0 0.0
    %2948 = vmatpush2.msra.mxu0 0.0
    %2949 = vmatprep.subr.mxu0 0.0
    %2950 = vmatpush2.msra.mxu0 0.0
    %2951 = vmatprep.subr.mxu0 0.0
    %2952 = vmatpush2.msra.mxu0 0.0
    %2953 = vmatprep.subr.mxu0 0.0
    %2954 = vmatpush2.msra.mxu0 0.0
    %2955 = vmatprep.subr.mxu0 0.0
    %2956 = vmatpush2.msra.mxu0 0.0
    %2957 = vmatprep.subr.mxu0 0.0
    %2958 = vmatpush2.msra.mxu0 0.0
    %2959 = vmatprep.subr.mxu0 0.0
    %2960 = vmatpush2.msra.mxu0 0.0
    %2961 = vmatprep.subr.mxu0 0.0
    %2962 = vmatpush2.msra.mxu0 0.0
    %2963 = vmatprep.subr.mxu0 0.0
    %2964 = vmatpush2.msra.mxu0 0.0
    %2965 = vmatprep.subr.mxu0 0.0
    %2966 = vmatpush2.msra.mxu0 0.0
    %2967 = vmatprep.subr.mxu0 0.0
    %2968 = vmatpush2.msra.mxu0 0.0
    %2969 = vmatprep.subr.mxu0 0.0
    %2970 = vmatpush2.msra.mxu0 0.0
    %2971 = vmatprep.subr.mxu0 0.0
    %2972 = vmatpush2.msra.mxu0 0.0
    %2973 = vmatprep.mubr.f32.mxu0 0.0
    %2974 = vmatmul.mubr.f32.gmra.mxu0 %v2907
    %v2975 = vpop.f32.mrf.mxu0
    %v2976 = vadd.f32 0.0, %v2975
    %v2977 = vpop.f32.mrf.mxu0
    %2978 = vdwg.mxu0
    %v2979 = vld [vmem:[%s6] sm:$0xff]
    %v2980 = vld [vmem:[%s6 + $0x8] sm:$0xff]
    %v2981 = vld [vmem:[%s6 + $0x10] sm:$0xff]
    %v2982 = vld [vmem:[%s6 + $0x18] sm:$0xff]
    %v2983 = vld [vmem:[%s6 + $0x20] sm:$0xff]
    %v2984 = vld [vmem:[%s6 + $0x28] sm:$0xff]
    %v2985 = vld [vmem:[%s6 + $0x30] sm:$0xff]
    %v2986 = vld [vmem:[%s6 + $0x38] sm:$0xff]
    %v2987 = vld [vmem:[%s6 + $0x40] sm:$0x1]
    %v2988 = vlaneseq
    %v2989 = vshrl.u32 %v2988, 7
    %v2990 = vsub.s32 0, %v2989
    %v2991 = vrot.slane %v2987, %v2990
    %v2993 = vsel %vm184, %v2976, 0
    %2995 = vmatprep.subr.mxu0 0.0
    %2996 = vmatpush1.msra.mxu0 0.0
    %2997 = vmatprep.subr.mxu0 0.0
    %2998 = vmatpush1.msra.mxu0 0.0
    %2999 = vmatprep.subr.mxu0 0.0
    %3000 = vmatpush1.msra.mxu0 0.0
    %3001 = vmatprep.subr.mxu0 0.0
    %3002 = vmatpush1.msra.mxu0 0.0
    %3003 = vmatprep.subr.mxu0 0.0
    %3004 = vmatpush1.msra.mxu0 0.0
    %3005 = vmatprep.subr.mxu0 0.0
    %3006 = vmatpush1.msra.mxu0 0.0
    %3007 = vmatprep.subr.mxu0 0.0
    %3008 = vmatpush1.msra.mxu0 0.0
    %3009 = vmatprep.subr.mxu0 0.0
    %3010 = vmatpush1.msra.mxu0 0.0
    %3011 = vmatprep.subr.mxu0 0.0
    %3012 = vmatpush1.msra.mxu0 %v2986
    %3013 = vmatprep.subr.mxu0 0.0
    %3014 = vmatpush1.msra.mxu0 %v2985
    %3015 = vmatprep.subr.mxu0 0.0
    %3016 = vmatpush1.msra.mxu0 %v2984
    %3017 = vmatprep.subr.mxu0 0.0
    %3018 = vmatpush1.msra.mxu0 %v2983
    %3019 = vmatprep.subr.mxu0 0.0
    %3020 = vmatpush1.msra.mxu0 %v2982
    %3021 = vmatprep.subr.mxu0 0.0
    %3022 = vmatpush1.msra.mxu0 %v2981
    %3023 = vmatprep.subr.mxu0 0.0
    %3024 = vmatpush1.msra.mxu0 %v2980
    %3025 = vmatprep.subr.mxu0 0.0
    %3026 = vmatpush1.msra.mxu0 %v2979
    %3027 = vmatprep.subr.mxu0 0.0
    %3028 = vmatpush2.msra.mxu0 0.0
    %3029 = vmatprep.subr.mxu0 0.0
    %3030 = vmatpush2.msra.mxu0 0.0
    %3031 = vmatprep.subr.mxu0 0.0
    %3032 = vmatpush2.msra.mxu0 0.0
    %3033 = vmatprep.subr.mxu0 0.0
    %3034 = vmatpush2.msra.mxu0 0.0
    %3035 = vmatprep.subr.mxu0 0.0
    %3036 = vmatpush2.msra.mxu0 0.0
    %3037 = vmatprep.subr.mxu0 0.0
    %3038 = vmatpush2.msra.mxu0 0.0
    %3039 = vmatprep.subr.mxu0 0.0
    %3040 = vmatpush2.msra.mxu0 0.0
    %3041 = vmatprep.subr.mxu0 0.0
    %3042 = vmatpush2.msra.mxu0 0.0
    %3043 = vmatprep.subr.mxu0 0.0
    %3044 = vmatpush2.msra.mxu0 0.0
    %3045 = vmatprep.subr.mxu0 0.0
    %3046 = vmatpush2.msra.mxu0 0.0
    %3047 = vmatprep.subr.mxu0 0.0
    %3048 = vmatpush2.msra.mxu0 0.0
    %3049 = vmatprep.subr.mxu0 0.0
    %3050 = vmatpush2.msra.mxu0 0.0
    %3051 = vmatprep.subr.mxu0 0.0
    %3052 = vmatpush2.msra.mxu0 0.0
    %3053 = vmatprep.subr.mxu0 0.0
    %3054 = vmatpush2.msra.mxu0 0.0
    %3055 = vmatprep.subr.mxu0 0.0
    %3056 = vmatpush2.msra.mxu0 0.0
    %3057 = vmatprep.subr.mxu0 0.0
    %3058 = vmatpush2.msra.mxu0 0.0
    %3059 = vmatprep.mubr.f32.mxu0 0.0
    %3060 = vmatmul.mubr.f32.gmra.mxu0 %v2993
    %v3061 = vpop.f32.mrf.mxu0
    %v3062 = vadd.f32 %v2991, %v3061
    %v3063 = vpop.f32.mrf.mxu0
    %3064 = vdwg.mxu0
    %3065 = vst [vmem:[#allocation2] sm:$0x3] %v3062
    // Predicated region
    $region30: #{transformer_forward.1} parent=1 // pred_check
      _
    $region31: #{transformer_forward.1} parent=1 // pred_check_branch
      %3067 = sbr.rel (0) target = $region33
    $region32: #{transformer_forward.1} parent=1 // pred_region
      %s3069 = ssub.s32 32, 32
      %3070 = vsyncadd [#allocation3], %s3069
      %s3072 = sshll.u32 [#allocation2], 4
      %s3073 = int_to_ptr.vmem [resolvable:$true] %s3072
      %3075 = dma.vmem_to_hbm [thread:$0]  %s3073, 32, %s7, [#allocation3]
    $region33: #{transformer_forward.1} parent=1 // pred_fallthru
      _
    // Predicated region
    $region34: #{transformer_forward.1} parent=1 // pred_check
      _
    $region35: #{transformer_forward.1} parent=1 // pred_check_branch
      %3077 = sbr.rel (0) target = $region37
    $region36: #{transformer_forward.1} parent=1 // pred_region
      %3078 = dma.done [#allocation3], 32
    $region37: #{transformer_forward.1} parent=1 // pred_fallthru
      _
    %3079 = vsyncpa [#allocation3], 1

</llo_original>
